<compile_context>
chip_gen: v7x
topology: tpu7x:2x2x1
jax: 0.10.0
libtpu: 0.0.40
codegen_flags: <defaults>
</compile_context>

<pallas_src>
import jax
import jax.numpy as jnp
from jax import lax
from jax.experimental import pallas as pl
from jax.experimental.pallas import tpu as pltpu

# ---- config stand-ins (cfg.BIIA.*) ----
ALPHA1 = 20.0          # voting-layer temperature
ALPHA2 = 1.0           # kept for parity with __init__ (unused in forward)
ITERATION = 2          # cfg.BIIA.ITERATION_ (loop is invariant -> computed once)
NEG_INF = -1e30


# ---------------------------------------------------------------------------
# Fused kernel: GB graphs per grid step, all intermediates stay on-chip
# ---------------------------------------------------------------------------
def fused_matching_kernel(xs_ref, xt_ref, smc_ref, tmr_ref, w_ref, b_ref,
                          out_ref, xt_ext_ref):
    GB, NSP, F = xs_ref.shape          # packed graphs, padded source nodes, feat
    NT8 = xt_ref.shape[1]              # target nodes padded to sublane multiple
    NTP = tmr_ref.shape[2]             # target nodes padded to lane multiple
    D = w_ref.shape[1]

    xs = xs_ref[...]                   # (GB, NSP, F)  bf16
    smc = smc_ref[...]                 # (GB, NSP, 1)  f32 source mask column
    tmr = tmr_ref[...]                 # (GB, 1, NTP)  f32 target mask row
    w_bf = w_ref[...]                  # (F, D)        bf16 (resident every step)
    bias = b_ref[...]                  # (1, D)        f32

    # Zero-extend x_t rows NT8 -> NTP in VMEM so every Nt-lane-axis op below is
    # full 128-lane width while the HBM x_t DMA stays at the small NT8 shape.
    if NT8 < NTP:
        xt_ext_ref[...] = jnp.zeros_like(xt_ext_ref)
    xt_ext_ref[:, :NT8, :] = xt_ref[...]
    xt_ext = xt_ext_ref[...]           # (GB, NTP, F) bf16, rows >= NT8 are zero

    # ---- hoisted masks / iotas (reused across voting / assignment) ----------
    tvalid = tmr > 0.0                                       # (GB, 1, NTP)
    any_t = jnp.max(tmr, axis=-1, keepdims=True)             # (GB, 1, 1)
    row_valid = smc * jnp.where(any_t > 0.0, 1.0, 0.0)       # (GB, NSP, 1)
    col_iota = lax.broadcasted_iota(jnp.int32, (GB, NSP, NTP), 2)

    def encode(x3_bf, rows):
        # Per-node linear + tanh encoder (GCL stand-in).  All packed graphs'
        # nodes are flattened so the MXU sees M = GB*rows, not `rows`.
        h = jnp.dot(x3_bf.reshape(GB * rows, F), w_bf,
                    preferred_element_type=jnp.float32)
        return jnp.tanh(h + bias).reshape(GB, rows, D)

    def affinity(z_a, z_b):
        # Per-graph z_a @ z_b^T — bf16 operands, f32 accumulation, transpose
        # folded into the contraction (no XLU transpose copy).
        return jnp.einsum("gqd,gkd->gqk",
                          z_a.astype(jnp.bfloat16), z_b.astype(jnp.bfloat16),
                          preferred_element_type=jnp.float32)

    def voting(aff):
        # FullPro: masked softmax(alpha * aff) over target nodes (f32 math).
        logits = jnp.where(tvalid, ALPHA1 * aff, NEG_INF)
        mx = jnp.max(logits, axis=-1, keepdims=True)
        e = jnp.exp(logits - mx)
        denom = jnp.sum(e, axis=-1, keepdims=True)
        # row_valid also zeroes graphs with no valid target node (batch padding).
        return e * pl.reciprocal(denom, approx=False) * row_valid

    def greedy_assign(p):
        # TODO(synk): exact Hungarian (LAP) has no clean Pallas equivalent;
        # greedy per-row argmax one-hot assignment is used instead.
        masked = jnp.where(tvalid, p, NEG_INF)
        mx = jnp.max(masked, axis=-1, keepdims=True)
        cand = jnp.where(masked == mx, col_iota, NTP)
        first = jnp.min(cand, axis=-1, keepdims=True)
        return (col_iota == first).astype(jnp.float32) * row_valid * tmr

    # ---------------- main branch ----------------
    z_s = encode(xs, NSP)
    z_t = encode(xt_ext, NTP)
    probability = voting(affinity(z_s, z_t))
    binary_m = greedy_assign(probability)

    # ---------------- cross branch (ITERATION loop hoisted; see header) ------
    bm_bf = binary_m.astype(jnp.bfloat16)                    # (GB, NSP, NTP)
    cross_z_s_in = jnp.einsum("gqk,gkf->gqf", bm_bf, xt_ext,
                              preferred_element_type=jnp.float32)  # (GB,NSP,F)
    cross_z_t_in = jnp.einsum("gqk,gqf->gkf", bm_bf, xs,
                              preferred_element_type=jnp.float32)  # (GB,NTP,F)
    cross_z_s = encode(cross_z_s_in.astype(jnp.bfloat16), NSP)
    cross_z_t = encode(cross_z_t_in.astype(jnp.bfloat16), NTP)
    cross_probability = voting(affinity(cross_z_s, cross_z_t))

    # Single merged output block -> one writeback DMA stream per step.
    out_ref[:, 0, :, :] = probability
    out_ref[:, 1, :, :] = binary_m
    out_ref[:, 2, :, :] = cross_probability


# ---------------------------------------------------------------------------
# Wrapper: bf16 pre-cast, minimal padding, graph packing, single pallas_call
# ---------------------------------------------------------------------------
def _round_up(n, m):
    return ((n + m - 1) // m) * m


def _pad_to(x, shape):
    return jnp.pad(x, [(0, t - s) for s, t in zip(x.shape, shape)])


def forward(x_s, x_t, s_mask, t_mask, W, bvec):
    # x_s: [B, Ns, F] dense-batched (fill_value=0); s_mask: [B, Ns] float {0,1}
    B, Ns, F = x_s.shape
    Nt = x_t.shape[1]
    D = W.shape[1]

    s_num_node = jnp.sum(s_mask, axis=-1).astype(jnp.int32)
    t_num_node = jnp.sum(t_mask, axis=-1).astype(jnp.int32)

    # Graphs per grid step: amortize per-step pipeline overhead and fill the
    # MXU M dim, while keeping grid length >= 2 when possible (v7x: 2 TCs).
    if B >= 16:
        GB = 8
    elif B >= 2:
        GB = B // 2
    else:
        GB = 1
    G = -(-B // GB)
    BP = G * GB            # batch padded with all-zero (fully masked) graphs

    NSP = _round_up(Ns, 16)      # sublane-safe for bf16 packing
    NT8 = _round_up(Nt, 16)      # x_t node axis: sublane padding only
    NTP = _round_up(Nt, 128)     # lane axis for affinity / outputs

    # bf16 pre-cast for arrays only ever consumed as MXU operands.
    xs_p = _pad_to(x_s.astype(jnp.bfloat16), (BP, NSP, F))
    xt_p = _pad_to(x_t.astype(jnp.bfloat16), (BP, NT8, F))
    w_bf = W.astype(jnp.bfloat16)
    b_f32 = bvec.astype(jnp.float32)
    smc = _pad_to(s_mask[:, :, None].astype(jnp.float32), (BP, NSP, 1))
    tmr = _pad_to(t_mask[:, None, :].astype(jnp.float32), (BP, 1, NTP))

    out = pl.pallas_call(
        fused_matching_kernel,
        out_shape=jax.ShapeDtypeStruct((BP, 3, NSP, NTP), jnp.float32),
        grid=(G,),
        in_specs=[
            pl.BlockSpec((GB, NSP, F), lambda g: (g, 0, 0)),
            pl.BlockSpec((GB, NT8, F), lambda g: (g, 0, 0)),
            pl.BlockSpec((GB, NSP, 1), lambda g: (g, 0, 0)),
            pl.BlockSpec((GB, 1, NTP), lambda g: (g, 0, 0)),
            pl.BlockSpec((F, D), lambda g: (0, 0)),    # W: resident (const index)
            pl.BlockSpec((1, D), lambda g: (0, 0)),    # bias: resident
        ],
        out_specs=pl.BlockSpec((GB, 3, NSP, NTP), lambda g: (g, 0, 0, 0)),
        scratch_shapes=[pltpu.VMEM((GB, NTP, F), jnp.bfloat16)],  # x_t row-ext
        compiler_params=pltpu.CompilerParams(
            # "parallel" batch-pack axis -> split across v7x's two TensorCores.
            dimension_semantics=("parallel",),
            # Footprint is a few MiB at GB=8; safe for v5e/v6e/v7x scoped VMEM.
            vmem_limit_bytes=32 * 1024 * 1024,
        ),
    )(xs_p, xt_p, smc, tmr, w_bf, b_f32)

    probability = out[:B, 0, :Ns, :Nt]
    binary_m = out[:B, 1, :Ns, :Nt]
    cross_probability = out[:B, 2, :Ns, :Nt]

    return (probability, binary_m, s_num_node, t_num_node,
            probability, cross_probability)


# ---------------------------------------------------------------------------
if __name__ == "__main__":
    key = jax.random.PRNGKey(0)
    B, Ns, Nt, F, D = 8, 16, 16, 32, 32
    k1, k2, k3, k4 = jax.random.split(key, 4)

    s_num = jnp.array([16, 12, 16, 9, 14, 16, 11, 10], dtype=jnp.int32)
    t_num = jnp.array([16, 10, 13, 16, 9, 15, 16, 12], dtype=jnp.int32)
    s_mask = (jnp.arange(Ns)[None, :] < s_num[:, None]).astype(jnp.float32)
    t_mask = (jnp.arange(Nt)[None, :] < t_num[:, None]).astype(jnp.float32)

    # dense-batched node features, zero-filled outside the mask
    x_s = jax.random.normal(k1, (B, Ns, F), jnp.float32) * s_mask[:, :, None]
    x_t = jax.random.normal(k2, (B, Nt, F), jnp.float32) * t_mask[:, :, None]

    # deterministic synthetic encoder parameters
    W = jax.random.normal(k3, (F, D), jnp.float32) * (1.0 / jnp.sqrt(F))
    bvec = jax.random.normal(k4, (1, D), jnp.float32) * 0.01

    outs = jax.jit(forward)(x_s, x_t, s_mask, t_mask, W, bvec)
    outs = jax.block_until_ready(outs)
    probability, binary_m, s_num_node, t_num_node, prob2, cross_prob = outs

    assert probability.shape == (B, Ns, Nt)
    assert binary_m.shape == (B, Ns, Nt)
    assert cross_prob.shape == (B, Ns, Nt)
    assert bool(jnp.all(jnp.isfinite(probability)))
    assert bool(jnp.all(jnp.isfinite(cross_prob)))
    assert bool(jnp.all(s_num_node == s_num))
    assert bool(jnp.all(t_num_node == t_num))
    # valid source rows of the voting output are proper softmax rows (sum ~ 1)
    row_sums = jnp.sum(probability, axis=-1)
    assert bool(jnp.all(jnp.where(s_mask > 0,
                                  jnp.abs(row_sums - 1.0) < 1e-3, True)))
    # assignment rows: one-hot for valid sources, zero for masked sources
    bin_sums = jnp.sum(binary_m, axis=-1)
    assert bool(jnp.all(jnp.where(s_mask > 0,
                                  jnp.abs(bin_sums - 1.0) < 1e-6,
                                  bin_sums == 0)))
    # masked target columns never receive an assignment
    assert bool(jnp.all(jnp.where(t_mask[:, None, :] > 0, True, binary_m == 0)))
    print("KERNEL_OK")
</pallas_src>

<mosaic_0001>
module attributes {stable_mosaic.version = 11 : i64} {
  func.func @fused_matching_kernel(%arg0: i32, %arg1: memref<4x16x32xbf16, #tpu.memory_space<vmem>>, %arg2: memref<4x16x32xbf16, #tpu.memory_space<vmem>>, %arg3: memref<4x16x1xf32, #tpu.memory_space<vmem>>, %arg4: memref<4x1x128xf32, #tpu.memory_space<vmem>>, %arg5: memref<32x32xbf16, #tpu.memory_space<vmem>>, %arg6: memref<1x32xf32, #tpu.memory_space<vmem>>, %arg7: memref<4x3x16x128xf32, #tpu.memory_space<vmem>>, %arg8: memref<4x128x32xbf16, #tpu.memory_space<vmem>>) attributes {dimension_semantics = [#tpu.dimension_semantics<parallel>], iteration_bounds = array<i64: 2>, scalar_prefetch = 0 : i64, scratch_operands = 1 : i64, tpu.core_type = #tpu.core_type<tc>, window_params = [{transform_indices = @transform_0, window_bounds = array<i64: 4, 16, 32>}, {transform_indices = @transform_1, window_bounds = array<i64: 4, 16, 32>}, {transform_indices = @transform_2, window_bounds = array<i64: 4, 16, 1>}, {transform_indices = @transform_3, window_bounds = array<i64: 4, 1, 128>}, {pipeline_mode = #tpu.pipeline_mode<synchronous>, transform_indices = @transform_4, window_bounds = array<i64: 32, 32>}, {pipeline_mode = #tpu.pipeline_mode<synchronous>, transform_indices = @transform_5, window_bounds = array<i64: 1, 32>}, {transform_indices = @transform_6, window_bounds = array<i64: 4, 3, 16, 128>}]} {
    %c0 = arith.constant 0 : index
    %c0_0 = arith.constant 0 : index
    %c0_1 = arith.constant 0 : index
    %0 = vector.load %arg1[%c0, %c0_0, %c0_1] : memref<4x16x32xbf16, #tpu.memory_space<vmem>>, vector<4x16x32xbf16>
    %c0_2 = arith.constant 0 : index
    %c0_3 = arith.constant 0 : index
    %c0_4 = arith.constant 0 : index
    %1 = vector.load %arg3[%c0_2, %c0_3, %c0_4] : memref<4x16x1xf32, #tpu.memory_space<vmem>>, vector<4x16x1xf32>
    %c0_5 = arith.constant 0 : index
    %c0_6 = arith.constant 0 : index
    %c0_7 = arith.constant 0 : index
    %2 = vector.load %arg4[%c0_5, %c0_6, %c0_7] : memref<4x1x128xf32, #tpu.memory_space<vmem>>, vector<4x1x128xf32>
    %c0_8 = arith.constant 0 : index
    %c0_9 = arith.constant 0 : index
    %3 = vector.load %arg5[%c0_8, %c0_9] : memref<32x32xbf16, #tpu.memory_space<vmem>>, vector<32x32xbf16>
    %c0_10 = arith.constant 0 : index
    %c0_11 = arith.constant 0 : index
    %4 = vector.load %arg6[%c0_10, %c0_11] : memref<1x32xf32, #tpu.memory_space<vmem>>, vector<1x32xf32>
    %cst = arith.constant 0.000000e+00 : bf16
    %5 = vector.broadcast %cst : bf16 to vector<4x128x32xbf16>
    %c0_12 = arith.constant 0 : index
    %c0_13 = arith.constant 0 : index
    %c0_14 = arith.constant 0 : index
    %6 = vector.load %arg8[%c0_12, %c0_13, %c0_14] : memref<4x128x32xbf16, #tpu.memory_space<vmem>>, vector<4x128x32xbf16>
    tpu.vector_store %arg8[%c0_12, %c0_13, %c0_14], %5 {strides = array<i32>} : memref<4x128x32xbf16, #tpu.memory_space<vmem>>, vector<4x128x32xbf16>,
    %c0_15 = arith.constant 0 : index
    %c0_16 = arith.constant 0 : index
    %c0_17 = arith.constant 0 : index
    %7 = vector.load %arg2[%c0_15, %c0_16, %c0_17] : memref<4x16x32xbf16, #tpu.memory_space<vmem>>, vector<4x16x32xbf16>
    %c0_18 = arith.constant 0 : index
    %c0_19 = arith.constant 0 : index
    %c0_20 = arith.constant 0 : index
    %8 = vector.load %arg8[%c0_18, %c0_19, %c0_20] : memref<4x128x32xbf16, #tpu.memory_space<vmem>>, vector<4x16x32xbf16>
    tpu.vector_store %arg8[%c0_18, %c0_19, %c0_20], %7 {strides = array<i32>} : memref<4x128x32xbf16, #tpu.memory_space<vmem>>, vector<4x16x32xbf16>,
    %c0_21 = arith.constant 0 : index
    %c0_22 = arith.constant 0 : index
    %c0_23 = arith.constant 0 : index
    %9 = vector.load %arg8[%c0_21, %c0_22, %c0_23] : memref<4x128x32xbf16, #tpu.memory_space<vmem>>, vector<4x128x32xbf16>
    %cst_24 = arith.constant 0.000000e+00 : f32
    %10 = vector.broadcast %cst_24 : f32 to vector<4x1x128xf32>
    %11 = arith.cmpf ogt, %2, %10 : vector<4x1x128xf32>
    %cst_25 = arith.constant dense<0xFF800000> : vector<4x1xf32>
    %12 = vector.multi_reduction <maximumf>, %2, %cst_25 [2] : vector<4x1x128xf32> to vector<4x1xf32>
    %13 = vector.shape_cast %12 : vector<4x1xf32> to vector<4x1x1xf32>
    %cst_26 = arith.constant 0.000000e+00 : f32
    %14 = vector.broadcast %cst_26 : f32 to vector<4x1x1xf32>
    %15 = arith.cmpf ogt, %13, %14 : vector<4x1x1xf32>
    %cst_27 = arith.constant 1.000000e+00 : f32
    %cst_28 = arith.constant 0.000000e+00 : f32
    %16 = vector.broadcast %cst_27 : f32 to vector<4x1x1xf32>
    %17 = vector.broadcast %cst_28 : f32 to vector<4x1x1xf32>
    %18 = arith.select %15, %16, %17 : vector<4x1x1xi1>, vector<4x1x1xf32>
    %19 = vector.broadcast %18 : vector<4x1x1xf32> to vector<4x16x1xf32>
    %20 = arith.mulf %1, %19 : vector<4x16x1xf32>
    %21 = tpu.iota {dimensions = array<i32: 2>} : vector<4x16x128xi32>
    %22 = vector.shape_cast %0 : vector<4x16x32xbf16> to vector<64x32xbf16>
    %cst_29 = arith.constant dense<0.000000e+00> : vector<64x32xf32>
    %23 = tpu.matmul %22, %3, %cst_29 {dimension_numbers = #tpu.dot_dimension_numbers<[1], [0], [0], [1], [0, 0, 1, 1], [], []>} : vector<64x32xbf16>, vector<32x32xbf16>, vector<64x32xf32> -> vector<64x32xf32>
    %24 = vector.broadcast %4 : vector<1x32xf32> to vector<64x32xf32>
    %25 = arith.addf %23, %24 : vector<64x32xf32>
    %26 = math.tanh %25 : vector<64x32xf32>
    %27 = vector.shape_cast %26 : vector<64x32xf32> to vector<4x16x32xf32>
    %28 = vector.shape_cast %9 : vector<4x128x32xbf16> to vector<512x32xbf16>
    %cst_30 = arith.constant dense<0.000000e+00> : vector<512x32xf32>
    %29 = tpu.matmul %28, %3, %cst_30 {dimension_numbers = #tpu.dot_dimension_numbers<[1], [0], [0], [1], [0, 0, 1, 1], [], []>} : vector<512x32xbf16>, vector<32x32xbf16>, vector<512x32xf32> -> vector<512x32xf32>
    %30 = vector.broadcast %4 : vector<1x32xf32> to vector<512x32xf32>
    %31 = arith.addf %29, %30 : vector<512x32xf32>
    %32 = math.tanh %31 : vector<512x32xf32>
    %33 = vector.shape_cast %32 : vector<512x32xf32> to vector<4x128x32xf32>
    %34 = arith.truncf %27 : vector<4x16x32xf32> to vector<4x16x32xbf16>
    %35 = arith.truncf %33 : vector<4x128x32xf32> to vector<4x128x32xbf16>
    "tpu.trace_start"() <{level = 10 : i32, message = "gqd,gkd->gqk"}> : () -> ()
    %cst_31 = arith.constant dense<0.000000e+00> : vector<4x16x128xf32>
    %36 = tpu.matmul %34, %35, %cst_31 {dimension_numbers = #tpu.dot_dimension_numbers<[2], [2], [1], [1], [0, 0, 0, 1, 1, 1], [0], [0]>} : vector<4x16x32xbf16>, vector<4x128x32xbf16>, vector<4x16x128xf32> -> vector<4x16x128xf32>
    "tpu.trace_stop"() : () -> ()
    %cst_32 = arith.constant 2.000000e+01 : f32
    %37 = vector.broadcast %cst_32 : f32 to vector<4x16x128xf32>
    %38 = arith.mulf %37, %36 : vector<4x16x128xf32>
    %cst_33 = arith.constant -1.000000e+30 : f32
    %39 = vector.shape_cast %11 : vector<4x1x128xi1> to vector<4x1x128xi1>
    %40 = vector.broadcast %39 : vector<4x1x128xi1> to vector<4x16x128xi1>
    %41 = vector.broadcast %cst_33 : f32 to vector<4x16x128xf32>
    %42 = arith.select %40, %38, %41 : vector<4x16x128xi1>, vector<4x16x128xf32>
    %cst_34 = arith.constant dense<0xFF800000> : vector<4x16xf32>
    %43 = vector.multi_reduction <maximumf>, %42, %cst_34 [2] : vector<4x16x128xf32> to vector<4x16xf32>
    %44 = vector.shape_cast %43 : vector<4x16xf32> to vector<4x16x1xf32>
    %45 = vector.broadcast %44 : vector<4x16x1xf32> to vector<4x16x128xf32>
    %46 = arith.subf %42, %45 : vector<4x16x128xf32>
    %47 = math.exp %46 : vector<4x16x128xf32>
    %cst_35 = arith.constant dense<0.000000e+00> : vector<4x16xf32>
    %48 = vector.multi_reduction <add>, %47, %cst_35 [2] : vector<4x16x128xf32> to vector<4x16xf32>
    %49 = vector.shape_cast %48 : vector<4x16xf32> to vector<4x16x1xf32>
    %50 = tpu.reciprocal %49 : vector<4x16x1xf32> -> vector<4x16x1xf32>
    %51 = vector.broadcast %50 : vector<4x16x1xf32> to vector<4x16x128xf32>
    %52 = arith.mulf %47, %51 : vector<4x16x128xf32>
    %53 = vector.broadcast %20 : vector<4x16x1xf32> to vector<4x16x128xf32>
    %54 = arith.mulf %52, %53 : vector<4x16x128xf32>
    %cst_36 = arith.constant -1.000000e+30 : f32
    %55 = vector.shape_cast %11 : vector<4x1x128xi1> to vector<4x1x128xi1>
    %56 = vector.broadcast %55 : vector<4x1x128xi1> to vector<4x16x128xi1>
    %57 = vector.broadcast %cst_36 : f32 to vector<4x16x128xf32>
    %58 = arith.select %56, %54, %57 : vector<4x16x128xi1>, vector<4x16x128xf32>
    %cst_37 = arith.constant dense<0xFF800000> : vector<4x16xf32>
    %59 = vector.multi_reduction <maximumf>, %58, %cst_37 [2] : vector<4x16x128xf32> to vector<4x16xf32>
    %60 = vector.shape_cast %59 : vector<4x16xf32> to vector<4x16x1xf32>
    %61 = vector.broadcast %60 : vector<4x16x1xf32> to vector<4x16x128xf32>
    %62 = arith.cmpf oeq, %58, %61 : vector<4x16x128xf32>
    %c128_i32 = arith.constant 128 : i32
    %63 = vector.broadcast %c128_i32 : i32 to vector<4x16x128xi32>
    %64 = arith.select %62, %21, %63 : vector<4x16x128xi1>, vector<4x16x128xi32>
    %cst_38 = arith.constant dense<2147483647> : vector<4x16xi32>
    %65 = vector.multi_reduction <minsi>, %64, %cst_38 [2] : vector<4x16x128xi32> to vector<4x16xi32>
    %66 = vector.shape_cast %65 : vector<4x16xi32> to vector<4x16x1xi32>
    %67 = vector.broadcast %66 : vector<4x16x1xi32> to vector<4x16x128xi32>
    %68 = arith.cmpi eq, %21, %67 : vector<4x16x128xi32>
    %69 = arith.extui %68 : vector<4x16x128xi1> to vector<4x16x128xi32>
    %70 = arith.sitofp %69 : vector<4x16x128xi32> to vector<4x16x128xf32>
    %71 = vector.broadcast %20 : vector<4x16x1xf32> to vector<4x16x128xf32>
    %72 = arith.mulf %70, %71 : vector<4x16x128xf32>
    %73 = vector.broadcast %2 : vector<4x1x128xf32> to vector<4x16x128xf32>
    %74 = arith.mulf %72, %73 : vector<4x16x128xf32>
    %75 = arith.truncf %74 : vector<4x16x128xf32> to vector<4x16x128xbf16>
    "tpu.trace_start"() <{level = 10 : i32, message = "gqk,gkf->gqf"}> : () -> ()
    %cst_39 = arith.constant dense<0.000000e+00> : vector<4x16x32xf32>
    %76 = tpu.matmul %75, %9, %cst_39 {dimension_numbers = #tpu.dot_dimension_numbers<[2], [1], [1], [2], [0, 0, 0, 1, 1, 2], [0], [0]>} : vector<4x16x128xbf16>, vector<4x128x32xbf16>, vector<4x16x32xf32> -> vector<4x16x32xf32>
    "tpu.trace_stop"() : () -> ()
    "tpu.trace_start"() <{level = 10 : i32, message = "gqk,gqf->gkf"}> : () -> ()
    %cst_40 = arith.constant dense<0.000000e+00> : vector<4x128x32xf32>
    %77 = tpu.matmul %75, %0, %cst_40 {dimension_numbers = #tpu.dot_dimension_numbers<[1], [1], [2], [2], [0, 0, 0, 2, 1, 2], [0], [0]>} : vector<4x16x128xbf16>, vector<4x16x32xbf16>, vector<4x128x32xf32> -> vector<4x128x32xf32>
    "tpu.trace_stop"() : () -> ()
    %78 = arith.truncf %76 : vector<4x16x32xf32> to vector<4x16x32xbf16>
    %79 = vector.shape_cast %78 : vector<4x16x32xbf16> to vector<64x32xbf16>
    %cst_41 = arith.constant dense<0.000000e+00> : vector<64x32xf32>
    %80 = tpu.matmul %79, %3, %cst_41 {dimension_numbers = #tpu.dot_dimension_numbers<[1], [0], [0], [1], [0, 0, 1, 1], [], []>} : vector<64x32xbf16>, vector<32x32xbf16>, vector<64x32xf32> -> vector<64x32xf32>
    %81 = vector.broadcast %4 : vector<1x32xf32> to vector<64x32xf32>
    %82 = arith.addf %80, %81 : vector<64x32xf32>
    %83 = math.tanh %82 : vector<64x32xf32>
    %84 = vector.shape_cast %83 : vector<64x32xf32> to vector<4x16x32xf32>
    %85 = arith.truncf %77 : vector<4x128x32xf32> to vector<4x128x32xbf16>
    %86 = vector.shape_cast %85 : vector<4x128x32xbf16> to vector<512x32xbf16>
    %cst_42 = arith.constant dense<0.000000e+00> : vector<512x32xf32>
    %87 = tpu.matmul %86, %3, %cst_42 {dimension_numbers = #tpu.dot_dimension_numbers<[1], [0], [0], [1], [0, 0, 1, 1], [], []>} : vector<512x32xbf16>, vector<32x32xbf16>, vector<512x32xf32> -> vector<512x32xf32>
    %88 = vector.broadcast %4 : vector<1x32xf32> to vector<512x32xf32>
    %89 = arith.addf %87, %88 : vector<512x32xf32>
    %90 = math.tanh %89 : vector<512x32xf32>
    %91 = vector.shape_cast %90 : vector<512x32xf32> to vector<4x128x32xf32>
    %92 = arith.truncf %84 : vector<4x16x32xf32> to vector<4x16x32xbf16>
    %93 = arith.truncf %91 : vector<4x128x32xf32> to vector<4x128x32xbf16>
    "tpu.trace_start"() <{level = 10 : i32, message = "gqd,gkd->gqk"}> : () -> ()
    %cst_43 = arith.constant dense<0.000000e+00> : vector<4x16x128xf32>
    %94 = tpu.matmul %92, %93, %cst_43 {dimension_numbers = #tpu.dot_dimension_numbers<[2], [2], [1], [1], [0, 0, 0, 1, 1, 1], [0], [0]>} : vector<4x16x32xbf16>, vector<4x128x32xbf16>, vector<4x16x128xf32> -> vector<4x16x128xf32>
    "tpu.trace_stop"() : () -> ()
    %cst_44 = arith.constant 2.000000e+01 : f32
    %95 = vector.broadcast %cst_44 : f32 to vector<4x16x128xf32>
    %96 = arith.mulf %95, %94 : vector<4x16x128xf32>
    %cst_45 = arith.constant -1.000000e+30 : f32
    %97 = vector.shape_cast %11 : vector<4x1x128xi1> to vector<4x1x128xi1>
    %98 = vector.broadcast %97 : vector<4x1x128xi1> to vector<4x16x128xi1>
    %99 = vector.broadcast %cst_45 : f32 to vector<4x16x128xf32>
    %100 = arith.select %98, %96, %99 : vector<4x16x128xi1>, vector<4x16x128xf32>
    %cst_46 = arith.constant dense<0xFF800000> : vector<4x16xf32>
    %101 = vector.multi_reduction <maximumf>, %100, %cst_46 [2] : vector<4x16x128xf32> to vector<4x16xf32>
    %102 = vector.shape_cast %101 : vector<4x16xf32> to vector<4x16x1xf32>
    %103 = vector.broadcast %102 : vector<4x16x1xf32> to vector<4x16x128xf32>
    %104 = arith.subf %100, %103 : vector<4x16x128xf32>
    %105 = math.exp %104 : vector<4x16x128xf32>
    %cst_47 = arith.constant dense<0.000000e+00> : vector<4x16xf32>
    %106 = vector.multi_reduction <add>, %105, %cst_47 [2] : vector<4x16x128xf32> to vector<4x16xf32>
    %107 = vector.shape_cast %106 : vector<4x16xf32> to vector<4x16x1xf32>
    %108 = tpu.reciprocal %107 : vector<4x16x1xf32> -> vector<4x16x1xf32>
    %109 = vector.broadcast %108 : vector<4x16x1xf32> to vector<4x16x128xf32>
    %110 = arith.mulf %105, %109 : vector<4x16x128xf32>
    %111 = vector.broadcast %20 : vector<4x16x1xf32> to vector<4x16x128xf32>
    %112 = arith.mulf %110, %111 : vector<4x16x128xf32>
    %c0_48 = arith.constant 0 : index
    %c0_49 = arith.constant 0 : index
    %c0_50 = arith.constant 0 : index
    %c0_51 = arith.constant 0 : index
    %113 = vector.load %arg7[%c0_48, %c0_49, %c0_50, %c0_51] : memref<4x3x16x128xf32, #tpu.memory_space<vmem>>, vector<4x1x16x128xf32>
    %114 = vector.shape_cast %113 : vector<4x1x16x128xf32> to vector<4x16x128xf32>
    %115 = vector.shape_cast %54 : vector<4x16x128xf32> to vector<4x1x16x128xf32>
    tpu.vector_store %arg7[%c0_48, %c0_49, %c0_50, %c0_51], %115 {strides = array<i32>} : memref<4x3x16x128xf32, #tpu.memory_space<vmem>>, vector<4x1x16x128xf32>,
    %c0_52 = arith.constant 0 : index
    %c1 = arith.constant 1 : index
    %c0_53 = arith.constant 0 : index
    %c0_54 = arith.constant 0 : index
    %116 = vector.load %arg7[%c0_52, %c1, %c0_53, %c0_54] : memref<4x3x16x128xf32, #tpu.memory_space<vmem>>, vector<4x1x16x128xf32>
    %117 = vector.shape_cast %116 : vector<4x1x16x128xf32> to vector<4x16x128xf32>
    %118 = vector.shape_cast %74 : vector<4x16x128xf32> to vector<4x1x16x128xf32>
    tpu.vector_store %arg7[%c0_52, %c1, %c0_53, %c0_54], %118 {strides = array<i32>} : memref<4x3x16x128xf32, #tpu.memory_space<vmem>>, vector<4x1x16x128xf32>,
    %c0_55 = arith.constant 0 : index
    %c2 = arith.constant 2 : index
    %c0_56 = arith.constant 0 : index
    %c0_57 = arith.constant 0 : index
    %119 = vector.load %arg7[%c0_55, %c2, %c0_56, %c0_57] : memref<4x3x16x128xf32, #tpu.memory_space<vmem>>, vector<4x1x16x128xf32>
    %120 = vector.shape_cast %119 : vector<4x1x16x128xf32> to vector<4x16x128xf32>
    %121 = vector.shape_cast %112 : vector<4x16x128xf32> to vector<4x1x16x128xf32>
    tpu.vector_store %arg7[%c0_55, %c2, %c0_56, %c0_57], %121 {strides = array<i32>} : memref<4x3x16x128xf32, #tpu.memory_space<vmem>>, vector<4x1x16x128xf32>,
    return
  }
  func.func @transform_0(%arg0: i32) -> (i32, i32, i32) {
    %c0_i32 = arith.constant 0 : i32
    %c0_i32_0 = arith.constant 0 : i32
    %c0_i32_1 = arith.constant 0 : i32
    return %arg0, %c0_i32, %c0_i32_0 : i32, i32, i32
  }
  func.func @transform_1(%arg0: i32) -> (i32, i32, i32) {
    %c0_i32 = arith.constant 0 : i32
    %c0_i32_0 = arith.constant 0 : i32
    %c0_i32_1 = arith.constant 0 : i32
    return %arg0, %c0_i32, %c0_i32_0 : i32, i32, i32
  }
  func.func @transform_2(%arg0: i32) -> (i32, i32, i32) {
    %c0_i32 = arith.constant 0 : i32
    %c0_i32_0 = arith.constant 0 : i32
    %c0_i32_1 = arith.constant 0 : i32
    return %arg0, %c0_i32, %c0_i32_0 : i32, i32, i32
  }
  func.func @transform_3(%arg0: i32) -> (i32, i32, i32) {
    %c0_i32 = arith.constant 0 : i32
    %c0_i32_0 = arith.constant 0 : i32
    %c0_i32_1 = arith.constant 0 : i32
    return %arg0, %c0_i32, %c0_i32_0 : i32, i32, i32
  }
  func.func @transform_4(%arg0: i32) -> (i32, i32) {
    %c0_i32 = arith.constant 0 : i32
    %c0_i32_0 = arith.constant 0 : i32
    %c0_i32_1 = arith.constant 0 : i32
    return %c0_i32, %c0_i32_0 : i32, i32
  }
  func.func @transform_5(%arg0: i32) -> (i32, i32) {
    %c0_i32 = arith.constant 0 : i32
    %c0_i32_0 = arith.constant 0 : i32
    %c0_i32_1 = arith.constant 0 : i32
    return %c0_i32, %c0_i32_0 : i32, i32
  }
  func.func @transform_6(%arg0: i32) -> (i32, i32, i32, i32) {
    %c0_i32 = arith.constant 0 : i32
    %c0_i32_0 = arith.constant 0 : i32
    %c0_i32_1 = arith.constant 0 : i32
    %c0_i32_2 = arith.constant 0 : i32
    return %arg0, %c0_i32, %c0_i32_0, %c0_i32_1 : i32, i32, i32, i32
  }
}

</mosaic_0001>

<llo_original>
// kernel: forward.1
$region0: #{forward.1}
  #allocation0 [shape = 'u32[]', space=smem, size = 0x4, offset = 0x4, fixed_abs, tag = 'smem constant byte address 0x4 - core index']
  #allocation1 [shape = 'u32[144,128]{1,0:T(1,128)}', space=vmem, size = 0x12000, scoped, tag = 'internal scratch']
  #allocation2 [shape = 'bf16[4,128,32]{2,1,0:T(16,128)(2,1)}', space=vmem, size = 0x20000, scoped, tag = 'scratch operand']
  %s0 = inlined_call_operand.vmem [shape: bf16[8,16,32], index: 0, kind: input, shape index: {}]
  %s1 = inlined_call_operand.vmem [shape: bf16[8,16,32], index: 1, kind: input, shape index: {}]
  %s2 = inlined_call_operand.vmem [shape: f32[8,16,1], index: 2, kind: input, shape index: {}]
  %s3 = inlined_call_operand.vmem [shape: f32[8,1,128], index: 3, kind: input, shape index: {}]
  %s4 = inlined_call_operand.vmem [shape: bf16[32,32], index: 4, kind: input, shape index: {}]
  %s5 = inlined_call_operand.vmem [shape: f32[1,32], index: 5, kind: input, shape index: {}]
  %s6 = inlined_call_operand.vmem [shape: f32[8,3,16,128], index: 6, kind: output, shape index: {}]
  %s7 = sld [smem:[#allocation0]]
  $region57: #{forward.1} parent=0
    _
  %s9 = ssub.s32 1, %s7
  %s10 = scalar_select 0, %s9, %s7
  loop: start=0, step=1, limit=4
  $region2: #{forward.1} parent=0 // loop_pre_header
    _
  $region3: #{forward.1} parent=0 // loop_header
    %s12 = sphi 0, %s16
    %p13 = scmp.ge.s32.totalorder %s12, 4
    %s22 = sphi 0, %s24
    %s25 = sphi 0, %s22
    %s26 = sphi 0, %s25
    %s42 = sphi 0, %s26
    %s48 = sphi 0, %s50
    %s51 = sphi 0, %s48
    %s52 = sphi 0, %s51
    %s68 = sphi 0, %s52
    %s74 = sphi 0, %s76
    %s77 = sphi 0, %s74
    %s78 = sphi 0, %s77
    %s94 = sphi 0, %s78
    %s100 = sphi 0, %s102
    %s103 = sphi 0, %s100
    %s104 = sphi 0, %s103
    %s120 = sphi 0, %s104
    %s124 = sphi 0, %s124
    %s126 = sphi 0, %s124
    %s127 = sphi 0, %s126
    %s141 = sphi 0, %s127
    %s145 = sphi 0, %s145
    %s147 = sphi 0, %s145
    %s148 = sphi 0, %s147
    %s162 = sphi 0, %s148
    %s168 = sphi 0, %s170
    %s171 = sphi 0, %s168
    %s172 = sphi 0, %s171
    %s188 = sphi 0, %s172
  $region4: #{forward.1} parent=0 // loop_header_branch
    %15 = sbr.rel (%p13) target = $region8
  $region5: #{forward.1} parent=0 // loop_body
    %s17 = ssub.s32 %s12, 1
    %s18 = ssub.s32 %s12, 2
    %s19 = sadd.s32 %s12, 1
    %s20 = ssub.s32 %s12, %s19
    %p21 = scmp.eq.s32.totalorder %s20, 0
    %s23 = sadd.s32 %s22, 1
    %s24 = scalar_select %p21, %s22, %s23
    %p27 = pneg %p21
    %p28 = scmp.eq.s32.totalorder %s12, 1
    %p29 = por %p27, %p28
    %p30 = scmp.ne.s32.totalorder %s22, %s25
    %p31 = scmp.eq.s32.totalorder %s12, 0
    %p32 = por %p30, %p31
    %p33 = scmp.ne.s32.totalorder %s22, %s25
    %p34 = scmp.eq.s32.totalorder %s17, 1
    %p35 = por %p33, %p34
    %p36 = scmp.ne.s32.totalorder %s25, %s26
    %p37 = scmp.eq.s32.totalorder %s17, 0
    %p38 = por %p36, %p37
    %p39 = scmp.ne.s32.totalorder %s25, %s26
    %p40 = scmp.eq.s32.totalorder %s18, 1
    %p41 = por %p39, %p40
    %p43 = scmp.ne.s32.totalorder %s26, %s42
    %p44 = scmp.eq.s32.totalorder %s18, 0
    %p45 = por %p43, %p44
    %s46 = ssub.s32 %s12, %s19
    %p47 = scmp.eq.s32.totalorder %s46, 0
    %s49 = sadd.s32 %s48, 1
    %s50 = scalar_select %p47, %s48, %s49
    %p53 = pneg %p47
    %p54 = scmp.eq.s32.totalorder %s12, 1
    %p55 = por %p53, %p54
    %p56 = scmp.ne.s32.totalorder %s48, %s51
    %p57 = scmp.eq.s32.totalorder %s12, 0
    %p58 = por %p56, %p57
    %p59 = scmp.ne.s32.totalorder %s48, %s51
    %p60 = scmp.eq.s32.totalorder %s17, 1
    %p61 = por %p59, %p60
    %p62 = scmp.ne.s32.totalorder %s51, %s52
    %p63 = scmp.eq.s32.totalorder %s17, 0
    %p64 = por %p62, %p63
    %p65 = scmp.ne.s32.totalorder %s51, %s52
    %p66 = scmp.eq.s32.totalorder %s18, 1
    %p67 = por %p65, %p66
    %p69 = scmp.ne.s32.totalorder %s52, %s68
    %p70 = scmp.eq.s32.totalorder %s18, 0
    %p71 = por %p69, %p70
    %s72 = ssub.s32 %s12, %s19
    %p73 = scmp.eq.s32.totalorder %s72, 0
    %s75 = sadd.s32 %s74, 1
    %s76 = scalar_select %p73, %s74, %s75
    %p79 = pneg %p73
    %p80 = scmp.eq.s32.totalorder %s12, 1
    %p81 = por %p79, %p80
    %p82 = scmp.ne.s32.totalorder %s74, %s77
    %p83 = scmp.eq.s32.totalorder %s12, 0
    %p84 = por %p82, %p83
    %p85 = scmp.ne.s32.totalorder %s74, %s77
    %p86 = scmp.eq.s32.totalorder %s17, 1
    %p87 = por %p85, %p86
    %p88 = scmp.ne.s32.totalorder %s77, %s78
    %p89 = scmp.eq.s32.totalorder %s17, 0
    %p90 = por %p88, %p89
    %p91 = scmp.ne.s32.totalorder %s77, %s78
    %p92 = scmp.eq.s32.totalorder %s18, 1
    %p93 = por %p91, %p92
    %p95 = scmp.ne.s32.totalorder %s78, %s94
    %p96 = scmp.eq.s32.totalorder %s18, 0
    %p97 = por %p95, %p96
    %s98 = ssub.s32 %s12, %s19
    %p99 = scmp.eq.s32.totalorder %s98, 0
    %s101 = sadd.s32 %s100, 1
    %s102 = scalar_select %p99, %s100, %s101
    %p105 = pneg %p99
    %p106 = scmp.eq.s32.totalorder %s12, 1
    %p107 = por %p105, %p106
    %p108 = scmp.ne.s32.totalorder %s100, %s103
    %p109 = scmp.eq.s32.totalorder %s12, 0
    %p110 = por %p108, %p109
    %p111 = scmp.ne.s32.totalorder %s100, %s103
    %p112 = scmp.eq.s32.totalorder %s17, 1
    %p113 = por %p111, %p112
    %p114 = scmp.ne.s32.totalorder %s103, %s104
    %p115 = scmp.eq.s32.totalorder %s17, 0
    %p116 = por %p114, %p115
    %p117 = scmp.ne.s32.totalorder %s103, %s104
    %p118 = scmp.eq.s32.totalorder %s18, 1
    %p119 = por %p117, %p118
    %p121 = scmp.ne.s32.totalorder %s104, %s120
    %p122 = scmp.eq.s32.totalorder %s18, 0
    %p123 = por %p121, %p122
    %s125 = sadd.s32 %s124, 1
    %p128 = scmp.eq.s32.totalorder %s12, 1
    %p129 = scmp.ne.s32.totalorder %s124, %s126
    %p130 = scmp.eq.s32.totalorder %s12, 0
    %p131 = por %p129, %p130
    %p132 = scmp.ne.s32.totalorder %s124, %s126
    %p133 = scmp.eq.s32.totalorder %s17, 1
    %p134 = por %p132, %p133
    %p135 = scmp.ne.s32.totalorder %s126, %s127
    %p136 = scmp.eq.s32.totalorder %s17, 0
    %p137 = por %p135, %p136
    %p138 = scmp.ne.s32.totalorder %s126, %s127
    %p139 = scmp.eq.s32.totalorder %s18, 1
    %p140 = por %p138, %p139
    %p142 = scmp.ne.s32.totalorder %s127, %s141
    %p143 = scmp.eq.s32.totalorder %s18, 0
    %p144 = por %p142, %p143
    %s146 = sadd.s32 %s145, 1
    %p149 = scmp.eq.s32.totalorder %s12, 1
    %p150 = scmp.ne.s32.totalorder %s145, %s147
    %p151 = scmp.eq.s32.totalorder %s12, 0
    %p152 = por %p150, %p151
    %p153 = scmp.ne.s32.totalorder %s145, %s147
    %p154 = scmp.eq.s32.totalorder %s17, 1
    %p155 = por %p153, %p154
    %p156 = scmp.ne.s32.totalorder %s147, %s148
    %p157 = scmp.eq.s32.totalorder %s17, 0
    %p158 = por %p156, %p157
    %p159 = scmp.ne.s32.totalorder %s147, %s148
    %p160 = scmp.eq.s32.totalorder %s18, 1
    %p161 = por %p159, %p160
    %p163 = scmp.ne.s32.totalorder %s148, %s162
    %p164 = scmp.eq.s32.totalorder %s18, 0
    %p165 = por %p163, %p164
    %s166 = ssub.s32 %s12, %s19
    %p167 = scmp.eq.s32.totalorder %s166, 0
    %s169 = sadd.s32 %s168, 1
    %s170 = scalar_select %p167, %s168, %s169
    %p173 = pneg %p167
    %p174 = scmp.eq.s32.totalorder %s12, 1
    %p175 = por %p173, %p174
    %p176 = scmp.ne.s32.totalorder %s168, %s171
    %p177 = scmp.eq.s32.totalorder %s12, 0
    %p178 = por %p176, %p177
    %p179 = scmp.ne.s32.totalorder %s168, %s171
    %p180 = scmp.eq.s32.totalorder %s17, 1
    %p181 = por %p179, %p180
    %p182 = scmp.ne.s32.totalorder %s171, %s172
    %p183 = scmp.eq.s32.totalorder %s17, 0
    %p184 = por %p182, %p183
    %p185 = scmp.ne.s32.totalorder %s171, %s172
    %p186 = scmp.eq.s32.totalorder %s18, 1
    %p187 = por %p185, %p186
    %p189 = scmp.ne.s32.totalorder %s172, %s188
    %p190 = scmp.eq.s32.totalorder %s18, 0
    %p191 = por %p189, %p190
    %p192 = scmp.le.s32.totalorder 1, %s12
    %p193 = scmp.lt.s32.totalorder %s12, 3
    %p194 = pnand %p192, %p193
    %p195 = pneg %p194
    // Predicated region
    $region9: #{forward.1} parent=5 // pred_check
      _
    $region10: #{forward.1} parent=5 // pred_check_branch
      %197 = sbr.rel (%p194) target = $region12
    $region11: #{forward.1} parent=5 // pred_region
      %s198 = ssub.s32 %s12, 1
      // Predicated region
      $region13: #{forward.1} parent=11 // pred_check
        %p199 = pneg %p137
      $region14: #{forward.1} parent=11 // pred_check_branch
        %201 = sbr.rel (%p199) target = $region16
      $region15: #{forward.1} parent=11 // pred_region
        _
      $region16: #{forward.1} parent=11 // pred_fallthru
        _
      // Predicated region
      $region17: #{forward.1} parent=11 // pred_check
        %p202 = pneg %p158
      $region18: #{forward.1} parent=11 // pred_check_branch
        %204 = sbr.rel (%p202) target = $region20
      $region19: #{forward.1} parent=11 // pred_region
        _
      $region20: #{forward.1} parent=11 // pred_fallthru
        _
    $region12: #{forward.1} parent=5 // pred_fallthru
      _
    %p205 = scmp.lt.s32.totalorder %s12, 2
    // Predicated region
    $region21: #{forward.1} parent=5 // pred_check
      %p206 = pneg %p205
    $region22: #{forward.1} parent=5 // pred_check_branch
      %208 = sbr.rel (%p206) target = $region24
    $region23: #{forward.1} parent=5 // pred_region
      // Predicated region
      $region25: #{forward.1} parent=23 // pred_check
        %p209 = pneg %p32
      $region26: #{forward.1} parent=23 // pred_check_branch
        %211 = sbr.rel (%p209) target = $region28
      $region27: #{forward.1} parent=23 // pred_region
        %s212 = smul.u32 4, %s12
        %p213 = scmp.lt.s32.totalorder %s212, 7
        %s214 = scalar_select %p213, %s212, 7
        %s215 = smul.addr %s214, 2
        %s216 = smul.addr %s215, 4
        %s217 = scalar_lea.vmem %s0, %s216
        %s218 = smul.u32 4, %s12
      $region28: #{forward.1} parent=23 // pred_fallthru
        _
      // Predicated region
      $region29: #{forward.1} parent=23 // pred_check
        %p219 = pneg %p58
      $region30: #{forward.1} parent=23 // pred_check_branch
        %221 = sbr.rel (%p219) target = $region32
      $region31: #{forward.1} parent=23 // pred_region
        %s222 = smul.u32 4, %s12
        %p223 = scmp.lt.s32.totalorder %s222, 7
        %s224 = scalar_select %p223, %s222, 7
        %s225 = smul.addr %s224, 2
        %s226 = smul.addr %s225, 4
        %s227 = scalar_lea.vmem %s1, %s226
        %s228 = smul.u32 4, %s12
      $region32: #{forward.1} parent=23 // pred_fallthru
        _
      // Predicated region
      $region33: #{forward.1} parent=23 // pred_check
        %p229 = pneg %p84
      $region34: #{forward.1} parent=23 // pred_check_branch
        %231 = sbr.rel (%p229) target = $region36
      $region35: #{forward.1} parent=23 // pred_region
        %s232 = smul.u32 4, %s12
        %p233 = scmp.lt.s32.totalorder %s232, 7
        %s234 = scalar_select %p233, %s232, 7
        %s235 = smul.addr %s234, 2
        %s236 = smul.addr %s235, 8
        %s237 = scalar_lea.vmem %s2, %s236
        %s238 = smul.u32 4, %s12
      $region36: #{forward.1} parent=23 // pred_fallthru
        _
      // Predicated region
      $region37: #{forward.1} parent=23 // pred_check
        %p239 = pneg %p110
      $region38: #{forward.1} parent=23 // pred_check_branch
        %241 = sbr.rel (%p239) target = $region40
      $region39: #{forward.1} parent=23 // pred_region
        %s242 = smul.u32 4, %s12
        %p243 = scmp.lt.s32.totalorder %s242, 7
        %s244 = scalar_select %p243, %s242, 7
        %s245 = scalar_lea.vmem %s3, %s244
        %s246 = smul.u32 4, %s12
      $region40: #{forward.1} parent=23 // pred_fallthru
        _
    $region24: #{forward.1} parent=5 // pred_fallthru
      _
    %p247 = scmp.le.s32.totalorder 1, %s12
    %p248 = scmp.lt.s32.totalorder %s12, 3
    %p249 = pnand %p247, %p248
    %p250 = pneg %p249
    // Predicated region
    $region41: #{forward.1} parent=5 // pred_check
      _
    $region42: #{forward.1} parent=5 // pred_check_branch
      %252 = sbr.rel (%p249) target = $region44
    $region43: #{forward.1} parent=5 // pred_region
      %s253 = ssub.s32 %s12, 1
      %s254 = smul.u32 4, %s17
      %p255 = scmp.lt.s32.totalorder %s254, 7
      %s256 = scalar_select %p255, %s254, 7
      %s257 = smul.addr %s256, 2
      %s258 = smul.addr %s257, 4
      %s259 = scalar_lea.vmem %s0, %s258
      %p260 = pneg %p38
      %p261 = pneg %p35
      %s262 = smul.u32 4, %s17
      %p263 = scmp.lt.s32.totalorder %s262, 7
      %s264 = scalar_select %p263, %s262, 7
      %s265 = smul.addr %s264, 2
      %s266 = smul.addr %s265, 4
      %s267 = scalar_lea.vmem %s1, %s266
      %p268 = pneg %p64
      %p269 = pneg %p61
      %s270 = smul.u32 4, %s17
      %p271 = scmp.lt.s32.totalorder %s270, 7
      %s272 = scalar_select %p271, %s270, 7
      %s273 = smul.addr %s272, 2
      %s274 = smul.addr %s273, 8
      %s275 = scalar_lea.vmem %s2, %s274
      %p276 = pneg %p90
      %p277 = pneg %p87
      %s278 = smul.u32 4, %s17
      %p279 = scmp.lt.s32.totalorder %s278, 7
      %s280 = scalar_select %p279, %s278, 7
      %s281 = scalar_lea.vmem %s3, %s280
      %p282 = pneg %p116
      %p283 = pneg %p113
      %p284 = pneg %p137
      %p285 = pneg %p134
      %p286 = pneg %p158
      %p287 = pneg %p155
      %p288 = pneg %p184
      %p289 = pneg %p181
      %s290 = smul.u32 4, %s17
      %p291 = scmp.lt.s32.totalorder %s290, 7
      %s292 = scalar_select %p291, %s290, 7
      %s293 = smul.addr %s292, 6
      %s294 = smul.addr %s293, 8
      %s295 = scalar_lea.vmem %s6, %s294
      %s296 = smul.u32 4, %s17
      %p297 = scmp.lt.s32.totalorder %s296, 7
      %s298 = scalar_select %p297, %s296, 7
      %s299 = smul.addr %s298, 2
      %s300 = smul.addr %s299, 4
      %s301 = scalar_lea.vmem %s0, %s300
      %s302 = smul.u32 4, %s17
      %s303 = smul.u32 4, %s17
      %p304 = scmp.lt.s32.totalorder %s303, 7
      %s305 = scalar_select %p304, %s303, 7
      %s306 = smul.addr %s305, 2
      %s307 = smul.addr %s306, 4
      %s308 = scalar_lea.vmem %s1, %s307
      %s309 = smul.u32 4, %s17
      %s310 = smul.u32 4, %s17
      %p311 = scmp.lt.s32.totalorder %s310, 7
      %s312 = scalar_select %p311, %s310, 7
      %s313 = smul.addr %s312, 2
      %s314 = smul.addr %s313, 8
      %s315 = scalar_lea.vmem %s2, %s314
      %s316 = smul.u32 4, %s17
      %s317 = smul.u32 4, %s17
      %p318 = scmp.lt.s32.totalorder %s317, 7
      %s319 = scalar_select %p318, %s317, 7
      %s320 = scalar_lea.vmem %s3, %s319
      %s321 = smul.u32 4, %s17
      %s322 = smul.u32 4, %s17
      %p323 = scmp.lt.s32.totalorder %s322, 7
      %s324 = scalar_select %p323, %s322, 7
      %s325 = smul.addr %s324, 6
      %s326 = smul.addr %s325, 8
      %s327 = scalar_lea.vmem %s6, %s326
      %s328 = smul.u32 4, %s17
      %v330 = vld [vmem:[%s301] sm:$0xf]
      %v331 = vld [vmem:[%s301 + $0x4] sm:$0xf]
      %v332 = vld [vmem:[%s301 + $0x8] sm:$0xf]
      %v333 = vld [vmem:[%s301 + $0xc] sm:$0xf]
      %v334 = vld [vmem:[%s301 + $0x10] sm:$0xf]
      %v335 = vld [vmem:[%s301 + $0x14] sm:$0xf]
      %v336 = vld [vmem:[%s301 + $0x18] sm:$0xf]
      %v337 = vld [vmem:[%s301 + $0x1c] sm:$0xf]
      %v338 = vld [vmem:[%s315] sm:$0xff]
      %v339 = vld [vmem:[%s315 + $0x8] sm:$0xff]
      %v340 = vld [vmem:[%s315 + $0x10] sm:$0xff]
      %v341 = vld [vmem:[%s315 + $0x18] sm:$0xff]
      %v342 = vld [vmem:[%s315 + $0x20] sm:$0xff]
      %v343 = vld [vmem:[%s315 + $0x28] sm:$0xff]
      %v344 = vld [vmem:[%s315 + $0x30] sm:$0xff]
      %v345 = vld [vmem:[%s315 + $0x38] sm:$0xff]
      %v346 = vld [vmem:[%s320] sm:$0x1]
      %v347 = vld [vmem:[%s320 + $0x1] sm:$0x1]
      %v348 = vld [vmem:[%s320 + $0x2] sm:$0x1]
      %v349 = vld [vmem:[%s320 + $0x3] sm:$0x1]
      %v350 = vld [vmem:[%s4] sm:$0xf]
      %v351 = vld [vmem:[%s4 + $0x4] sm:$0xf]
      %v352 = vld [vmem:[%s4 + $0x8] sm:$0xf]
      %v353 = vld [vmem:[%s4 + $0xc] sm:$0xf]
      %v354 = vld [vmem:[%s5] sm:$0x1]
      %vm355 = vcmask 261120
      %356 = vst.msk [vmem:[#allocation2] sm:$0xff] %vm355, 0
      %357 = vst.msk [vmem:[#allocation2 + $0x8] sm:$0xff] %vm355, 0
      %358 = vst.msk [vmem:[#allocation2 + $0x10] sm:$0xff] %vm355, 0
      %359 = vst.msk [vmem:[#allocation2 + $0x18] sm:$0xff] %vm355, 0
      %360 = vst.msk [vmem:[#allocation2 + $0x20] sm:$0xff] %vm355, 0
      %361 = vst.msk [vmem:[#allocation2 + $0x28] sm:$0xff] %vm355, 0
      %362 = vst.msk [vmem:[#allocation2 + $0x30] sm:$0xff] %vm355, 0
      %363 = vst.msk [vmem:[#allocation2 + $0x38] sm:$0xff] %vm355, 0
      %364 = vst.msk [vmem:[#allocation2 + $0x40] sm:$0xff] %vm355, 0
      %365 = vst.msk [vmem:[#allocation2 + $0x48] sm:$0xff] %vm355, 0
      %366 = vst.msk [vmem:[#allocation2 + $0x50] sm:$0xff] %vm355, 0
      %367 = vst.msk [vmem:[#allocation2 + $0x58] sm:$0xff] %vm355, 0
      %368 = vst.msk [vmem:[#allocation2 + $0x60] sm:$0xff] %vm355, 0
      %369 = vst.msk [vmem:[#allocation2 + $0x68] sm:$0xff] %vm355, 0
      %370 = vst.msk [vmem:[#allocation2 + $0x70] sm:$0xff] %vm355, 0
      %371 = vst.msk [vmem:[#allocation2 + $0x78] sm:$0xff] %vm355, 0
      %372 = vst.msk [vmem:[#allocation2 + $0x80] sm:$0xff] %vm355, 0
      %373 = vst.msk [vmem:[#allocation2 + $0x88] sm:$0xff] %vm355, 0
      %374 = vst.msk [vmem:[#allocation2 + $0x90] sm:$0xff] %vm355, 0
      %375 = vst.msk [vmem:[#allocation2 + $0x98] sm:$0xff] %vm355, 0
      %376 = vst.msk [vmem:[#allocation2 + $0xa0] sm:$0xff] %vm355, 0
      %377 = vst.msk [vmem:[#allocation2 + $0xa8] sm:$0xff] %vm355, 0
      %378 = vst.msk [vmem:[#allocation2 + $0xb0] sm:$0xff] %vm355, 0
      %379 = vst.msk [vmem:[#allocation2 + $0xb8] sm:$0xff] %vm355, 0
      %380 = vst.msk [vmem:[#allocation2 + $0xc0] sm:$0xff] %vm355, 0
      %381 = vst.msk [vmem:[#allocation2 + $0xc8] sm:$0xff] %vm355, 0
      %382 = vst.msk [vmem:[#allocation2 + $0xd0] sm:$0xff] %vm355, 0
      %383 = vst.msk [vmem:[#allocation2 + $0xd8] sm:$0xff] %vm355, 0
      %384 = vst.msk [vmem:[#allocation2 + $0xe0] sm:$0xff] %vm355, 0
      %385 = vst.msk [vmem:[#allocation2 + $0xe8] sm:$0xff] %vm355, 0
      %386 = vst.msk [vmem:[#allocation2 + $0xf0] sm:$0xff] %vm355, 0
      %387 = vst.msk [vmem:[#allocation2 + $0xf8] sm:$0xff] %vm355, 0
      %v388 = vld [vmem:[%s308] sm:$0xf]
      %v389 = vld [vmem:[%s308 + $0x4] sm:$0xf]
      %v390 = vld [vmem:[%s308 + $0x8] sm:$0xf]
      %v391 = vld [vmem:[%s308 + $0xc] sm:$0xf]
      %v392 = vld [vmem:[%s308 + $0x10] sm:$0xf]
      %v393 = vld [vmem:[%s308 + $0x14] sm:$0xf]
      %v394 = vld [vmem:[%s308 + $0x18] sm:$0xf]
      %v395 = vld [vmem:[%s308 + $0x1c] sm:$0xf]
      %v404 = vunpack.c.l.b16 %v388
      %v405 = vunpack.c.l.b16 %v389
      %v406 = vunpack.c.l.b16 %v390
      %v407 = vunpack.c.l.b16 %v391
      %v408 = vunpack.c.l.b16 %v392
      %v409 = vunpack.c.l.b16 %v393
      %v410 = vunpack.c.l.b16 %v394
      %v411 = vunpack.c.l.b16 %v395
      %v412 = vpack.c.b16 %v405, %v404
      %v413 = vpack.c.b16 %v407, %v406
      %v414 = vpack.c.b16 %v409, %v408
      %v415 = vpack.c.b16 %v411, %v410
      %420 = vst.msk [vmem:[#allocation2] sm:$0xff] %vm355, %v412
      %421 = vst.msk [vmem:[#allocation2 + $0x40] sm:$0xff] %vm355, %v413
      %422 = vst.msk [vmem:[#allocation2 + $0x80] sm:$0xff] %vm355, %v414
      %423 = vst.msk [vmem:[#allocation2 + $0xc0] sm:$0xff] %vm355, %v415
      %v424 = vld [vmem:[#allocation2] sm:$0xff]
      %v425 = vld [vmem:[#allocation2 + $0x8] sm:$0xff]
      %v426 = vld [vmem:[#allocation2 + $0x10] sm:$0xff]
      %v427 = vld [vmem:[#allocation2 + $0x18] sm:$0xff]
      %v428 = vld [vmem:[#allocation2 + $0x20] sm:$0xff]
      %v429 = vld [vmem:[#allocation2 + $0x28] sm:$0xff]
      %v430 = vld [vmem:[#allocation2 + $0x30] sm:$0xff]
      %v431 = vld [vmem:[#allocation2 + $0x38] sm:$0xff]
      %v432 = vld [vmem:[#allocation2 + $0x40] sm:$0xff]
      %v433 = vld [vmem:[#allocation2 + $0x48] sm:$0xff]
      %v434 = vld [vmem:[#allocation2 + $0x50] sm:$0xff]
      %v435 = vld [vmem:[#allocation2 + $0x58] sm:$0xff]
      %v436 = vld [vmem:[#allocation2 + $0x60] sm:$0xff]
      %v437 = vld [vmem:[#allocation2 + $0x68] sm:$0xff]
      %v438 = vld [vmem:[#allocation2 + $0x70] sm:$0xff]
      %v439 = vld [vmem:[#allocation2 + $0x78] sm:$0xff]
      %v440 = vld [vmem:[#allocation2 + $0x80] sm:$0xff]
      %v441 = vld [vmem:[#allocation2 + $0x88] sm:$0xff]
      %v442 = vld [vmem:[#allocation2 + $0x90] sm:$0xff]
      %v443 = vld [vmem:[#allocation2 + $0x98] sm:$0xff]
      %v444 = vld [vmem:[#allocation2 + $0xa0] sm:$0xff]
      %v445 = vld [vmem:[#allocation2 + $0xa8] sm:$0xff]
      %v446 = vld [vmem:[#allocation2 + $0xb0] sm:$0xff]
      %v447 = vld [vmem:[#allocation2 + $0xb8] sm:$0xff]
      %v448 = vld [vmem:[#allocation2 + $0xc0] sm:$0xff]
      %v449 = vld [vmem:[#allocation2 + $0xc8] sm:$0xff]
      %v450 = vld [vmem:[#allocation2 + $0xd0] sm:$0xff]
      %v451 = vld [vmem:[#allocation2 + $0xd8] sm:$0xff]
      %v452 = vld [vmem:[#allocation2 + $0xe0] sm:$0xff]
      %v453 = vld [vmem:[#allocation2 + $0xe8] sm:$0xff]
      %v454 = vld [vmem:[#allocation2 + $0xf0] sm:$0xff]
      %v455 = vld [vmem:[#allocation2 + $0xf8] sm:$0xff]
      %vm456 = vcmp.gt.f32.partialorder %v346, 0.0
      %vm457 = vcmp.gt.f32.partialorder %v347, 0.0
      %vm458 = vcmp.gt.f32.partialorder %v348, 0.0
      %vm459 = vcmp.gt.f32.partialorder %v349, 0.0
      %vm460 = vcmask 1040384
      %v461 = vsel %vm460, %v346, -inf
      %462 = vmax.xlane.f32.xlu0 %v461
      %v463 = vpop.xlane.xlu0 %462
      %v464 = vsel %vm460, %v347, -inf
      %465 = vmax.xlane.f32.xlu0 %v464
      %v466 = vpop.xlane.xlu0 %465
      %v467 = vsel %vm460, %v348, -inf
      %468 = vmax.xlane.f32.xlu0 %v467
      %v469 = vpop.xlane.xlu0 %468
      %v470 = vsel %vm460, %v349, -inf
      %471 = vmax.xlane.f32.xlu0 %v470
      %v472 = vpop.xlane.xlu0 %471
      %vm473 = vcmp.gt.f32.partialorder %v463, 0.0
      %vm474 = vcmp.gt.f32.partialorder %v466, 0.0
      %vm475 = vcmp.gt.f32.partialorder %v469, 0.0
      %vm476 = vcmp.gt.f32.partialorder %v472, 0.0
      %v477 = vsel %vm473, 1.0, 0.0
      %v478 = vsel %vm474, 1.0, 0.0
      %v479 = vsel %vm475, 1.0, 0.0
      %v480 = vsel %vm476, 1.0, 0.0
      %v481 = vlaneseq
      %v482 = vshrl.u32 %v481, 7
      %v483 = vsub.s32 0, %v482
      %v484 = vrot.slane %v477, %v483
      %v485 = vlaneseq
      %v486 = vshrl.u32 %v485, 7
      %v487 = vsub.s32 0, %v486
      %v488 = vrot.slane %v478, %v487
      %v489 = vlaneseq
      %v490 = vshrl.u32 %v489, 7
      %v491 = vsub.s32 0, %v490
      %v492 = vrot.slane %v479, %v491
      %v493 = vlaneseq
      %v494 = vshrl.u32 %v493, 7
      %v495 = vsub.s32 0, %v494
      %v496 = vrot.slane %v480, %v495
      %v497 = vmul.f32 %v338, %v484
      %v498 = vmul.f32 %v339, %v484
      %v499 = vmul.f32 %v340, %v488
      %v500 = vmul.f32 %v341, %v488
      %v501 = vmul.f32 %v342, %v492
      %v502 = vmul.f32 %v343, %v492
      %v503 = vmul.f32 %v344, %v496
      %v504 = vmul.f32 %v345, %v496
      %v505 = vlaneseq
      %v506 = vand.u32 %v505, 127
      %v508 = vlaneseq
      %v509 = vshrl.u32 %v508, 7
      %v510 = vsub.s32 0, %v509
      %v511 = vrot.slane %v354, %v510
      %v521 = vunpack.c.l.b16 %v330
      %v522 = vunpack.c.l.b16 %v331
      %v523 = vunpack.c.l.b16 %v332
      %v524 = vunpack.c.l.b16 %v333
      %v525 = vunpack.c.l.b16 %v334
      %v526 = vunpack.c.l.b16 %v335
      %v527 = vunpack.c.l.b16 %v336
      %v528 = vunpack.c.l.b16 %v337
      %v529 = vpack.c.b16 %v522, %v521
      %v530 = vpack.c.b16 %v524, %v523
      %v531 = vpack.c.b16 %v526, %v525
      %v532 = vpack.c.b16 %v528, %v527
      %v537 = vunpack.c.l.b16 %v350
      %v538 = vunpack.c.l.b16 %v351
      %v539 = vunpack.c.l.b16 %v352
      %v540 = vunpack.c.l.b16 %v353
      %v541 = vpack.c.b16 %v538, %v537
      %v542 = vpack.c.b16 %v540, %v539
      %v546 = vsel %vm355, %v529, 0
      %v549 = vsel %vm355, %v530, 0
      %v552 = vsel %vm355, %v531, 0
      %v555 = vsel %vm355, %v532, 0
      %557 = vmatprep.subr.bf16.mxu0 0
      %558 = vmatpush1.bf16.msra.mxu0 %v541
      %559 = vmatprep.subr.bf16.mxu0 0
      %560 = vmatpush1.bf16.msra.mxu0 %v542
      %561 = vmatprep.subr.bf16.mxu0 0
      %562 = vmatpush1.bf16.msra.mxu0 0
      %563 = vmatprep.subr.bf16.mxu0 0
      %564 = vmatpush1.bf16.msra.mxu0 0
      %565 = vmatprep.subr.bf16.mxu0 0
      %566 = vmatpush1.bf16.msra.mxu0 0
      %567 = vmatprep.subr.bf16.mxu0 0
      %568 = vmatpush1.bf16.msra.mxu0 0
      %569 = vmatprep.subr.bf16.mxu0 0
      %570 = vmatpush1.bf16.msra.mxu0 0
      %571 = vmatprep.subr.bf16.mxu0 0
      %572 = vmatpush1.bf16.msra.mxu0 0
      %573 = vmatprep.subr.bf16.mxu0 0
      %574 = vmatpush1.bf16.msra.mxu0 0
      %575 = vmatprep.subr.bf16.mxu0 0
      %576 = vmatpush1.bf16.msra.mxu0 0
      %577 = vmatprep.subr.bf16.mxu0 0
      %578 = vmatpush1.bf16.msra.mxu0 0
      %579 = vmatprep.subr.bf16.mxu0 0
      %580 = vmatpush1.bf16.msra.mxu0 0
      %581 = vmatprep.subr.bf16.mxu0 0
      %582 = vmatpush1.bf16.msra.mxu0 0
      %583 = vmatprep.subr.bf16.mxu0 0
      %584 = vmatpush1.bf16.msra.mxu0 0
      %585 = vmatprep.subr.bf16.mxu0 0
      %586 = vmatpush1.bf16.msra.mxu0 0
      %587 = vmatprep.subr.bf16.mxu0 0
      %588 = vmatpush1.bf16.msra.mxu0 0
      %589 = vmatprep.mubr.bf16.mxu0 0
      %590 = vmatmul.mubr.bf16.gmra.mrb[0].mxu0 %v546
      %v591 = vpop.f32.mrb[0].mxu0
      %v592 = vadd.f32 %v511, %v591
      %v593 = vpop.f32.mrb[0].mxu0
      %v594 = vpop.f32.mrb[0].mxu0
      %v595 = vadd.f32 %v511, %v594
      %v596 = vpop.f32.mrb[0].mxu0
      %597 = vmatprep.mubr.bf16.mxu0 0
      %598 = vmatmul.mubr.bf16.gmra.mrb[0].mxu0 %v549
      %v599 = vpop.f32.mrb[0].mxu0
      %v600 = vadd.f32 %v511, %v599
      %v601 = vpop.f32.mrb[0].mxu0
      %v602 = vpop.f32.mrb[0].mxu0
      %v603 = vadd.f32 %v511, %v602
      %v604 = vpop.f32.mrb[0].mxu0
      %605 = vmatprep.mubr.bf16.mxu0 0
      %606 = vmatmul.mubr.bf16.gmra.mrb[0].mxu0 %v552
      %v607 = vpop.f32.mrb[0].mxu0
      %v608 = vadd.f32 %v511, %v607
      %v609 = vpop.f32.mrb[0].mxu0
      %v610 = vpop.f32.mrb[0].mxu0
      %v611 = vadd.f32 %v511, %v610
      %v612 = vpop.f32.mrb[0].mxu0
      %613 = vmatprep.mubr.bf16.mxu0 0
      %614 = vmatmul.mubr.bf16.gmra.mrb[0].mxu0 %v555
      %v615 = vpop.f32.mrb[0].mxu0
      %v616 = vadd.f32 %v511, %v615
      %v617 = vpop.f32.mrb[0].mxu0
      %v618 = vpop.f32.mrb[0].mxu0
      %v619 = vadd.f32 %v511, %v618
      %v620 = vpop.f32.mrb[0].mxu0
      %621 = vdwg.mxu0
      %v622 = vtanh.pop %v592
      %v623 = vtanh.pop %v595
      %v624 = vtanh.pop %v600
      %v625 = vtanh.pop %v603
      %v626 = vtanh.pop %v608
      %v627 = vtanh.pop %v611
      %v628 = vtanh.pop %v616
      %v629 = vtanh.pop %v619
      %v631 = vsel %vm355, %v424, 0
      %v634 = vsel %vm355, %v425, 0
      %v637 = vsel %vm355, %v426, 0
      %v640 = vsel %vm355, %v427, 0
      %v643 = vsel %vm355, %v428, 0
      %v646 = vsel %vm355, %v429, 0
      %v649 = vsel %vm355, %v430, 0
      %v652 = vsel %vm355, %v431, 0
      %v655 = vsel %vm355, %v432, 0
      %v658 = vsel %vm355, %v433, 0
      %v661 = vsel %vm355, %v434, 0
      %v664 = vsel %vm355, %v435, 0
      %v667 = vsel %vm355, %v436, 0
      %v670 = vsel %vm355, %v437, 0
      %v673 = vsel %vm355, %v438, 0
      %v676 = vsel %vm355, %v439, 0
      %v679 = vsel %vm355, %v440, 0
      %v682 = vsel %vm355, %v441, 0
      %v685 = vsel %vm355, %v442, 0
      %v688 = vsel %vm355, %v443, 0
      %v691 = vsel %vm355, %v444, 0
      %v694 = vsel %vm355, %v445, 0
      %v697 = vsel %vm355, %v446, 0
      %v700 = vsel %vm355, %v447, 0
      %v703 = vsel %vm355, %v448, 0
      %v706 = vsel %vm355, %v449, 0
      %v709 = vsel %vm355, %v450, 0
      %v712 = vsel %vm355, %v451, 0
      %v715 = vsel %vm355, %v452, 0
      %v718 = vsel %vm355, %v453, 0
      %v721 = vsel %vm355, %v454, 0
      %v724 = vsel %vm355, %v455, 0
      %726 = vmatprep.subr.bf16.mxu0 0
      %727 = vmatpush1.bf16.msra.mxu0 %v541
      %728 = vmatprep.subr.bf16.mxu0 0
      %729 = vmatpush1.bf16.msra.mxu0 %v542
      %730 = vmatprep.subr.bf16.mxu0 0
      %731 = vmatpush1.bf16.msra.mxu0 0
      %732 = vmatprep.subr.bf16.mxu0 0
      %733 = vmatpush1.bf16.msra.mxu0 0
      %734 = vmatprep.subr.bf16.mxu0 0
      %735 = vmatpush1.bf16.msra.mxu0 0
      %736 = vmatprep.subr.bf16.mxu0 0
      %737 = vmatpush1.bf16.msra.mxu0 0
      %738 = vmatprep.subr.bf16.mxu0 0
      %739 = vmatpush1.bf16.msra.mxu0 0
      %740 = vmatprep.subr.bf16.mxu0 0
      %741 = vmatpush1.bf16.msra.mxu0 0
      %742 = vmatprep.subr.bf16.mxu0 0
      %743 = vmatpush1.bf16.msra.mxu0 0
      %744 = vmatprep.subr.bf16.mxu0 0
      %745 = vmatpush1.bf16.msra.mxu0 0
      %746 = vmatprep.subr.bf16.mxu0 0
      %747 = vmatpush1.bf16.msra.mxu0 0
      %748 = vmatprep.subr.bf16.mxu0 0
      %749 = vmatpush1.bf16.msra.mxu0 0
      %750 = vmatprep.subr.bf16.mxu0 0
      %751 = vmatpush1.bf16.msra.mxu0 0
      %752 = vmatprep.subr.bf16.mxu0 0
      %753 = vmatpush1.bf16.msra.mxu0 0
      %754 = vmatprep.subr.bf16.mxu0 0
      %755 = vmatpush1.bf16.msra.mxu0 0
      %756 = vmatprep.subr.bf16.mxu0 0
      %757 = vmatpush1.bf16.msra.mxu0 0
      %758 = vmatprep.mubr.bf16.mxu0 0
      %759 = vmatmul.mubr.bf16.gmra.mrb[0].mxu0 %v631
      %v760 = vpop.f32.mrb[0].mxu0
      %v761 = vadd.f32 %v511, %v760
      %v762 = vpop.f32.mrb[0].mxu0
      %v763 = vpop.f32.mrb[0].mxu0
      %v764 = vadd.f32 %v511, %v763
      %v765 = vpop.f32.mrb[0].mxu0
      %766 = vmatprep.mubr.bf16.mxu0 0
      %767 = vmatmul.mubr.bf16.gmra.mrb[0].mxu0 %v634
      %v768 = vpop.f32.mrb[0].mxu0
      %v769 = vadd.f32 %v511, %v768
      %v770 = vpop.f32.mrb[0].mxu0
      %v771 = vpop.f32.mrb[0].mxu0
      %v772 = vadd.f32 %v511, %v771
      %v773 = vpop.f32.mrb[0].mxu0
      %774 = vmatprep.mubr.bf16.mxu0 0
      %775 = vmatmul.mubr.bf16.gmra.mrb[0].mxu0 %v637
      %v776 = vpop.f32.mrb[0].mxu0
      %v777 = vadd.f32 %v511, %v776
      %v778 = vpop.f32.mrb[0].mxu0
      %v779 = vpop.f32.mrb[0].mxu0
      %v780 = vadd.f32 %v511, %v779
      %v781 = vpop.f32.mrb[0].mxu0
      %782 = vmatprep.mubr.bf16.mxu0 0
      %783 = vmatmul.mubr.bf16.gmra.mrb[0].mxu0 %v640
      %v784 = vpop.f32.mrb[0].mxu0
      %v785 = vadd.f32 %v511, %v784
      %v786 = vpop.f32.mrb[0].mxu0
      %v787 = vpop.f32.mrb[0].mxu0
      %v788 = vadd.f32 %v511, %v787
      %v789 = vpop.f32.mrb[0].mxu0
      %790 = vmatprep.mubr.bf16.mxu0 0
      %791 = vmatmul.mubr.bf16.gmra.mrb[0].mxu0 %v643
      %v792 = vpop.f32.mrb[0].mxu0
      %v793 = vadd.f32 %v511, %v792
      %v794 = vpop.f32.mrb[0].mxu0
      %v795 = vpop.f32.mrb[0].mxu0
      %v796 = vadd.f32 %v511, %v795
      %v797 = vpop.f32.mrb[0].mxu0
      %798 = vmatprep.mubr.bf16.mxu0 0
      %799 = vmatmul.mubr.bf16.gmra.mrb[0].mxu0 %v646
      %v800 = vpop.f32.mrb[0].mxu0
      %v801 = vadd.f32 %v511, %v800
      %v802 = vpop.f32.mrb[0].mxu0
      %v803 = vpop.f32.mrb[0].mxu0
      %v804 = vadd.f32 %v511, %v803
      %v805 = vpop.f32.mrb[0].mxu0
      %806 = vmatprep.mubr.bf16.mxu0 0
      %807 = vmatmul.mubr.bf16.gmra.mrb[0].mxu0 %v649
      %v808 = vpop.f32.mrb[0].mxu0
      %v809 = vadd.f32 %v511, %v808
      %v810 = vpop.f32.mrb[0].mxu0
      %v811 = vpop.f32.mrb[0].mxu0
      %v812 = vadd.f32 %v511, %v811
      %v813 = vpop.f32.mrb[0].mxu0
      %814 = vmatprep.mubr.bf16.mxu0 0
      %815 = vmatmul.mubr.bf16.gmra.mrb[0].mxu0 %v652
      %v816 = vpop.f32.mrb[0].mxu0
      %v817 = vadd.f32 %v511, %v816
      %v818 = vpop.f32.mrb[0].mxu0
      %v819 = vpop.f32.mrb[0].mxu0
      %v820 = vadd.f32 %v511, %v819
      %v821 = vpop.f32.mrb[0].mxu0
      %822 = vmatprep.mubr.bf16.mxu0 0
      %823 = vmatmul.mubr.bf16.gmra.mrb[0].mxu0 %v655
      %v824 = vpop.f32.mrb[0].mxu0
      %v825 = vadd.f32 %v511, %v824
      %v826 = vpop.f32.mrb[0].mxu0
      %v827 = vpop.f32.mrb[0].mxu0
      %v828 = vadd.f32 %v511, %v827
      %v829 = vpop.f32.mrb[0].mxu0
      %830 = vmatprep.mubr.bf16.mxu0 0
      %831 = vmatmul.mubr.bf16.gmra.mrb[0].mxu0 %v658
      %v832 = vpop.f32.mrb[0].mxu0
      %v833 = vadd.f32 %v511, %v832
      %v834 = vpop.f32.mrb[0].mxu0
      %v835 = vpop.f32.mrb[0].mxu0
      %v836 = vadd.f32 %v511, %v835
      %v837 = vpop.f32.mrb[0].mxu0
      %838 = vmatprep.mubr.bf16.mxu0 0
      %839 = vmatmul.mubr.bf16.gmra.mrb[0].mxu0 %v661
      %v840 = vpop.f32.mrb[0].mxu0
      %v841 = vadd.f32 %v511, %v840
      %v842 = vpop.f32.mrb[0].mxu0
      %v843 = vpop.f32.mrb[0].mxu0
      %v844 = vadd.f32 %v511, %v843
      %v845 = vpop.f32.mrb[0].mxu0
      %846 = vmatprep.mubr.bf16.mxu0 0
      %847 = vmatmul.mubr.bf16.gmra.mrb[0].mxu0 %v664
      %v848 = vpop.f32.mrb[0].mxu0
      %v849 = vadd.f32 %v511, %v848
      %v850 = vpop.f32.mrb[0].mxu0
      %v851 = vpop.f32.mrb[0].mxu0
      %v852 = vadd.f32 %v511, %v851
      %v853 = vpop.f32.mrb[0].mxu0
      %854 = vmatprep.mubr.bf16.mxu0 0
      %855 = vmatmul.mubr.bf16.gmra.mrb[0].mxu0 %v667
      %v856 = vpop.f32.mrb[0].mxu0
      %v857 = vadd.f32 %v511, %v856
      %v858 = vpop.f32.mrb[0].mxu0
      %v859 = vpop.f32.mrb[0].mxu0
      %v860 = vadd.f32 %v511, %v859
      %v861 = vpop.f32.mrb[0].mxu0
      %862 = vmatprep.mubr.bf16.mxu0 0
      %863 = vmatmul.mubr.bf16.gmra.mrb[0].mxu0 %v670
      %v864 = vpop.f32.mrb[0].mxu0
      %v865 = vadd.f32 %v511, %v864
      %v866 = vpop.f32.mrb[0].mxu0
      %v867 = vpop.f32.mrb[0].mxu0
      %v868 = vadd.f32 %v511, %v867
      %v869 = vpop.f32.mrb[0].mxu0
      %870 = vmatprep.mubr.bf16.mxu0 0
      %871 = vmatmul.mubr.bf16.gmra.mrb[0].mxu0 %v673
      %v872 = vpop.f32.mrb[0].mxu0
      %v873 = vadd.f32 %v511, %v872
      %v874 = vpop.f32.mrb[0].mxu0
      %v875 = vpop.f32.mrb[0].mxu0
      %v876 = vadd.f32 %v511, %v875
      %v877 = vpop.f32.mrb[0].mxu0
      %878 = vmatprep.mubr.bf16.mxu0 0
      %879 = vmatmul.mubr.bf16.gmra.mrb[0].mxu0 %v676
      %v880 = vpop.f32.mrb[0].mxu0
      %v881 = vadd.f32 %v511, %v880
      %v882 = vpop.f32.mrb[0].mxu0
      %v883 = vpop.f32.mrb[0].mxu0
      %v884 = vadd.f32 %v511, %v883
      %v885 = vpop.f32.mrb[0].mxu0
      %886 = vmatprep.mubr.bf16.mxu0 0
      %887 = vmatmul.mubr.bf16.gmra.mrb[0].mxu0 %v679
      %v888 = vpop.f32.mrb[0].mxu0
      %v889 = vadd.f32 %v511, %v888
      %v890 = vpop.f32.mrb[0].mxu0
      %v891 = vpop.f32.mrb[0].mxu0
      %v892 = vadd.f32 %v511, %v891
      %v893 = vpop.f32.mrb[0].mxu0
      %894 = vmatprep.mubr.bf16.mxu0 0
      %895 = vmatmul.mubr.bf16.gmra.mrb[0].mxu0 %v682
      %v896 = vpop.f32.mrb[0].mxu0
      %v897 = vadd.f32 %v511, %v896
      %v898 = vpop.f32.mrb[0].mxu0
      %v899 = vpop.f32.mrb[0].mxu0
      %v900 = vadd.f32 %v511, %v899
      %v901 = vpop.f32.mrb[0].mxu0
      %902 = vmatprep.mubr.bf16.mxu0 0
      %903 = vmatmul.mubr.bf16.gmra.mrb[0].mxu0 %v685
      %v904 = vpop.f32.mrb[0].mxu0
      %v905 = vadd.f32 %v511, %v904
      %v906 = vpop.f32.mrb[0].mxu0
      %v907 = vpop.f32.mrb[0].mxu0
      %v908 = vadd.f32 %v511, %v907
      %v909 = vpop.f32.mrb[0].mxu0
      %910 = vmatprep.mubr.bf16.mxu0 0
      %911 = vmatmul.mubr.bf16.gmra.mrb[0].mxu0 %v688
      %v912 = vpop.f32.mrb[0].mxu0
      %v913 = vadd.f32 %v511, %v912
      %v914 = vpop.f32.mrb[0].mxu0
      %v915 = vpop.f32.mrb[0].mxu0
      %v916 = vadd.f32 %v511, %v915
      %v917 = vpop.f32.mrb[0].mxu0
      %918 = vmatprep.mubr.bf16.mxu0 0
      %919 = vmatmul.mubr.bf16.gmra.mrb[0].mxu0 %v691
      %v920 = vpop.f32.mrb[0].mxu0
      %v921 = vadd.f32 %v511, %v920
      %v922 = vpop.f32.mrb[0].mxu0
      %v923 = vpop.f32.mrb[0].mxu0
      %v924 = vadd.f32 %v511, %v923
      %v925 = vpop.f32.mrb[0].mxu0
      %926 = vmatprep.mubr.bf16.mxu0 0
      %927 = vmatmul.mubr.bf16.gmra.mrb[0].mxu0 %v694
      %v928 = vpop.f32.mrb[0].mxu0
      %v929 = vadd.f32 %v511, %v928
      %v930 = vpop.f32.mrb[0].mxu0
      %v931 = vpop.f32.mrb[0].mxu0
      %v932 = vadd.f32 %v511, %v931
      %v933 = vpop.f32.mrb[0].mxu0
      %934 = vmatprep.mubr.bf16.mxu0 0
      %935 = vmatmul.mubr.bf16.gmra.mrb[0].mxu0 %v697
      %v936 = vpop.f32.mrb[0].mxu0
      %v937 = vadd.f32 %v511, %v936
      %v938 = vpop.f32.mrb[0].mxu0
      %v939 = vpop.f32.mrb[0].mxu0
      %v940 = vadd.f32 %v511, %v939
      %v941 = vpop.f32.mrb[0].mxu0
      %942 = vmatprep.mubr.bf16.mxu0 0
      %943 = vmatmul.mubr.bf16.gmra.mrb[0].mxu0 %v700
      %v944 = vpop.f32.mrb[0].mxu0
      %v945 = vadd.f32 %v511, %v944
      %v946 = vpop.f32.mrb[0].mxu0
      %v947 = vpop.f32.mrb[0].mxu0
      %v948 = vadd.f32 %v511, %v947
      %v949 = vpop.f32.mrb[0].mxu0
      %950 = vmatprep.mubr.bf16.mxu0 0
      %951 = vmatmul.mubr.bf16.gmra.mrb[0].mxu0 %v703
      %v952 = vpop.f32.mrb[0].mxu0
      %v953 = vadd.f32 %v511, %v952
      %v954 = vpop.f32.mrb[0].mxu0
      %v955 = vpop.f32.mrb[0].mxu0
      %v956 = vadd.f32 %v511, %v955
      %v957 = vpop.f32.mrb[0].mxu0
      %958 = vmatprep.mubr.bf16.mxu0 0
      %959 = vmatmul.mubr.bf16.gmra.mrb[0].mxu0 %v706
      %v960 = vpop.f32.mrb[0].mxu0
      %v961 = vadd.f32 %v511, %v960
      %v962 = vpop.f32.mrb[0].mxu0
      %v963 = vpop.f32.mrb[0].mxu0
      %v964 = vadd.f32 %v511, %v963
      %v965 = vpop.f32.mrb[0].mxu0
      %966 = vmatprep.mubr.bf16.mxu0 0
      %967 = vmatmul.mubr.bf16.gmra.mrb[0].mxu0 %v709
      %v968 = vpop.f32.mrb[0].mxu0
      %v969 = vadd.f32 %v511, %v968
      %v970 = vpop.f32.mrb[0].mxu0
      %v971 = vpop.f32.mrb[0].mxu0
      %v972 = vadd.f32 %v511, %v971
      %v973 = vpop.f32.mrb[0].mxu0
      %974 = vmatprep.mubr.bf16.mxu0 0
      %975 = vmatmul.mubr.bf16.gmra.mrb[0].mxu0 %v712
      %v976 = vpop.f32.mrb[0].mxu0
      %v977 = vadd.f32 %v511, %v976
      %v978 = vpop.f32.mrb[0].mxu0
      %v979 = vpop.f32.mrb[0].mxu0
      %v980 = vadd.f32 %v511, %v979
      %v981 = vpop.f32.mrb[0].mxu0
      %982 = vmatprep.mubr.bf16.mxu0 0
      %983 = vmatmul.mubr.bf16.gmra.mrb[0].mxu0 %v715
      %v984 = vpop.f32.mrb[0].mxu0
      %v985 = vadd.f32 %v511, %v984
      %v986 = vpop.f32.mrb[0].mxu0
      %v987 = vpop.f32.mrb[0].mxu0
      %v988 = vadd.f32 %v511, %v987
      %v989 = vpop.f32.mrb[0].mxu0
      %990 = vmatprep.mubr.bf16.mxu0 0
      %991 = vmatmul.mubr.bf16.gmra.mrb[0].mxu0 %v718
      %v992 = vpop.f32.mrb[0].mxu0
      %v993 = vadd.f32 %v511, %v992
      %v994 = vpop.f32.mrb[0].mxu0
      %v995 = vpop.f32.mrb[0].mxu0
      %v996 = vadd.f32 %v511, %v995
      %v997 = vpop.f32.mrb[0].mxu0
      %998 = vmatprep.mubr.bf16.mxu0 0
      %999 = vmatmul.mubr.bf16.gmra.mrb[0].mxu0 %v721
      %v1000 = vpop.f32.mrb[0].mxu0
      %v1001 = vadd.f32 %v511, %v1000
      %v1002 = vpop.f32.mrb[0].mxu0
      %v1003 = vpop.f32.mrb[0].mxu0
      %v1004 = vadd.f32 %v511, %v1003
      %v1005 = vpop.f32.mrb[0].mxu0
      %1006 = vmatprep.mubr.bf16.mxu0 0
      %1007 = vmatmul.mubr.bf16.gmra.mrb[0].mxu0 %v724
      %v1008 = vpop.f32.mrb[0].mxu0
      %v1009 = vadd.f32 %v511, %v1008
      %v1010 = vpop.f32.mrb[0].mxu0
      %v1011 = vpop.f32.mrb[0].mxu0
      %v1012 = vadd.f32 %v511, %v1011
      %v1013 = vpop.f32.mrb[0].mxu0
      %1014 = vdwg.mxu0
      %v1015 = vtanh.pop %v761
      %v1016 = vtanh.pop %v764
      %v1017 = vtanh.pop %v769
      %v1018 = vtanh.pop %v772
      %v1019 = vtanh.pop %v777
      %v1020 = vtanh.pop %v780
      %v1021 = vtanh.pop %v785
      %v1022 = vtanh.pop %v788
      %v1023 = vtanh.pop %v793
      %v1024 = vtanh.pop %v796
      %v1025 = vtanh.pop %v801
      %v1026 = vtanh.pop %v804
      %v1027 = vtanh.pop %v809
      %v1028 = vtanh.pop %v812
      %v1029 = vtanh.pop %v817
      %v1030 = vtanh.pop %v820
      %v1031 = vtanh.pop %v825
      %v1032 = vtanh.pop %v828
      %v1033 = vtanh.pop %v833
      %v1034 = vtanh.pop %v836
      %v1035 = vtanh.pop %v841
      %v1036 = vtanh.pop %v844
      %v1037 = vtanh.pop %v849
      %v1038 = vtanh.pop %v852
      %v1039 = vtanh.pop %v857
      %v1040 = vtanh.pop %v860
      %v1041 = vtanh.pop %v865
      %v1042 = vtanh.pop %v868
      %v1043 = vtanh.pop %v873
      %v1044 = vtanh.pop %v876
      %v1045 = vtanh.pop %v881
      %v1046 = vtanh.pop %v884
      %v1047 = vtanh.pop %v889
      %v1048 = vtanh.pop %v892
      %v1049 = vtanh.pop %v897
      %v1050 = vtanh.pop %v900
      %v1051 = vtanh.pop %v905
      %v1052 = vtanh.pop %v908
      %v1053 = vtanh.pop %v913
      %v1054 = vtanh.pop %v916
      %v1055 = vtanh.pop %v921
      %v1056 = vtanh.pop %v924
      %v1057 = vtanh.pop %v929
      %v1058 = vtanh.pop %v932
      %v1059 = vtanh.pop %v937
      %v1060 = vtanh.pop %v940
      %v1061 = vtanh.pop %v945
      %v1062 = vtanh.pop %v948
      %v1063 = vtanh.pop %v953
      %v1064 = vtanh.pop %v956
      %v1065 = vtanh.pop %v961
      %v1066 = vtanh.pop %v964
      %v1067 = vtanh.pop %v969
      %v1068 = vtanh.pop %v972
      %v1069 = vtanh.pop %v977
      %v1070 = vtanh.pop %v980
      %v1071 = vtanh.pop %v985
      %v1072 = vtanh.pop %v988
      %v1073 = vtanh.pop %v993
      %v1074 = vtanh.pop %v996
      %v1075 = vtanh.pop %v1001
      %v1076 = vtanh.pop %v1004
      %v1077 = vtanh.pop %v1009
      %v1078 = vtanh.pop %v1012
      %v1079 = vpack.c.bf16 %v623, %v622
      %v1080 = vpack.c.bf16 %v625, %v624
      %v1081 = vpack.c.bf16 %v627, %v626
      %v1082 = vpack.c.bf16 %v629, %v628
      %v1083 = vpack.c.bf16 %v1016, %v1015
      %v1084 = vpack.c.bf16 %v1018, %v1017
      %v1085 = vpack.c.bf16 %v1020, %v1019
      %v1086 = vpack.c.bf16 %v1022, %v1021
      %v1087 = vpack.c.bf16 %v1024, %v1023
      %v1088 = vpack.c.bf16 %v1026, %v1025
      %v1089 = vpack.c.bf16 %v1028, %v1027
      %v1090 = vpack.c.bf16 %v1030, %v1029
      %v1091 = vpack.c.bf16 %v1032, %v1031
      %v1092 = vpack.c.bf16 %v1034, %v1033
      %v1093 = vpack.c.bf16 %v1036, %v1035
      %v1094 = vpack.c.bf16 %v1038, %v1037
      %v1095 = vpack.c.bf16 %v1040, %v1039
      %v1096 = vpack.c.bf16 %v1042, %v1041
      %v1097 = vpack.c.bf16 %v1044, %v1043
      %v1098 = vpack.c.bf16 %v1046, %v1045
      %v1099 = vpack.c.bf16 %v1048, %v1047
      %v1100 = vpack.c.bf16 %v1050, %v1049
      %v1101 = vpack.c.bf16 %v1052, %v1051
      %v1102 = vpack.c.bf16 %v1054, %v1053
      %v1103 = vpack.c.bf16 %v1056, %v1055
      %v1104 = vpack.c.bf16 %v1058, %v1057
      %v1105 = vpack.c.bf16 %v1060, %v1059
      %v1106 = vpack.c.bf16 %v1062, %v1061
      %v1107 = vpack.c.bf16 %v1064, %v1063
      %v1108 = vpack.c.bf16 %v1066, %v1065
      %v1109 = vpack.c.bf16 %v1068, %v1067
      %v1110 = vpack.c.bf16 %v1070, %v1069
      %v1111 = vpack.c.bf16 %v1072, %v1071
      %v1112 = vpack.c.bf16 %v1074, %v1073
      %v1113 = vpack.c.bf16 %v1076, %v1075
      %v1114 = vpack.c.bf16 %v1078, %v1077
      %v1116 = vsel %vm355, %v1079, 0
      %v1119 = vsel %vm355, %v1083, 0
      %v1122 = vsel %vm355, %v1084, 0
      %v1125 = vsel %vm355, %v1085, 0
      %v1128 = vsel %vm355, %v1086, 0
      %v1131 = vsel %vm355, %v1087, 0
      %v1134 = vsel %vm355, %v1088, 0
      %v1137 = vsel %vm355, %v1089, 0
      %v1140 = vsel %vm355, %v1090, 0
      %1142 = vmatprep.subr.bf16.mxu0 0
      %1143 = vmatpush1.bf16.xpose.msra.mxu0 %v1119
      %1144 = vmatprep.subr.bf16.mxu0 0
      %1145 = vmatpush1.bf16.xpose.msra.mxu0 %v1122
      %1146 = vmatprep.subr.bf16.mxu0 0
      %1147 = vmatpush1.bf16.xpose.msra.mxu0 %v1125
      %1148 = vmatprep.subr.bf16.mxu0 0
      %1149 = vmatpush1.bf16.xpose.msra.mxu0 %v1128
      %1150 = vmatprep.subr.bf16.mxu0 0
      %1151 = vmatpush1.bf16.xpose.msra.mxu0 %v1131
      %1152 = vmatprep.subr.bf16.mxu0 0
      %1153 = vmatpush1.bf16.xpose.msra.mxu0 %v1134
      %1154 = vmatprep.subr.bf16.mxu0 0
      %1155 = vmatpush1.bf16.xpose.msra.mxu0 %v1137
      %1156 = vmatprep.subr.bf16.mxu0 0
      %1157 = vmatpush1.bf16.xpose.msra.mxu0 %v1140
      %1158 = vmatprep.subr.bf16.mxu0 0
      %1159 = vmatpush1.bf16.xpose.msra.mxu0 0
      %1160 = vmatprep.subr.bf16.mxu0 0
      %1161 = vmatpush1.bf16.xpose.msra.mxu0 0
      %1162 = vmatprep.subr.bf16.mxu0 0
      %1163 = vmatpush1.bf16.xpose.msra.mxu0 0
      %1164 = vmatprep.subr.bf16.mxu0 0
      %1165 = vmatpush1.bf16.xpose.msra.mxu0 0
      %1166 = vmatprep.subr.bf16.mxu0 0
      %1167 = vmatpush1.bf16.xpose.msra.mxu0 0
      %1168 = vmatprep.subr.bf16.mxu0 0
      %1169 = vmatpush1.bf16.xpose.msra.mxu0 0
      %1170 = vmatprep.subr.bf16.mxu0 0
      %1171 = vmatpush1.bf16.xpose.msra.mxu0 0
      %1172 = vmatprep.subr.bf16.mxu0 0
      %1173 = vmatpush1.bf16.xpose.msra.mxu0 0
      %1174 = vmatprep.mubr.bf16.mxu0 0
      %1175 = vmatmul.mubr.bf16.gmra.mrb[0].mxu0 %v1116
      %v1176 = vpop.f32.mrb[0].mxu0
      %v1177 = vadd.f32 0.0, %v1176
      %v1178 = vpop.f32.mrb[0].mxu0
      %v1179 = vpop.f32.mrb[0].mxu0
      %v1180 = vadd.f32 0.0, %v1179
      %v1181 = vpop.f32.mrb[0].mxu0
      %1182 = vdwg.mxu0
      %v1184 = vsel %vm355, %v1080, 0
      %v1187 = vsel %vm355, %v1091, 0
      %v1190 = vsel %vm355, %v1092, 0
      %v1193 = vsel %vm355, %v1093, 0
      %v1196 = vsel %vm355, %v1094, 0
      %v1199 = vsel %vm355, %v1095, 0
      %v1202 = vsel %vm355, %v1096, 0
      %v1205 = vsel %vm355, %v1097, 0
      %v1208 = vsel %vm355, %v1098, 0
      %1210 = vmatprep.subr.bf16.mxu0 0
      %1211 = vmatpush1.bf16.xpose.msra.mxu0 %v1187
      %1212 = vmatprep.subr.bf16.mxu0 0
      %1213 = vmatpush1.bf16.xpose.msra.mxu0 %v1190
      %1214 = vmatprep.subr.bf16.mxu0 0
      %1215 = vmatpush1.bf16.xpose.msra.mxu0 %v1193
      %1216 = vmatprep.subr.bf16.mxu0 0
      %1217 = vmatpush1.bf16.xpose.msra.mxu0 %v1196
      %1218 = vmatprep.subr.bf16.mxu0 0
      %1219 = vmatpush1.bf16.xpose.msra.mxu0 %v1199
      %1220 = vmatprep.subr.bf16.mxu0 0
      %1221 = vmatpush1.bf16.xpose.msra.mxu0 %v1202
      %1222 = vmatprep.subr.bf16.mxu0 0
      %1223 = vmatpush1.bf16.xpose.msra.mxu0 %v1205
      %1224 = vmatprep.subr.bf16.mxu0 0
      %1225 = vmatpush1.bf16.xpose.msra.mxu0 %v1208
      %1226 = vmatprep.subr.bf16.mxu0 0
      %1227 = vmatpush1.bf16.xpose.msra.mxu0 0
      %1228 = vmatprep.subr.bf16.mxu0 0
      %1229 = vmatpush1.bf16.xpose.msra.mxu0 0
      %1230 = vmatprep.subr.bf16.mxu0 0
      %1231 = vmatpush1.bf16.xpose.msra.mxu0 0
      %1232 = vmatprep.subr.bf16.mxu0 0
      %1233 = vmatpush1.bf16.xpose.msra.mxu0 0
      %1234 = vmatprep.subr.bf16.mxu0 0
      %1235 = vmatpush1.bf16.xpose.msra.mxu0 0
      %1236 = vmatprep.subr.bf16.mxu0 0
      %1237 = vmatpush1.bf16.xpose.msra.mxu0 0
      %1238 = vmatprep.subr.bf16.mxu0 0
      %1239 = vmatpush1.bf16.xpose.msra.mxu0 0
      %1240 = vmatprep.subr.bf16.mxu0 0
      %1241 = vmatpush1.bf16.xpose.msra.mxu0 0
      %1242 = vmatprep.mubr.bf16.mxu0 0
      %1243 = vmatmul.mubr.bf16.gmra.mrb[0].mxu0 %v1184
      %v1244 = vpop.f32.mrb[0].mxu0
      %v1245 = vadd.f32 0.0, %v1244
      %v1246 = vpop.f32.mrb[0].mxu0
      %v1247 = vpop.f32.mrb[0].mxu0
      %v1248 = vadd.f32 0.0, %v1247
      %v1249 = vpop.f32.mrb[0].mxu0
      %1250 = vdwg.mxu0
      %v1252 = vsel %vm355, %v1081, 0
      %v1255 = vsel %vm355, %v1099, 0
      %v1258 = vsel %vm355, %v1100, 0
      %v1261 = vsel %vm355, %v1101, 0
      %v1264 = vsel %vm355, %v1102, 0
      %v1267 = vsel %vm355, %v1103, 0
      %v1270 = vsel %vm355, %v1104, 0
      %v1273 = vsel %vm355, %v1105, 0
      %v1276 = vsel %vm355, %v1106, 0
      %1278 = vmatprep.subr.bf16.mxu0 0
      %1279 = vmatpush1.bf16.xpose.msra.mxu0 %v1255
      %1280 = vmatprep.subr.bf16.mxu0 0
      %1281 = vmatpush1.bf16.xpose.msra.mxu0 %v1258
      %1282 = vmatprep.subr.bf16.mxu0 0
      %1283 = vmatpush1.bf16.xpose.msra.mxu0 %v1261
      %1284 = vmatprep.subr.bf16.mxu0 0
      %1285 = vmatpush1.bf16.xpose.msra.mxu0 %v1264
      %1286 = vmatprep.subr.bf16.mxu0 0
      %1287 = vmatpush1.bf16.xpose.msra.mxu0 %v1267
      %1288 = vmatprep.subr.bf16.mxu0 0
      %1289 = vmatpush1.bf16.xpose.msra.mxu0 %v1270
      %1290 = vmatprep.subr.bf16.mxu0 0
      %1291 = vmatpush1.bf16.xpose.msra.mxu0 %v1273
      %1292 = vmatprep.subr.bf16.mxu0 0
      %1293 = vmatpush1.bf16.xpose.msra.mxu0 %v1276
      %1294 = vmatprep.subr.bf16.mxu0 0
      %1295 = vmatpush1.bf16.xpose.msra.mxu0 0
      %1296 = vmatprep.subr.bf16.mxu0 0
      %1297 = vmatpush1.bf16.xpose.msra.mxu0 0
      %1298 = vmatprep.subr.bf16.mxu0 0
      %1299 = vmatpush1.bf16.xpose.msra.mxu0 0
      %1300 = vmatprep.subr.bf16.mxu0 0
      %1301 = vmatpush1.bf16.xpose.msra.mxu0 0
      %1302 = vmatprep.subr.bf16.mxu0 0
      %1303 = vmatpush1.bf16.xpose.msra.mxu0 0
      %1304 = vmatprep.subr.bf16.mxu0 0
      %1305 = vmatpush1.bf16.xpose.msra.mxu0 0
      %1306 = vmatprep.subr.bf16.mxu0 0
      %1307 = vmatpush1.bf16.xpose.msra.mxu0 0
      %1308 = vmatprep.subr.bf16.mxu0 0
      %1309 = vmatpush1.bf16.xpose.msra.mxu0 0
      %1310 = vmatprep.mubr.bf16.mxu0 0
      %1311 = vmatmul.mubr.bf16.gmra.mrb[0].mxu0 %v1252
      %v1312 = vpop.f32.mrb[0].mxu0
      %v1313 = vadd.f32 0.0, %v1312
      %v1314 = vpop.f32.mrb[0].mxu0
      %v1315 = vpop.f32.mrb[0].mxu0
      %v1316 = vadd.f32 0.0, %v1315
      %v1317 = vpop.f32.mrb[0].mxu0
      %1318 = vdwg.mxu0
      %v1320 = vsel %vm355, %v1082, 0
      %v1323 = vsel %vm355, %v1107, 0
      %v1326 = vsel %vm355, %v1108, 0
      %v1329 = vsel %vm355, %v1109, 0
      %v1332 = vsel %vm355, %v1110, 0
      %v1335 = vsel %vm355, %v1111, 0
      %v1338 = vsel %vm355, %v1112, 0
      %v1341 = vsel %vm355, %v1113, 0
      %v1344 = vsel %vm355, %v1114, 0
      %1346 = vmatprep.subr.bf16.mxu0 0
      %1347 = vmatpush1.bf16.xpose.msra.mxu0 %v1323
      %1348 = vmatprep.subr.bf16.mxu0 0
      %1349 = vmatpush1.bf16.xpose.msra.mxu0 %v1326
      %1350 = vmatprep.subr.bf16.mxu0 0
      %1351 = vmatpush1.bf16.xpose.msra.mxu0 %v1329
      %1352 = vmatprep.subr.bf16.mxu0 0
      %1353 = vmatpush1.bf16.xpose.msra.mxu0 %v1332
      %1354 = vmatprep.subr.bf16.mxu0 0
      %1355 = vmatpush1.bf16.xpose.msra.mxu0 %v1335
      %1356 = vmatprep.subr.bf16.mxu0 0
      %1357 = vmatpush1.bf16.xpose.msra.mxu0 %v1338
      %1358 = vmatprep.subr.bf16.mxu0 0
      %1359 = vmatpush1.bf16.xpose.msra.mxu0 %v1341
      %1360 = vmatprep.subr.bf16.mxu0 0
      %1361 = vmatpush1.bf16.xpose.msra.mxu0 %v1344
      %1362 = vmatprep.subr.bf16.mxu0 0
      %1363 = vmatpush1.bf16.xpose.msra.mxu0 0
      %1364 = vmatprep.subr.bf16.mxu0 0
      %1365 = vmatpush1.bf16.xpose.msra.mxu0 0
      %1366 = vmatprep.subr.bf16.mxu0 0
      %1367 = vmatpush1.bf16.xpose.msra.mxu0 0
      %1368 = vmatprep.subr.bf16.mxu0 0
      %1369 = vmatpush1.bf16.xpose.msra.mxu0 0
      %1370 = vmatprep.subr.bf16.mxu0 0
      %1371 = vmatpush1.bf16.xpose.msra.mxu0 0
      %1372 = vmatprep.subr.bf16.mxu0 0
      %1373 = vmatpush1.bf16.xpose.msra.mxu0 0
      %1374 = vmatprep.subr.bf16.mxu0 0
      %1375 = vmatpush1.bf16.xpose.msra.mxu0 0
      %1376 = vmatprep.subr.bf16.mxu0 0
      %1377 = vmatpush1.bf16.xpose.msra.mxu0 0
      %1378 = vmatprep.mubr.bf16.mxu0 0
      %1379 = vmatmul.mubr.bf16.gmra.mrb[0].mxu0 %v1320
      %v1380 = vpop.f32.mrb[0].mxu0
      %v1381 = vadd.f32 0.0, %v1380
      %v1382 = vpop.f32.mrb[0].mxu0
      %v1383 = vpop.f32.mrb[0].mxu0
      %v1384 = vadd.f32 0.0, %v1383
      %v1385 = vpop.f32.mrb[0].mxu0
      %1386 = vdwg.mxu0
      %v1387 = vmul.f32 %v1177, 20.0
      %v1388 = vmul.f32 %v1180, 20.0
      %v1389 = vmul.f32 %v1245, 20.0
      %v1390 = vmul.f32 %v1248, 20.0
      %v1391 = vmul.f32 %v1313, 20.0
      %v1392 = vmul.f32 %v1316, 20.0
      %v1393 = vmul.f32 %v1381, 20.0
      %v1394 = vmul.f32 %v1384, 20.0
      %v1395 = vsel %vm456, 1, 0
      %v1396 = vsel %vm457, 1, 0
      %v1397 = vsel %vm458, 1, 0
      %v1398 = vsel %vm459, 1, 0
      %v1399 = vlaneseq
      %v1400 = vshrl.u32 %v1399, 7
      %v1401 = vsub.s32 0, %v1400
      %v1402 = vrot.slane %v1395, %v1401
      %v1403 = vlaneseq
      %v1404 = vshrl.u32 %v1403, 7
      %v1405 = vsub.s32 0, %v1404
      %v1406 = vrot.slane %v1396, %v1405
      %v1407 = vlaneseq
      %v1408 = vshrl.u32 %v1407, 7
      %v1409 = vsub.s32 0, %v1408
      %v1410 = vrot.slane %v1397, %v1409
      %v1411 = vlaneseq
      %v1412 = vshrl.u32 %v1411, 7
      %v1413 = vsub.s32 0, %v1412
      %v1414 = vrot.slane %v1398, %v1413
      %vm1415 = vcmp.eq.s32.totalorder %v1402, 1
      %vm1416 = vcmp.eq.s32.totalorder %v1406, 1
      %vm1417 = vcmp.eq.s32.totalorder %v1410, 1
      %vm1418 = vcmp.eq.s32.totalorder %v1414, 1
      %v1419 = vsel %vm1415, %v1387, -1e+30
      %v1420 = vsel %vm1415, %v1388, -1e+30
      %v1421 = vsel %vm1416, %v1389, -1e+30
      %v1422 = vsel %vm1416, %v1390, -1e+30
      %v1423 = vsel %vm1417, %v1391, -1e+30
      %v1424 = vsel %vm1417, %v1392, -1e+30
      %v1425 = vsel %vm1418, %v1393, -1e+30
      %v1426 = vsel %vm1418, %v1394, -1e+30
      %1427 = vmax.xlane.f32.xlu0 %v1419
      %v1428 = vpop.xlane.xlu0 %1427
      %1429 = vmax.xlane.f32.xlu0 %v1420
      %v1430 = vpop.xlane.xlu0 %1429
      %1431 = vmax.xlane.f32.xlu0 %v1421
      %v1432 = vpop.xlane.xlu0 %1431
      %1433 = vmax.xlane.f32.xlu0 %v1422
      %v1434 = vpop.xlane.xlu0 %1433
      %1435 = vmax.xlane.f32.xlu0 %v1423
      %v1436 = vpop.xlane.xlu0 %1435
      %1437 = vmax.xlane.f32.xlu0 %v1424
      %v1438 = vpop.xlane.xlu0 %1437
      %1439 = vmax.xlane.f32.xlu0 %v1425
      %v1440 = vpop.xlane.xlu0 %1439
      %1441 = vmax.xlane.f32.xlu0 %v1426
      %v1442 = vpop.xlane.xlu0 %1441
      %v1443 = vsub.f32 %v1419, %v1428
      %v1444 = vsub.f32 %v1420, %v1430
      %v1445 = vsub.f32 %v1421, %v1432
      %v1446 = vsub.f32 %v1422, %v1434
      %v1447 = vsub.f32 %v1423, %v1436
      %v1448 = vsub.f32 %v1424, %v1438
      %v1449 = vsub.f32 %v1425, %v1440
      %v1450 = vsub.f32 %v1426, %v1442
      %v1451 = vmul.f32 %v1443, 1.442695
      %v1452 = vpow.pop %v1451
      %v1453 = vmul.f32 %v1444, 1.442695
      %v1454 = vpow.pop %v1453
      %v1455 = vmul.f32 %v1445, 1.442695
      %v1456 = vpow.pop %v1455
      %v1457 = vmul.f32 %v1446, 1.442695
      %v1458 = vpow.pop %v1457
      %v1459 = vmul.f32 %v1447, 1.442695
      %v1460 = vpow.pop %v1459
      %v1461 = vmul.f32 %v1448, 1.442695
      %v1462 = vpow.pop %v1461
      %v1463 = vmul.f32 %v1449, 1.442695
      %v1464 = vpow.pop %v1463
      %v1465 = vmul.f32 %v1450, 1.442695
      %v1466 = vpow.pop %v1465
      %1467 = vadd.xlane.f32.xlu0 %v1452
      %v1468 = vpop.xlane.xlu0 %1467
      %1469 = vadd.xlane.f32.xlu0 %v1454
      %v1470 = vpop.xlane.xlu0 %1469
      %1471 = vadd.xlane.f32.xlu0 %v1456
      %v1472 = vpop.xlane.xlu0 %1471
      %1473 = vadd.xlane.f32.xlu0 %v1458
      %v1474 = vpop.xlane.xlu0 %1473
      %1475 = vadd.xlane.f32.xlu0 %v1460
      %v1476 = vpop.xlane.xlu0 %1475
      %1477 = vadd.xlane.f32.xlu0 %v1462
      %v1478 = vpop.xlane.xlu0 %1477
      %1479 = vadd.xlane.f32.xlu0 %v1464
      %v1480 = vpop.xlane.xlu0 %1479
      %1481 = vadd.xlane.f32.xlu0 %v1466
      %v1482 = vpop.xlane.xlu0 %1481
      %v1483 = vrcp.pop %v1468
      %v1484 = vrcp.pop %v1470
      %v1485 = vrcp.pop %v1472
      %v1486 = vrcp.pop %v1474
      %v1487 = vrcp.pop %v1476
      %v1488 = vrcp.pop %v1478
      %v1489 = vrcp.pop %v1480
      %v1490 = vrcp.pop %v1482
      %v1491 = vmul.f32 %v1452, %v1483
      %v1492 = vmul.f32 %v1454, %v1484
      %v1493 = vmul.f32 %v1456, %v1485
      %v1494 = vmul.f32 %v1458, %v1486
      %v1495 = vmul.f32 %v1460, %v1487
      %v1496 = vmul.f32 %v1462, %v1488
      %v1497 = vmul.f32 %v1464, %v1489
      %v1498 = vmul.f32 %v1466, %v1490
      %1500 = vset.pattern.permute.xlu0 0
      %1501 = vperm.xlu0 %1500, %v497
      %v1502 = vpop.permute.xlu0 %1501
      %1505 = vset.pattern.permute.xlu0 0
      %1506 = vperm.xlu0 %1505, %v498
      %v1507 = vpop.permute.xlu0 %1506
      %1510 = vset.pattern.permute.xlu0 0
      %1511 = vperm.xlu0 %1510, %v499
      %v1512 = vpop.permute.xlu0 %1511
      %1515 = vset.pattern.permute.xlu0 0
      %1516 = vperm.xlu0 %1515, %v500
      %v1517 = vpop.permute.xlu0 %1516
      %1520 = vset.pattern.permute.xlu0 0
      %1521 = vperm.xlu0 %1520, %v501
      %v1522 = vpop.permute.xlu0 %1521
      %1525 = vset.pattern.permute.xlu0 0
      %1526 = vperm.xlu0 %1525, %v502
      %v1527 = vpop.permute.xlu0 %1526
      %1530 = vset.pattern.permute.xlu0 0
      %1531 = vperm.xlu0 %1530, %v503
      %v1532 = vpop.permute.xlu0 %1531
      %1535 = vset.pattern.permute.xlu0 0
      %1536 = vperm.xlu0 %1535, %v504
      %v1537 = vpop.permute.xlu0 %1536
      %v1539 = vmul.f32 %v1491, %v1502
      %v1540 = vmul.f32 %v1492, %v1507
      %v1541 = vmul.f32 %v1493, %v1512
      %v1542 = vmul.f32 %v1494, %v1517
      %v1543 = vmul.f32 %v1495, %v1522
      %v1544 = vmul.f32 %v1496, %v1527
      %v1545 = vmul.f32 %v1497, %v1532
      %v1546 = vmul.f32 %v1498, %v1537
      %v1547 = vsel %vm1415, %v1539, -1e+30
      %v1548 = vsel %vm1415, %v1540, -1e+30
      %v1549 = vsel %vm1416, %v1541, -1e+30
      %v1550 = vsel %vm1416, %v1542, -1e+30
      %v1551 = vsel %vm1417, %v1543, -1e+30
      %v1552 = vsel %vm1417, %v1544, -1e+30
      %v1553 = vsel %vm1418, %v1545, -1e+30
      %v1554 = vsel %vm1418, %v1546, -1e+30
      %1555 = vmax.xlane.f32.xlu0 %v1547
      %v1556 = vpop.xlane.xlu0 %1555
      %1557 = vmax.xlane.f32.xlu0 %v1548
      %v1558 = vpop.xlane.xlu0 %1557
      %1559 = vmax.xlane.f32.xlu0 %v1549
      %v1560 = vpop.xlane.xlu0 %1559
      %1561 = vmax.xlane.f32.xlu0 %v1550
      %v1562 = vpop.xlane.xlu0 %1561
      %1563 = vmax.xlane.f32.xlu0 %v1551
      %v1564 = vpop.xlane.xlu0 %1563
      %1565 = vmax.xlane.f32.xlu0 %v1552
      %v1566 = vpop.xlane.xlu0 %1565
      %1567 = vmax.xlane.f32.xlu0 %v1553
      %v1568 = vpop.xlane.xlu0 %1567
      %1569 = vmax.xlane.f32.xlu0 %v1554
      %v1570 = vpop.xlane.xlu0 %1569
      %vm1571 = vcmp.eq.f32.partialorder %v1547, %v1556
      %vm1572 = vcmp.eq.f32.partialorder %v1548, %v1558
      %vm1573 = vcmp.eq.f32.partialorder %v1549, %v1560
      %vm1574 = vcmp.eq.f32.partialorder %v1550, %v1562
      %vm1575 = vcmp.eq.f32.partialorder %v1551, %v1564
      %vm1576 = vcmp.eq.f32.partialorder %v1552, %v1566
      %vm1577 = vcmp.eq.f32.partialorder %v1553, %v1568
      %vm1578 = vcmp.eq.f32.partialorder %v1554, %v1570
      %v1579 = vsel %vm1571, %v506, 128
      %v1580 = vsel %vm1572, %v506, 128
      %v1581 = vsel %vm1573, %v506, 128
      %v1582 = vsel %vm1574, %v506, 128
      %v1583 = vsel %vm1575, %v506, 128
      %v1584 = vsel %vm1576, %v506, 128
      %v1585 = vsel %vm1577, %v506, 128
      %v1586 = vsel %vm1578, %v506, 128
      %v1587 = vand.u32 %v1579, 65535
      %v1588 = vshra.s32 %v1579, 16
      %v1589 = vcvt.s32.f32 %v1587
      %v1590 = vcvt.s32.f32 %v1588
      %1591 = vmin.xlane.f32.xlu0 %v1590
      %v1592 = vpop.xlane.xlu0 %1591
      %vm1593 = vcmp.eq.f32.partialorder %v1590, %v1592
      %v1594 = vsel %vm1593, %v1589, inf
      %1595 = vmin.xlane.f32.xlu0 %v1594
      %v1596 = vpop.xlane.xlu0 %1595
      %v1597 = vcvt.f32.s32 %v1596
      %v1598 = vcvt.f32.s32 %v1592
      %v1599 = vshll.u32 %v1598, 16
      %v1600 = vadd.s32 %v1599, %v1597
      %v1601 = vand.u32 %v1580, 65535
      %v1602 = vshra.s32 %v1580, 16
      %v1603 = vcvt.s32.f32 %v1601
      %v1604 = vcvt.s32.f32 %v1602
      %1605 = vmin.xlane.f32.xlu0 %v1604
      %v1606 = vpop.xlane.xlu0 %1605
      %vm1607 = vcmp.eq.f32.partialorder %v1604, %v1606
      %v1608 = vsel %vm1607, %v1603, inf
      %1609 = vmin.xlane.f32.xlu0 %v1608
      %v1610 = vpop.xlane.xlu0 %1609
      %v1611 = vcvt.f32.s32 %v1610
      %v1612 = vcvt.f32.s32 %v1606
      %v1613 = vshll.u32 %v1612, 16
      %v1614 = vadd.s32 %v1613, %v1611
      %v1615 = vand.u32 %v1581, 65535
      %v1616 = vshra.s32 %v1581, 16
      %v1617 = vcvt.s32.f32 %v1615
      %v1618 = vcvt.s32.f32 %v1616
      %1619 = vmin.xlane.f32.xlu0 %v1618
      %v1620 = vpop.xlane.xlu0 %1619
      %vm1621 = vcmp.eq.f32.partialorder %v1618, %v1620
      %v1622 = vsel %vm1621, %v1617, inf
      %1623 = vmin.xlane.f32.xlu0 %v1622
      %v1624 = vpop.xlane.xlu0 %1623
      %v1625 = vcvt.f32.s32 %v1624
      %v1626 = vcvt.f32.s32 %v1620
      %v1627 = vshll.u32 %v1626, 16
      %v1628 = vadd.s32 %v1627, %v1625
      %v1629 = vand.u32 %v1582, 65535
      %v1630 = vshra.s32 %v1582, 16
      %v1631 = vcvt.s32.f32 %v1629
      %v1632 = vcvt.s32.f32 %v1630
      %1633 = vmin.xlane.f32.xlu0 %v1632
      %v1634 = vpop.xlane.xlu0 %1633
      %vm1635 = vcmp.eq.f32.partialorder %v1632, %v1634
      %v1636 = vsel %vm1635, %v1631, inf
      %1637 = vmin.xlane.f32.xlu0 %v1636
      %v1638 = vpop.xlane.xlu0 %1637
      %v1639 = vcvt.f32.s32 %v1638
      %v1640 = vcvt.f32.s32 %v1634
      %v1641 = vshll.u32 %v1640, 16
      %v1642 = vadd.s32 %v1641, %v1639
      %v1643 = vand.u32 %v1583, 65535
      %v1644 = vshra.s32 %v1583, 16
      %v1645 = vcvt.s32.f32 %v1643
      %v1646 = vcvt.s32.f32 %v1644
      %1647 = vmin.xlane.f32.xlu0 %v1646
      %v1648 = vpop.xlane.xlu0 %1647
      %vm1649 = vcmp.eq.f32.partialorder %v1646, %v1648
      %v1650 = vsel %vm1649, %v1645, inf
      %1651 = vmin.xlane.f32.xlu0 %v1650
      %v1652 = vpop.xlane.xlu0 %1651
      %v1653 = vcvt.f32.s32 %v1652
      %v1654 = vcvt.f32.s32 %v1648
      %v1655 = vshll.u32 %v1654, 16
      %v1656 = vadd.s32 %v1655, %v1653
      %v1657 = vand.u32 %v1584, 65535
      %v1658 = vshra.s32 %v1584, 16
      %v1659 = vcvt.s32.f32 %v1657
      %v1660 = vcvt.s32.f32 %v1658
      %1661 = vmin.xlane.f32.xlu0 %v1660
      %v1662 = vpop.xlane.xlu0 %1661
      %vm1663 = vcmp.eq.f32.partialorder %v1660, %v1662
      %v1664 = vsel %vm1663, %v1659, inf
      %1665 = vmin.xlane.f32.xlu0 %v1664
      %v1666 = vpop.xlane.xlu0 %1665
      %v1667 = vcvt.f32.s32 %v1666
      %v1668 = vcvt.f32.s32 %v1662
      %v1669 = vshll.u32 %v1668, 16
      %v1670 = vadd.s32 %v1669, %v1667
      %v1671 = vand.u32 %v1585, 65535
      %v1672 = vshra.s32 %v1585, 16
      %v1673 = vcvt.s32.f32 %v1671
      %v1674 = vcvt.s32.f32 %v1672
      %1675 = vmin.xlane.f32.xlu0 %v1674
      %v1676 = vpop.xlane.xlu0 %1675
      %vm1677 = vcmp.eq.f32.partialorder %v1674, %v1676
      %v1678 = vsel %vm1677, %v1673, inf
      %1679 = vmin.xlane.f32.xlu0 %v1678
      %v1680 = vpop.xlane.xlu0 %1679
      %v1681 = vcvt.f32.s32 %v1680
      %v1682 = vcvt.f32.s32 %v1676
      %v1683 = vshll.u32 %v1682, 16
      %v1684 = vadd.s32 %v1683, %v1681
      %v1685 = vand.u32 %v1586, 65535
      %v1686 = vshra.s32 %v1586, 16
      %v1687 = vcvt.s32.f32 %v1685
      %v1688 = vcvt.s32.f32 %v1686
      %1689 = vmin.xlane.f32.xlu0 %v1688
      %v1690 = vpop.xlane.xlu0 %1689
      %vm1691 = vcmp.eq.f32.partialorder %v1688, %v1690
      %v1692 = vsel %vm1691, %v1687, inf
      %1693 = vmin.xlane.f32.xlu0 %v1692
      %v1694 = vpop.xlane.xlu0 %1693
      %v1695 = vcvt.f32.s32 %v1694
      %v1696 = vcvt.f32.s32 %v1690
      %v1697 = vshll.u32 %v1696, 16
      %v1698 = vadd.s32 %v1697, %v1695
      %vm1699 = vcmp.eq.s32.totalorder %v506, %v1600
      %vm1700 = vcmp.eq.s32.totalorder %v506, %v1614
      %vm1701 = vcmp.eq.s32.totalorder %v506, %v1628
      %vm1702 = vcmp.eq.s32.totalorder %v506, %v1642
      %vm1703 = vcmp.eq.s32.totalorder %v506, %v1656
      %vm1704 = vcmp.eq.s32.totalorder %v506, %v1670
      %vm1705 = vcmp.eq.s32.totalorder %v506, %v1684
      %vm1706 = vcmp.eq.s32.totalorder %v506, %v1698
      %v1707 = vsel %vm1699, 1, 0
      %v1708 = vsel %vm1700, 1, 0
      %v1709 = vsel %vm1701, 1, 0
      %v1710 = vsel %vm1702, 1, 0
      %v1711 = vsel %vm1703, 1, 0
      %v1712 = vsel %vm1704, 1, 0
      %v1713 = vsel %vm1705, 1, 0
      %v1714 = vsel %vm1706, 1, 0
      %v1715 = vcvt.s32.f32 %v1707
      %v1716 = vcvt.s32.f32 %v1708
      %v1717 = vcvt.s32.f32 %v1709
      %v1718 = vcvt.s32.f32 %v1710
      %v1719 = vcvt.s32.f32 %v1711
      %v1720 = vcvt.s32.f32 %v1712
      %v1721 = vcvt.s32.f32 %v1713
      %v1722 = vcvt.s32.f32 %v1714
      %v1723 = vmul.f32 %v1715, %v1502
      %v1724 = vmul.f32 %v1716, %v1507
      %v1725 = vmul.f32 %v1717, %v1512
      %v1726 = vmul.f32 %v1718, %v1517
      %v1727 = vmul.f32 %v1719, %v1522
      %v1728 = vmul.f32 %v1720, %v1527
      %v1729 = vmul.f32 %v1721, %v1532
      %v1730 = vmul.f32 %v1722, %v1537
      %v1735 = vlaneseq
      %v1736 = vshrl.u32 %v1735, 7
      %v1737 = vsub.s32 0, %v1736
      %v1738 = vrot.slane %v346, %v1737
      %v1739 = vlaneseq
      %v1740 = vshrl.u32 %v1739, 7
      %v1741 = vsub.s32 0, %v1740
      %v1742 = vrot.slane %v347, %v1741
      %v1743 = vlaneseq
      %v1744 = vshrl.u32 %v1743, 7
      %v1745 = vsub.s32 0, %v1744
      %v1746 = vrot.slane %v348, %v1745
      %v1747 = vlaneseq
      %v1748 = vshrl.u32 %v1747, 7
      %v1749 = vsub.s32 0, %v1748
      %v1750 = vrot.slane %v349, %v1749
      %v1755 = vmul.f32 %v1723, %v1738
      %v1756 = vmul.f32 %v1724, %v1738
      %v1757 = vmul.f32 %v1725, %v1742
      %v1758 = vmul.f32 %v1726, %v1742
      %v1759 = vmul.f32 %v1727, %v1746
      %v1760 = vmul.f32 %v1728, %v1746
      %v1761 = vmul.f32 %v1729, %v1750
      %v1762 = vmul.f32 %v1730, %v1750
      %v1763 = vpack.c.bf16 %v1756, %v1755
      %v1764 = vpack.c.bf16 %v1758, %v1757
      %v1765 = vpack.c.bf16 %v1760, %v1759
      %v1766 = vpack.c.bf16 %v1762, %v1761
      %1767 = vmatprep.subr.bf16.mxu0 0
      %1768 = vmatpush1.bf16.msra.mxu0 %v424
      %1769 = vmatprep.subr.bf16.mxu0 0
      %1770 = vmatpush1.bf16.msra.mxu0 %v425
      %1771 = vmatprep.subr.bf16.mxu0 0
      %1772 = vmatpush1.bf16.msra.mxu0 %v426
      %1773 = vmatprep.subr.bf16.mxu0 0
      %1774 = vmatpush1.bf16.msra.mxu0 %v427
      %1775 = vmatprep.subr.bf16.mxu0 0
      %1776 = vmatpush1.bf16.msra.mxu0 %v428
      %1777 = vmatprep.subr.bf16.mxu0 0
      %1778 = vmatpush1.bf16.msra.mxu0 %v429
      %1779 = vmatprep.subr.bf16.mxu0 0
      %1780 = vmatpush1.bf16.msra.mxu0 %v430
      %1781 = vmatprep.subr.bf16.mxu0 0
      %1782 = vmatpush1.bf16.msra.mxu0 %v431
      %1783 = vmatprep.subr.bf16.mxu0 0
      %1784 = vmatpush1.bf16.msra.mxu0 0
      %1785 = vmatprep.subr.bf16.mxu0 0
      %1786 = vmatpush1.bf16.msra.mxu0 0
      %1787 = vmatprep.subr.bf16.mxu0 0
      %1788 = vmatpush1.bf16.msra.mxu0 0
      %1789 = vmatprep.subr.bf16.mxu0 0
      %1790 = vmatpush1.bf16.msra.mxu0 0
      %1791 = vmatprep.subr.bf16.mxu0 0
      %1792 = vmatpush1.bf16.msra.mxu0 0
      %1793 = vmatprep.subr.bf16.mxu0 0
      %1794 = vmatpush1.bf16.msra.mxu0 0
      %1795 = vmatprep.subr.bf16.mxu0 0
      %1796 = vmatpush1.bf16.msra.mxu0 0
      %1797 = vmatprep.subr.bf16.mxu0 0
      %1798 = vmatpush1.bf16.msra.mxu0 0
      %1799 = vmatprep.mubr.bf16.mxu0 0
      %1800 = vmatmul.mubr.bf16.gmra.mrb[0].mxu0 %v1763
      %v1801 = vpop.f32.mrb[0].mxu0
      %v1802 = vadd.f32 0.0, %v1801
      %v1803 = vpop.f32.mrb[0].mxu0
      %v1804 = vpop.f32.mrb[0].mxu0
      %v1805 = vadd.f32 0.0, %v1804
      %v1806 = vpop.f32.mrb[0].mxu0
      %1807 = vdwg.mxu0
      %1808 = vmatprep.subr.bf16.mxu0 0
      %1809 = vmatpush1.bf16.msra.mxu0 %v432
      %1810 = vmatprep.subr.bf16.mxu0 0
      %1811 = vmatpush1.bf16.msra.mxu0 %v433
      %1812 = vmatprep.subr.bf16.mxu0 0
      %1813 = vmatpush1.bf16.msra.mxu0 %v434
      %1814 = vmatprep.subr.bf16.mxu0 0
      %1815 = vmatpush1.bf16.msra.mxu0 %v435
      %1816 = vmatprep.subr.bf16.mxu0 0
      %1817 = vmatpush1.bf16.msra.mxu0 %v436
      %1818 = vmatprep.subr.bf16.mxu0 0
      %1819 = vmatpush1.bf16.msra.mxu0 %v437
      %1820 = vmatprep.subr.bf16.mxu0 0
      %1821 = vmatpush1.bf16.msra.mxu0 %v438
      %1822 = vmatprep.subr.bf16.mxu0 0
      %1823 = vmatpush1.bf16.msra.mxu0 %v439
      %1824 = vmatprep.subr.bf16.mxu0 0
      %1825 = vmatpush1.bf16.msra.mxu0 0
      %1826 = vmatprep.subr.bf16.mxu0 0
      %1827 = vmatpush1.bf16.msra.mxu0 0
      %1828 = vmatprep.subr.bf16.mxu0 0
      %1829 = vmatpush1.bf16.msra.mxu0 0
      %1830 = vmatprep.subr.bf16.mxu0 0
      %1831 = vmatpush1.bf16.msra.mxu0 0
      %1832 = vmatprep.subr.bf16.mxu0 0
      %1833 = vmatpush1.bf16.msra.mxu0 0
      %1834 = vmatprep.subr.bf16.mxu0 0
      %1835 = vmatpush1.bf16.msra.mxu0 0
      %1836 = vmatprep.subr.bf16.mxu0 0
      %1837 = vmatpush1.bf16.msra.mxu0 0
      %1838 = vmatprep.subr.bf16.mxu0 0
      %1839 = vmatpush1.bf16.msra.mxu0 0
      %1840 = vmatprep.mubr.bf16.mxu0 0
      %1841 = vmatmul.mubr.bf16.gmra.mrb[0].mxu0 %v1764
      %v1842 = vpop.f32.mrb[0].mxu0
      %v1843 = vadd.f32 0.0, %v1842
      %v1844 = vpop.f32.mrb[0].mxu0
      %v1845 = vpop.f32.mrb[0].mxu0
      %v1846 = vadd.f32 0.0, %v1845
      %v1847 = vpop.f32.mrb[0].mxu0
      %1848 = vdwg.mxu0
      %1849 = vmatprep.subr.bf16.mxu0 0
      %1850 = vmatpush1.bf16.msra.mxu0 %v440
      %1851 = vmatprep.subr.bf16.mxu0 0
      %1852 = vmatpush1.bf16.msra.mxu0 %v441
      %1853 = vmatprep.subr.bf16.mxu0 0
      %1854 = vmatpush1.bf16.msra.mxu0 %v442
      %1855 = vmatprep.subr.bf16.mxu0 0
      %1856 = vmatpush1.bf16.msra.mxu0 %v443
      %1857 = vmatprep.subr.bf16.mxu0 0
      %1858 = vmatpush1.bf16.msra.mxu0 %v444
      %1859 = vmatprep.subr.bf16.mxu0 0
      %1860 = vmatpush1.bf16.msra.mxu0 %v445
      %1861 = vmatprep.subr.bf16.mxu0 0
      %1862 = vmatpush1.bf16.msra.mxu0 %v446
      %1863 = vmatprep.subr.bf16.mxu0 0
      %1864 = vmatpush1.bf16.msra.mxu0 %v447
      %1865 = vmatprep.subr.bf16.mxu0 0
      %1866 = vmatpush1.bf16.msra.mxu0 0
      %1867 = vmatprep.subr.bf16.mxu0 0
      %1868 = vmatpush1.bf16.msra.mxu0 0
      %1869 = vmatprep.subr.bf16.mxu0 0
      %1870 = vmatpush1.bf16.msra.mxu0 0
      %1871 = vmatprep.subr.bf16.mxu0 0
      %1872 = vmatpush1.bf16.msra.mxu0 0
      %1873 = vmatprep.subr.bf16.mxu0 0
      %1874 = vmatpush1.bf16.msra.mxu0 0
      %1875 = vmatprep.subr.bf16.mxu0 0
      %1876 = vmatpush1.bf16.msra.mxu0 0
      %1877 = vmatprep.subr.bf16.mxu0 0
      %1878 = vmatpush1.bf16.msra.mxu0 0
      %1879 = vmatprep.subr.bf16.mxu0 0
      %1880 = vmatpush1.bf16.msra.mxu0 0
      %1881 = vmatprep.mubr.bf16.mxu0 0
      %1882 = vmatmul.mubr.bf16.gmra.mrb[0].mxu0 %v1765
      %v1883 = vpop.f32.mrb[0].mxu0
      %v1884 = vadd.f32 0.0, %v1883
      %v1885 = vpop.f32.mrb[0].mxu0
      %v1886 = vpop.f32.mrb[0].mxu0
      %v1887 = vadd.f32 0.0, %v1886
      %v1888 = vpop.f32.mrb[0].mxu0
      %1889 = vdwg.mxu0
      %1890 = vmatprep.subr.bf16.mxu0 0
      %1891 = vmatpush1.bf16.msra.mxu0 %v448
      %1892 = vmatprep.subr.bf16.mxu0 0
      %1893 = vmatpush1.bf16.msra.mxu0 %v449
      %1894 = vmatprep.subr.bf16.mxu0 0
      %1895 = vmatpush1.bf16.msra.mxu0 %v450
      %1896 = vmatprep.subr.bf16.mxu0 0
      %1897 = vmatpush1.bf16.msra.mxu0 %v451
      %1898 = vmatprep.subr.bf16.mxu0 0
      %1899 = vmatpush1.bf16.msra.mxu0 %v452
      %1900 = vmatprep.subr.bf16.mxu0 0
      %1901 = vmatpush1.bf16.msra.mxu0 %v453
      %1902 = vmatprep.subr.bf16.mxu0 0
      %1903 = vmatpush1.bf16.msra.mxu0 %v454
      %1904 = vmatprep.subr.bf16.mxu0 0
      %1905 = vmatpush1.bf16.msra.mxu0 %v455
      %1906 = vmatprep.subr.bf16.mxu0 0
      %1907 = vmatpush1.bf16.msra.mxu0 0
      %1908 = vmatprep.subr.bf16.mxu0 0
      %1909 = vmatpush1.bf16.msra.mxu0 0
      %1910 = vmatprep.subr.bf16.mxu0 0
      %1911 = vmatpush1.bf16.msra.mxu0 0
      %1912 = vmatprep.subr.bf16.mxu0 0
      %1913 = vmatpush1.bf16.msra.mxu0 0
      %1914 = vmatprep.subr.bf16.mxu0 0
      %1915 = vmatpush1.bf16.msra.mxu0 0
      %1916 = vmatprep.subr.bf16.mxu0 0
      %1917 = vmatpush1.bf16.msra.mxu0 0
      %1918 = vmatprep.subr.bf16.mxu0 0
      %1919 = vmatpush1.bf16.msra.mxu0 0
      %1920 = vmatprep.subr.bf16.mxu0 0
      %1921 = vmatpush1.bf16.msra.mxu0 0
      %1922 = vmatprep.mubr.bf16.mxu0 0
      %1923 = vmatmul.mubr.bf16.gmra.mrb[0].mxu0 %v1766
      %v1924 = vpop.f32.mrb[0].mxu0
      %v1925 = vadd.f32 0.0, %v1924
      %v1926 = vpop.f32.mrb[0].mxu0
      %v1927 = vpop.f32.mrb[0].mxu0
      %v1928 = vadd.f32 0.0, %v1927
      %v1929 = vpop.f32.mrb[0].mxu0
      %1930 = vdwg.mxu0
      %1931 = vxpose.xlu0.c.b16.start [1/8] %v1763, 128
      %1932 = vxpose.xlu0.c.b16.cont [2/8] 0, 128
      %1933 = vxpose.xlu0.c.b16.cont [3/8] 0, 128
      %1934 = vxpose.xlu0.c.b16.cont [4/8] 0, 128
      %1935 = vxpose.xlu0.c.b16.cont [5/8] 0, 128
      %1936 = vxpose.xlu0.c.b16.cont [6/8] 0, 128
      %1937 = vxpose.xlu0.c.b16.cont [7/8] 0, 128
      %1938 = vxpose.xlu0.c.b16.end [8/8] 0, 128
      %v1939 = vpop.trf.xlu0
      %v1940 = vpop.trf.xlu0
      %v1941 = vpop.trf.xlu0
      %v1942 = vpop.trf.xlu0
      %v1943 = vpop.trf.xlu0
      %v1944 = vpop.trf.xlu0
      %v1945 = vpop.trf.xlu0
      %v1946 = vpop.trf.xlu0
      %vm1948 = vcmask 130048
      %v1950 = vsel %vm1948, %v1939, 0
      %v1953 = vsel %vm1948, %v1940, 0
      %v1956 = vsel %vm1948, %v1941, 0
      %v1959 = vsel %vm1948, %v1942, 0
      %v1962 = vsel %vm1948, %v1943, 0
      %v1965 = vsel %vm1948, %v1944, 0
      %v1968 = vsel %vm1948, %v1945, 0
      %v1971 = vsel %vm1948, %v1946, 0
      %1973 = vmatprep.subr.bf16.mxu0 0
      %1974 = vmatpush1.bf16.msra.mxu0 %v529
      %1975 = vmatprep.subr.bf16.mxu0 0
      %1976 = vmatpush1.bf16.msra.mxu0 0
      %1977 = vmatprep.subr.bf16.mxu0 0
      %1978 = vmatpush1.bf16.msra.mxu0 0
      %1979 = vmatprep.subr.bf16.mxu0 0
      %1980 = vmatpush1.bf16.msra.mxu0 0
      %1981 = vmatprep.subr.bf16.mxu0 0
      %1982 = vmatpush1.bf16.msra.mxu0 0
      %1983 = vmatprep.subr.bf16.mxu0 0
      %1984 = vmatpush1.bf16.msra.mxu0 0
      %1985 = vmatprep.subr.bf16.mxu0 0
      %1986 = vmatpush1.bf16.msra.mxu0 0
      %1987 = vmatprep.subr.bf16.mxu0 0
      %1988 = vmatpush1.bf16.msra.mxu0 0
      %1989 = vmatprep.subr.bf16.mxu0 0
      %1990 = vmatpush1.bf16.msra.mxu0 0
      %1991 = vmatprep.subr.bf16.mxu0 0
      %1992 = vmatpush1.bf16.msra.mxu0 0
      %1993 = vmatprep.subr.bf16.mxu0 0
      %1994 = vmatpush1.bf16.msra.mxu0 0
      %1995 = vmatprep.subr.bf16.mxu0 0
      %1996 = vmatpush1.bf16.msra.mxu0 0
      %1997 = vmatprep.subr.bf16.mxu0 0
      %1998 = vmatpush1.bf16.msra.mxu0 0
      %1999 = vmatprep.subr.bf16.mxu0 0
      %2000 = vmatpush1.bf16.msra.mxu0 0
      %2001 = vmatprep.subr.bf16.mxu0 0
      %2002 = vmatpush1.bf16.msra.mxu0 0
      %2003 = vmatprep.subr.bf16.mxu0 0
      %2004 = vmatpush1.bf16.msra.mxu0 0
      %2005 = vmatprep.mubr.bf16.mxu0 0
      %2006 = vmatmul.mubr.bf16.gmra.mrb[0].mxu0 %v1950
      %v2007 = vpop.f32.mrb[0].mxu0
      %v2008 = vadd.f32 0.0, %v2007
      %v2009 = vpop.f32.mrb[0].mxu0
      %v2010 = vpop.f32.mrb[0].mxu0
      %v2011 = vadd.f32 0.0, %v2010
      %v2012 = vpop.f32.mrb[0].mxu0
      %2013 = vmatprep.mubr.bf16.mxu0 0
      %2014 = vmatmul.mubr.bf16.gmra.mrb[0].mxu0 %v1953
      %v2015 = vpop.f32.mrb[0].mxu0
      %v2016 = vadd.f32 0.0, %v2015
      %v2017 = vpop.f32.mrb[0].mxu0
      %v2018 = vpop.f32.mrb[0].mxu0
      %v2019 = vadd.f32 0.0, %v2018
      %v2020 = vpop.f32.mrb[0].mxu0
      %2021 = vmatprep.mubr.bf16.mxu0 0
      %2022 = vmatmul.mubr.bf16.gmra.mrb[0].mxu0 %v1956
      %v2023 = vpop.f32.mrb[0].mxu0
      %v2024 = vadd.f32 0.0, %v2023
      %v2025 = vpop.f32.mrb[0].mxu0
      %v2026 = vpop.f32.mrb[0].mxu0
      %v2027 = vadd.f32 0.0, %v2026
      %v2028 = vpop.f32.mrb[0].mxu0
      %2029 = vmatprep.mubr.bf16.mxu0 0
      %2030 = vmatmul.mubr.bf16.gmra.mrb[0].mxu0 %v1959
      %v2031 = vpop.f32.mrb[0].mxu0
      %v2032 = vadd.f32 0.0, %v2031
      %v2033 = vpop.f32.mrb[0].mxu0
      %v2034 = vpop.f32.mrb[0].mxu0
      %v2035 = vadd.f32 0.0, %v2034
      %v2036 = vpop.f32.mrb[0].mxu0
      %2037 = vmatprep.mubr.bf16.mxu0 0
      %2038 = vmatmul.mubr.bf16.gmra.mrb[0].mxu0 %v1962
      %v2039 = vpop.f32.mrb[0].mxu0
      %v2040 = vadd.f32 0.0, %v2039
      %v2041 = vpop.f32.mrb[0].mxu0
      %v2042 = vpop.f32.mrb[0].mxu0
      %v2043 = vadd.f32 0.0, %v2042
      %v2044 = vpop.f32.mrb[0].mxu0
      %2045 = vmatprep.mubr.bf16.mxu0 0
      %2046 = vmatmul.mubr.bf16.gmra.mrb[0].mxu0 %v1965
      %v2047 = vpop.f32.mrb[0].mxu0
      %v2048 = vadd.f32 0.0, %v2047
      %v2049 = vpop.f32.mrb[0].mxu0
      %v2050 = vpop.f32.mrb[0].mxu0
      %v2051 = vadd.f32 0.0, %v2050
      %v2052 = vpop.f32.mrb[0].mxu0
      %2053 = vmatprep.mubr.bf16.mxu0 0
      %2054 = vmatmul.mubr.bf16.gmra.mrb[0].mxu0 %v1968
      %v2055 = vpop.f32.mrb[0].mxu0
      %v2056 = vadd.f32 0.0, %v2055
      %v2057 = vpop.f32.mrb[0].mxu0
      %v2058 = vpop.f32.mrb[0].mxu0
      %v2059 = vadd.f32 0.0, %v2058
      %v2060 = vpop.f32.mrb[0].mxu0
      %2061 = vmatprep.mubr.bf16.mxu0 0
      %2062 = vmatmul.mubr.bf16.gmra.mrb[0].mxu0 %v1971
      %v2063 = vpop.f32.mrb[0].mxu0
      %v2064 = vadd.f32 0.0, %v2063
      %v2065 = vpop.f32.mrb[0].mxu0
      %v2066 = vpop.f32.mrb[0].mxu0
      %v2067 = vadd.f32 0.0, %v2066
      %v2068 = vpop.f32.mrb[0].mxu0
      %2069 = vdwg.mxu0
      %2070 = vxpose.xlu0.c.b16.start [1/8] %v1764, 128
      %2071 = vxpose.xlu0.c.b16.cont [2/8] 0, 128
      %2072 = vxpose.xlu0.c.b16.cont [3/8] 0, 128
      %2073 = vxpose.xlu0.c.b16.cont [4/8] 0, 128
      %2074 = vxpose.xlu0.c.b16.cont [5/8] 0, 128
      %2075 = vxpose.xlu0.c.b16.cont [6/8] 0, 128
      %2076 = vxpose.xlu0.c.b16.cont [7/8] 0, 128
      %2077 = vxpose.xlu0.c.b16.end [8/8] 0, 128
      %v2078 = vpop.trf.xlu0
      %v2079 = vpop.trf.xlu0
      %v2080 = vpop.trf.xlu0
      %v2081 = vpop.trf.xlu0
      %v2082 = vpop.trf.xlu0
      %v2083 = vpop.trf.xlu0
      %v2084 = vpop.trf.xlu0
      %v2085 = vpop.trf.xlu0
      %v2088 = vsel %vm1948, %v2078, 0
      %v2091 = vsel %vm1948, %v2079, 0
      %v2094 = vsel %vm1948, %v2080, 0
      %v2097 = vsel %vm1948, %v2081, 0
      %v2100 = vsel %vm1948, %v2082, 0
      %v2103 = vsel %vm1948, %v2083, 0
      %v2106 = vsel %vm1948, %v2084, 0
      %v2109 = vsel %vm1948, %v2085, 0
      %2111 = vmatprep.subr.bf16.mxu0 0
      %2112 = vmatpush1.bf16.msra.mxu0 %v530
      %2113 = vmatprep.subr.bf16.mxu0 0
      %2114 = vmatpush1.bf16.msra.mxu0 0
      %2115 = vmatprep.subr.bf16.mxu0 0
      %2116 = vmatpush1.bf16.msra.mxu0 0
      %2117 = vmatprep.subr.bf16.mxu0 0
      %2118 = vmatpush1.bf16.msra.mxu0 0
      %2119 = vmatprep.subr.bf16.mxu0 0
      %2120 = vmatpush1.bf16.msra.mxu0 0
      %2121 = vmatprep.subr.bf16.mxu0 0
      %2122 = vmatpush1.bf16.msra.mxu0 0
      %2123 = vmatprep.subr.bf16.mxu0 0
      %2124 = vmatpush1.bf16.msra.mxu0 0
      %2125 = vmatprep.subr.bf16.mxu0 0
      %2126 = vmatpush1.bf16.msra.mxu0 0
      %2127 = vmatprep.subr.bf16.mxu0 0
      %2128 = vmatpush1.bf16.msra.mxu0 0
      %2129 = vmatprep.subr.bf16.mxu0 0
      %2130 = vmatpush1.bf16.msra.mxu0 0
      %2131 = vmatprep.subr.bf16.mxu0 0
      %2132 = vmatpush1.bf16.msra.mxu0 0
      %2133 = vmatprep.subr.bf16.mxu0 0
      %2134 = vmatpush1.bf16.msra.mxu0 0
      %2135 = vmatprep.subr.bf16.mxu0 0
      %2136 = vmatpush1.bf16.msra.mxu0 0
      %2137 = vmatprep.subr.bf16.mxu0 0
      %2138 = vmatpush1.bf16.msra.mxu0 0
      %2139 = vmatprep.subr.bf16.mxu0 0
      %2140 = vmatpush1.bf16.msra.mxu0 0
      %2141 = vmatprep.subr.bf16.mxu0 0
      %2142 = vmatpush1.bf16.msra.mxu0 0
      %2143 = vmatprep.mubr.bf16.mxu0 0
      %2144 = vmatmul.mubr.bf16.gmra.mrb[0].mxu0 %v2088
      %v2145 = vpop.f32.mrb[0].mxu0
      %v2146 = vadd.f32 0.0, %v2145
      %v2147 = vpop.f32.mrb[0].mxu0
      %v2148 = vpop.f32.mrb[0].mxu0
      %v2149 = vadd.f32 0.0, %v2148
      %v2150 = vpop.f32.mrb[0].mxu0
      %2151 = vmatprep.mubr.bf16.mxu0 0
      %2152 = vmatmul.mubr.bf16.gmra.mrb[0].mxu0 %v2091
      %v2153 = vpop.f32.mrb[0].mxu0
      %v2154 = vadd.f32 0.0, %v2153
      %v2155 = vpop.f32.mrb[0].mxu0
      %v2156 = vpop.f32.mrb[0].mxu0
      %v2157 = vadd.f32 0.0, %v2156
      %v2158 = vpop.f32.mrb[0].mxu0
      %2159 = vmatprep.mubr.bf16.mxu0 0
      %2160 = vmatmul.mubr.bf16.gmra.mrb[0].mxu0 %v2094
      %v2161 = vpop.f32.mrb[0].mxu0
      %v2162 = vadd.f32 0.0, %v2161
      %v2163 = vpop.f32.mrb[0].mxu0
      %v2164 = vpop.f32.mrb[0].mxu0
      %v2165 = vadd.f32 0.0, %v2164
      %v2166 = vpop.f32.mrb[0].mxu0
      %2167 = vmatprep.mubr.bf16.mxu0 0
      %2168 = vmatmul.mubr.bf16.gmra.mrb[0].mxu0 %v2097
      %v2169 = vpop.f32.mrb[0].mxu0
      %v2170 = vadd.f32 0.0, %v2169
      %v2171 = vpop.f32.mrb[0].mxu0
      %v2172 = vpop.f32.mrb[0].mxu0
      %v2173 = vadd.f32 0.0, %v2172
      %v2174 = vpop.f32.mrb[0].mxu0
      %2175 = vmatprep.mubr.bf16.mxu0 0
      %2176 = vmatmul.mubr.bf16.gmra.mrb[0].mxu0 %v2100
      %v2177 = vpop.f32.mrb[0].mxu0
      %v2178 = vadd.f32 0.0, %v2177
      %v2179 = vpop.f32.mrb[0].mxu0
      %v2180 = vpop.f32.mrb[0].mxu0
      %v2181 = vadd.f32 0.0, %v2180
      %v2182 = vpop.f32.mrb[0].mxu0
      %2183 = vmatprep.mubr.bf16.mxu0 0
      %2184 = vmatmul.mubr.bf16.gmra.mrb[0].mxu0 %v2103
      %v2185 = vpop.f32.mrb[0].mxu0
      %v2186 = vadd.f32 0.0, %v2185
      %v2187 = vpop.f32.mrb[0].mxu0
      %v2188 = vpop.f32.mrb[0].mxu0
      %v2189 = vadd.f32 0.0, %v2188
      %v2190 = vpop.f32.mrb[0].mxu0
      %2191 = vmatprep.mubr.bf16.mxu0 0
      %2192 = vmatmul.mubr.bf16.gmra.mrb[0].mxu0 %v2106
      %v2193 = vpop.f32.mrb[0].mxu0
      %v2194 = vadd.f32 0.0, %v2193
      %v2195 = vpop.f32.mrb[0].mxu0
      %v2196 = vpop.f32.mrb[0].mxu0
      %v2197 = vadd.f32 0.0, %v2196
      %v2198 = vpop.f32.mrb[0].mxu0
      %2199 = vmatprep.mubr.bf16.mxu0 0
      %2200 = vmatmul.mubr.bf16.gmra.mrb[0].mxu0 %v2109
      %v2201 = vpop.f32.mrb[0].mxu0
      %v2202 = vadd.f32 0.0, %v2201
      %v2203 = vpop.f32.mrb[0].mxu0
      %v2204 = vpop.f32.mrb[0].mxu0
      %v2205 = vadd.f32 0.0, %v2204
      %v2206 = vpop.f32.mrb[0].mxu0
      %2207 = vdwg.mxu0
      %2208 = vxpose.xlu0.c.b16.start [1/8] %v1765, 128
      %2209 = vxpose.xlu0.c.b16.cont [2/8] 0, 128
      %2210 = vxpose.xlu0.c.b16.cont [3/8] 0, 128
      %2211 = vxpose.xlu0.c.b16.cont [4/8] 0, 128
      %2212 = vxpose.xlu0.c.b16.cont [5/8] 0, 128
      %2213 = vxpose.xlu0.c.b16.cont [6/8] 0, 128
      %2214 = vxpose.xlu0.c.b16.cont [7/8] 0, 128
      %2215 = vxpose.xlu0.c.b16.end [8/8] 0, 128
      %v2216 = vpop.trf.xlu0
      %v2217 = vpop.trf.xlu0
      %v2218 = vpop.trf.xlu0
      %v2219 = vpop.trf.xlu0
      %v2220 = vpop.trf.xlu0
      %v2221 = vpop.trf.xlu0
      %v2222 = vpop.trf.xlu0
      %v2223 = vpop.trf.xlu0
      %v2226 = vsel %vm1948, %v2216, 0
      %v2229 = vsel %vm1948, %v2217, 0
      %v2232 = vsel %vm1948, %v2218, 0
      %v2235 = vsel %vm1948, %v2219, 0
      %v2238 = vsel %vm1948, %v2220, 0
      %v2241 = vsel %vm1948, %v2221, 0
      %v2244 = vsel %vm1948, %v2222, 0
      %v2247 = vsel %vm1948, %v2223, 0
      %2249 = vmatprep.subr.bf16.mxu0 0
      %2250 = vmatpush1.bf16.msra.mxu0 %v531
      %2251 = vmatprep.subr.bf16.mxu0 0
      %2252 = vmatpush1.bf16.msra.mxu0 0
      %2253 = vmatprep.subr.bf16.mxu0 0
      %2254 = vmatpush1.bf16.msra.mxu0 0
      %2255 = vmatprep.subr.bf16.mxu0 0
      %2256 = vmatpush1.bf16.msra.mxu0 0
      %2257 = vmatprep.subr.bf16.mxu0 0
      %2258 = vmatpush1.bf16.msra.mxu0 0
      %2259 = vmatprep.subr.bf16.mxu0 0
      %2260 = vmatpush1.bf16.msra.mxu0 0
      %2261 = vmatprep.subr.bf16.mxu0 0
      %2262 = vmatpush1.bf16.msra.mxu0 0
      %2263 = vmatprep.subr.bf16.mxu0 0
      %2264 = vmatpush1.bf16.msra.mxu0 0
      %2265 = vmatprep.subr.bf16.mxu0 0
      %2266 = vmatpush1.bf16.msra.mxu0 0
      %2267 = vmatprep.subr.bf16.mxu0 0
      %2268 = vmatpush1.bf16.msra.mxu0 0
      %2269 = vmatprep.subr.bf16.mxu0 0
      %2270 = vmatpush1.bf16.msra.mxu0 0
      %2271 = vmatprep.subr.bf16.mxu0 0
      %2272 = vmatpush1.bf16.msra.mxu0 0
      %2273 = vmatprep.subr.bf16.mxu0 0
      %2274 = vmatpush1.bf16.msra.mxu0 0
      %2275 = vmatprep.subr.bf16.mxu0 0
      %2276 = vmatpush1.bf16.msra.mxu0 0
      %2277 = vmatprep.subr.bf16.mxu0 0
      %2278 = vmatpush1.bf16.msra.mxu0 0
      %2279 = vmatprep.subr.bf16.mxu0 0
      %2280 = vmatpush1.bf16.msra.mxu0 0
      %2281 = vmatprep.mubr.bf16.mxu0 0
      %2282 = vmatmul.mubr.bf16.gmra.mrb[0].mxu0 %v2226
      %v2283 = vpop.f32.mrb[0].mxu0
      %v2284 = vadd.f32 0.0, %v2283
      %v2285 = vpop.f32.mrb[0].mxu0
      %v2286 = vpop.f32.mrb[0].mxu0
      %v2287 = vadd.f32 0.0, %v2286
      %v2288 = vpop.f32.mrb[0].mxu0
      %2289 = vmatprep.mubr.bf16.mxu0 0
      %2290 = vmatmul.mubr.bf16.gmra.mrb[0].mxu0 %v2229
      %v2291 = vpop.f32.mrb[0].mxu0
      %v2292 = vadd.f32 0.0, %v2291
      %v2293 = vpop.f32.mrb[0].mxu0
      %v2294 = vpop.f32.mrb[0].mxu0
      %v2295 = vadd.f32 0.0, %v2294
      %v2296 = vpop.f32.mrb[0].mxu0
      %2297 = vmatprep.mubr.bf16.mxu0 0
      %2298 = vmatmul.mubr.bf16.gmra.mrb[0].mxu0 %v2232
      %v2299 = vpop.f32.mrb[0].mxu0
      %v2300 = vadd.f32 0.0, %v2299
      %v2301 = vpop.f32.mrb[0].mxu0
      %v2302 = vpop.f32.mrb[0].mxu0
      %v2303 = vadd.f32 0.0, %v2302
      %v2304 = vpop.f32.mrb[0].mxu0
      %2305 = vmatprep.mubr.bf16.mxu0 0
      %2306 = vmatmul.mubr.bf16.gmra.mrb[0].mxu0 %v2235
      %v2307 = vpop.f32.mrb[0].mxu0
      %v2308 = vadd.f32 0.0, %v2307
      %v2309 = vpop.f32.mrb[0].mxu0
      %v2310 = vpop.f32.mrb[0].mxu0
      %v2311 = vadd.f32 0.0, %v2310
      %v2312 = vpop.f32.mrb[0].mxu0
      %2313 = vmatprep.mubr.bf16.mxu0 0
      %2314 = vmatmul.mubr.bf16.gmra.mrb[0].mxu0 %v2238
      %v2315 = vpop.f32.mrb[0].mxu0
      %v2316 = vadd.f32 0.0, %v2315
      %v2317 = vpop.f32.mrb[0].mxu0
      %v2318 = vpop.f32.mrb[0].mxu0
      %v2319 = vadd.f32 0.0, %v2318
      %v2320 = vpop.f32.mrb[0].mxu0
      %2321 = vmatprep.mubr.bf16.mxu0 0
      %2322 = vmatmul.mubr.bf16.gmra.mrb[0].mxu0 %v2241
      %v2323 = vpop.f32.mrb[0].mxu0
      %v2324 = vadd.f32 0.0, %v2323
      %v2325 = vpop.f32.mrb[0].mxu0
      %v2326 = vpop.f32.mrb[0].mxu0
      %v2327 = vadd.f32 0.0, %v2326
      %v2328 = vpop.f32.mrb[0].mxu0
      %2329 = vmatprep.mubr.bf16.mxu0 0
      %2330 = vmatmul.mubr.bf16.gmra.mrb[0].mxu0 %v2244
      %v2331 = vpop.f32.mrb[0].mxu0
      %v2332 = vadd.f32 0.0, %v2331
      %v2333 = vpop.f32.mrb[0].mxu0
      %v2334 = vpop.f32.mrb[0].mxu0
      %v2335 = vadd.f32 0.0, %v2334
      %v2336 = vpop.f32.mrb[0].mxu0
      %2337 = vmatprep.mubr.bf16.mxu0 0
      %2338 = vmatmul.mubr.bf16.gmra.mrb[0].mxu0 %v2247
      %v2339 = vpop.f32.mrb[0].mxu0
      %v2340 = vadd.f32 0.0, %v2339
      %v2341 = vpop.f32.mrb[0].mxu0
      %v2342 = vpop.f32.mrb[0].mxu0
      %v2343 = vadd.f32 0.0, %v2342
      %v2344 = vpop.f32.mrb[0].mxu0
      %2345 = vdwg.mxu0
      %2346 = vxpose.xlu0.c.b16.start [1/8] %v1766, 128
      %2347 = vxpose.xlu0.c.b16.cont [2/8] 0, 128
      %2348 = vxpose.xlu0.c.b16.cont [3/8] 0, 128
      %2349 = vxpose.xlu0.c.b16.cont [4/8] 0, 128
      %2350 = vxpose.xlu0.c.b16.cont [5/8] 0, 128
      %2351 = vxpose.xlu0.c.b16.cont [6/8] 0, 128
      %2352 = vxpose.xlu0.c.b16.cont [7/8] 0, 128
      %2353 = vxpose.xlu0.c.b16.end [8/8] 0, 128
      %v2354 = vpop.trf.xlu0
      %v2355 = vpop.trf.xlu0
      %v2356 = vpop.trf.xlu0
      %v2357 = vpop.trf.xlu0
      %v2358 = vpop.trf.xlu0
      %v2359 = vpop.trf.xlu0
      %v2360 = vpop.trf.xlu0
      %v2361 = vpop.trf.xlu0
      %v2364 = vsel %vm1948, %v2354, 0
      %v2367 = vsel %vm1948, %v2355, 0
      %v2370 = vsel %vm1948, %v2356, 0
      %v2373 = vsel %vm1948, %v2357, 0
      %v2376 = vsel %vm1948, %v2358, 0
      %v2379 = vsel %vm1948, %v2359, 0
      %v2382 = vsel %vm1948, %v2360, 0
      %v2385 = vsel %vm1948, %v2361, 0
      %2387 = vmatprep.subr.bf16.mxu0 0
      %2388 = vmatpush1.bf16.msra.mxu0 %v532
      %2389 = vmatprep.subr.bf16.mxu0 0
      %2390 = vmatpush1.bf16.msra.mxu0 0
      %2391 = vmatprep.subr.bf16.mxu0 0
      %2392 = vmatpush1.bf16.msra.mxu0 0
      %2393 = vmatprep.subr.bf16.mxu0 0
      %2394 = vmatpush1.bf16.msra.mxu0 0
      %2395 = vmatprep.subr.bf16.mxu0 0
      %2396 = vmatpush1.bf16.msra.mxu0 0
      %2397 = vmatprep.subr.bf16.mxu0 0
      %2398 = vmatpush1.bf16.msra.mxu0 0
      %2399 = vmatprep.subr.bf16.mxu0 0
      %2400 = vmatpush1.bf16.msra.mxu0 0
      %2401 = vmatprep.subr.bf16.mxu0 0
      %2402 = vmatpush1.bf16.msra.mxu0 0
      %2403 = vmatprep.subr.bf16.mxu0 0
      %2404 = vmatpush1.bf16.msra.mxu0 0
      %2405 = vmatprep.subr.bf16.mxu0 0
      %2406 = vmatpush1.bf16.msra.mxu0 0
      %2407 = vmatprep.subr.bf16.mxu0 0
      %2408 = vmatpush1.bf16.msra.mxu0 0
      %2409 = vmatprep.subr.bf16.mxu0 0
      %2410 = vmatpush1.bf16.msra.mxu0 0
      %2411 = vmatprep.subr.bf16.mxu0 0
      %2412 = vmatpush1.bf16.msra.mxu0 0
      %2413 = vmatprep.subr.bf16.mxu0 0
      %2414 = vmatpush1.bf16.msra.mxu0 0
      %2415 = vmatprep.subr.bf16.mxu0 0
      %2416 = vmatpush1.bf16.msra.mxu0 0
      %2417 = vmatprep.subr.bf16.mxu0 0
      %2418 = vmatpush1.bf16.msra.mxu0 0
      %2419 = vmatprep.mubr.bf16.mxu0 0
      %2420 = vmatmul.mubr.bf16.gmra.mrb[0].mxu0 %v2364
      %v2421 = vpop.f32.mrb[0].mxu0
      %v2422 = vadd.f32 0.0, %v2421
      %v2423 = vpop.f32.mrb[0].mxu0
      %v2424 = vpop.f32.mrb[0].mxu0
      %v2425 = vadd.f32 0.0, %v2424
      %v2426 = vpop.f32.mrb[0].mxu0
      %2427 = vmatprep.mubr.bf16.mxu0 0
      %2428 = vmatmul.mubr.bf16.gmra.mrb[0].mxu0 %v2367
      %v2429 = vpop.f32.mrb[0].mxu0
      %v2430 = vadd.f32 0.0, %v2429
      %v2431 = vpop.f32.mrb[0].mxu0
      %v2432 = vpop.f32.mrb[0].mxu0
      %v2433 = vadd.f32 0.0, %v2432
      %v2434 = vpop.f32.mrb[0].mxu0
      %2435 = vmatprep.mubr.bf16.mxu0 0
      %2436 = vmatmul.mubr.bf16.gmra.mrb[0].mxu0 %v2370
      %v2437 = vpop.f32.mrb[0].mxu0
      %v2438 = vadd.f32 0.0, %v2437
      %v2439 = vpop.f32.mrb[0].mxu0
      %v2440 = vpop.f32.mrb[0].mxu0
      %v2441 = vadd.f32 0.0, %v2440
      %v2442 = vpop.f32.mrb[0].mxu0
      %2443 = vmatprep.mubr.bf16.mxu0 0
      %2444 = vmatmul.mubr.bf16.gmra.mrb[0].mxu0 %v2373
      %v2445 = vpop.f32.mrb[0].mxu0
      %v2446 = vadd.f32 0.0, %v2445
      %v2447 = vpop.f32.mrb[0].mxu0
      %v2448 = vpop.f32.mrb[0].mxu0
      %v2449 = vadd.f32 0.0, %v2448
      %v2450 = vpop.f32.mrb[0].mxu0
      %2451 = vmatprep.mubr.bf16.mxu0 0
      %2452 = vmatmul.mubr.bf16.gmra.mrb[0].mxu0 %v2376
      %v2453 = vpop.f32.mrb[0].mxu0
      %v2454 = vadd.f32 0.0, %v2453
      %v2455 = vpop.f32.mrb[0].mxu0
      %v2456 = vpop.f32.mrb[0].mxu0
      %v2457 = vadd.f32 0.0, %v2456
      %v2458 = vpop.f32.mrb[0].mxu0
      %2459 = vmatprep.mubr.bf16.mxu0 0
      %2460 = vmatmul.mubr.bf16.gmra.mrb[0].mxu0 %v2379
      %v2461 = vpop.f32.mrb[0].mxu0
      %v2462 = vadd.f32 0.0, %v2461
      %v2463 = vpop.f32.mrb[0].mxu0
      %v2464 = vpop.f32.mrb[0].mxu0
      %v2465 = vadd.f32 0.0, %v2464
      %v2466 = vpop.f32.mrb[0].mxu0
      %2467 = vmatprep.mubr.bf16.mxu0 0
      %2468 = vmatmul.mubr.bf16.gmra.mrb[0].mxu0 %v2382
      %v2469 = vpop.f32.mrb[0].mxu0
      %v2470 = vadd.f32 0.0, %v2469
      %v2471 = vpop.f32.mrb[0].mxu0
      %v2472 = vpop.f32.mrb[0].mxu0
      %v2473 = vadd.f32 0.0, %v2472
      %v2474 = vpop.f32.mrb[0].mxu0
      %2475 = vmatprep.mubr.bf16.mxu0 0
      %2476 = vmatmul.mubr.bf16.gmra.mrb[0].mxu0 %v2385
      %v2477 = vpop.f32.mrb[0].mxu0
      %v2478 = vadd.f32 0.0, %v2477
      %v2479 = vpop.f32.mrb[0].mxu0
      %v2480 = vpop.f32.mrb[0].mxu0
      %v2481 = vadd.f32 0.0, %v2480
      %v2482 = vpop.f32.mrb[0].mxu0
      %2483 = vdwg.mxu0
      %v2484 = vpack.c.bf16 %v1805, %v1802
      %v2485 = vpack.c.bf16 %v1846, %v1843
      %v2486 = vpack.c.bf16 %v1887, %v1884
      %v2487 = vpack.c.bf16 %v1928, %v1925
      %v2489 = vsel %vm355, %v2484, 0
      %v2492 = vsel %vm355, %v2485, 0
      %v2495 = vsel %vm355, %v2486, 0
      %v2498 = vsel %vm355, %v2487, 0
      %2500 = vmatprep.subr.bf16.mxu0 0
      %2501 = vmatpush1.bf16.msra.mxu0 %v541
      %2502 = vmatprep.subr.bf16.mxu0 0
      %2503 = vmatpush1.bf16.msra.mxu0 %v542
      %2504 = vmatprep.subr.bf16.mxu0 0
      %2505 = vmatpush1.bf16.msra.mxu0 0
      %2506 = vmatprep.subr.bf16.mxu0 0
      %2507 = vmatpush1.bf16.msra.mxu0 0
      %2508 = vmatprep.subr.bf16.mxu0 0
      %2509 = vmatpush1.bf16.msra.mxu0 0
      %2510 = vmatprep.subr.bf16.mxu0 0
      %2511 = vmatpush1.bf16.msra.mxu0 0
      %2512 = vmatprep.subr.bf16.mxu0 0
      %2513 = vmatpush1.bf16.msra.mxu0 0
      %2514 = vmatprep.subr.bf16.mxu0 0
      %2515 = vmatpush1.bf16.msra.mxu0 0
      %2516 = vmatprep.subr.bf16.mxu0 0
      %2517 = vmatpush1.bf16.msra.mxu0 0
      %2518 = vmatprep.subr.bf16.mxu0 0
      %2519 = vmatpush1.bf16.msra.mxu0 0
      %2520 = vmatprep.subr.bf16.mxu0 0
      %2521 = vmatpush1.bf16.msra.mxu0 0
      %2522 = vmatprep.subr.bf16.mxu0 0
      %2523 = vmatpush1.bf16.msra.mxu0 0
      %2524 = vmatprep.subr.bf16.mxu0 0
      %2525 = vmatpush1.bf16.msra.mxu0 0
      %2526 = vmatprep.subr.bf16.mxu0 0
      %2527 = vmatpush1.bf16.msra.mxu0 0
      %2528 = vmatprep.subr.bf16.mxu0 0
      %2529 = vmatpush1.bf16.msra.mxu0 0
      %2530 = vmatprep.subr.bf16.mxu0 0
      %2531 = vmatpush1.bf16.msra.mxu0 0
      %2532 = vmatprep.mubr.bf16.mxu0 0
      %2533 = vmatmul.mubr.bf16.gmra.mrb[0].mxu0 %v2489
      %v2534 = vpop.f32.mrb[0].mxu0
      %v2535 = vadd.f32 %v511, %v2534
      %v2536 = vpop.f32.mrb[0].mxu0
      %v2537 = vpop.f32.mrb[0].mxu0
      %v2538 = vadd.f32 %v511, %v2537
      %v2539 = vpop.f32.mrb[0].mxu0
      %2540 = vmatprep.mubr.bf16.mxu0 0
      %2541 = vmatmul.mubr.bf16.gmra.mrb[0].mxu0 %v2492
      %v2542 = vpop.f32.mrb[0].mxu0
      %v2543 = vadd.f32 %v511, %v2542
      %v2544 = vpop.f32.mrb[0].mxu0
      %v2545 = vpop.f32.mrb[0].mxu0
      %v2546 = vadd.f32 %v511, %v2545
      %v2547 = vpop.f32.mrb[0].mxu0
      %2548 = vmatprep.mubr.bf16.mxu0 0
      %2549 = vmatmul.mubr.bf16.gmra.mrb[0].mxu0 %v2495
      %v2550 = vpop.f32.mrb[0].mxu0
      %v2551 = vadd.f32 %v511, %v2550
      %v2552 = vpop.f32.mrb[0].mxu0
      %v2553 = vpop.f32.mrb[0].mxu0
      %v2554 = vadd.f32 %v511, %v2553
      %v2555 = vpop.f32.mrb[0].mxu0
      %2556 = vmatprep.mubr.bf16.mxu0 0
      %2557 = vmatmul.mubr.bf16.gmra.mrb[0].mxu0 %v2498
      %v2558 = vpop.f32.mrb[0].mxu0
      %v2559 = vadd.f32 %v511, %v2558
      %v2560 = vpop.f32.mrb[0].mxu0
      %v2561 = vpop.f32.mrb[0].mxu0
      %v2562 = vadd.f32 %v511, %v2561
      %v2563 = vpop.f32.mrb[0].mxu0
      %2564 = vdwg.mxu0
      %v2565 = vtanh.pop %v2535
      %v2566 = vtanh.pop %v2538
      %v2567 = vtanh.pop %v2543
      %v2568 = vtanh.pop %v2546
      %v2569 = vtanh.pop %v2551
      %v2570 = vtanh.pop %v2554
      %v2571 = vtanh.pop %v2559
      %v2572 = vtanh.pop %v2562
      %v2573 = vpack.c.bf16 %v2011, %v2008
      %v2574 = vpack.c.bf16 %v2019, %v2016
      %v2575 = vpack.c.bf16 %v2027, %v2024
      %v2576 = vpack.c.bf16 %v2035, %v2032
      %v2577 = vpack.c.bf16 %v2043, %v2040
      %v2578 = vpack.c.bf16 %v2051, %v2048
      %v2579 = vpack.c.bf16 %v2059, %v2056
      %v2580 = vpack.c.bf16 %v2067, %v2064
      %v2581 = vpack.c.bf16 %v2149, %v2146
      %v2582 = vpack.c.bf16 %v2157, %v2154
      %v2583 = vpack.c.bf16 %v2165, %v2162
      %v2584 = vpack.c.bf16 %v2173, %v2170
      %v2585 = vpack.c.bf16 %v2181, %v2178
      %v2586 = vpack.c.bf16 %v2189, %v2186
      %v2587 = vpack.c.bf16 %v2197, %v2194
      %v2588 = vpack.c.bf16 %v2205, %v2202
      %v2589 = vpack.c.bf16 %v2287, %v2284
      %v2590 = vpack.c.bf16 %v2295, %v2292
      %v2591 = vpack.c.bf16 %v2303, %v2300
      %v2592 = vpack.c.bf16 %v2311, %v2308
      %v2593 = vpack.c.bf16 %v2319, %v2316
      %v2594 = vpack.c.bf16 %v2327, %v2324
      %v2595 = vpack.c.bf16 %v2335, %v2332
      %v2596 = vpack.c.bf16 %v2343, %v2340
      %v2597 = vpack.c.bf16 %v2425, %v2422
      %v2598 = vpack.c.bf16 %v2433, %v2430
      %v2599 = vpack.c.bf16 %v2441, %v2438
      %v2600 = vpack.c.bf16 %v2449, %v2446
      %v2601 = vpack.c.bf16 %v2457, %v2454
      %v2602 = vpack.c.bf16 %v2465, %v2462
      %v2603 = vpack.c.bf16 %v2473, %v2470
      %v2604 = vpack.c.bf16 %v2481, %v2478
      %v2606 = vsel %vm355, %v2573, 0
      %v2609 = vsel %vm355, %v2574, 0
      %v2612 = vsel %vm355, %v2575, 0
      %v2615 = vsel %vm355, %v2576, 0
      %v2618 = vsel %vm355, %v2577, 0
      %v2621 = vsel %vm355, %v2578, 0
      %v2624 = vsel %vm355, %v2579, 0
      %v2627 = vsel %vm355, %v2580, 0
      %v2630 = vsel %vm355, %v2581, 0
      %v2633 = vsel %vm355, %v2582, 0
      %v2636 = vsel %vm355, %v2583, 0
      %v2639 = vsel %vm355, %v2584, 0
      %v2642 = vsel %vm355, %v2585, 0
      %v2645 = vsel %vm355, %v2586, 0
      %v2648 = vsel %vm355, %v2587, 0
      %v2651 = vsel %vm355, %v2588, 0
      %v2654 = vsel %vm355, %v2589, 0
      %v2657 = vsel %vm355, %v2590, 0
      %v2660 = vsel %vm355, %v2591, 0
      %v2663 = vsel %vm355, %v2592, 0
      %v2666 = vsel %vm355, %v2593, 0
      %v2669 = vsel %vm355, %v2594, 0
      %v2672 = vsel %vm355, %v2595, 0
      %v2675 = vsel %vm355, %v2596, 0
      %v2678 = vsel %vm355, %v2597, 0
      %v2681 = vsel %vm355, %v2598, 0
      %v2684 = vsel %vm355, %v2599, 0
      %v2687 = vsel %vm355, %v2600, 0
      %v2690 = vsel %vm355, %v2601, 0
      %v2693 = vsel %vm355, %v2602, 0
      %v2696 = vsel %vm355, %v2603, 0
      %v2699 = vsel %vm355, %v2604, 0
      %2701 = vmatprep.subr.bf16.mxu0 0
      %2702 = vmatpush1.bf16.msra.mxu0 %v541
      %2703 = vmatprep.subr.bf16.mxu0 0
      %2704 = vmatpush1.bf16.msra.mxu0 %v542
      %2705 = vmatprep.subr.bf16.mxu0 0
      %2706 = vmatpush1.bf16.msra.mxu0 0
      %2707 = vmatprep.subr.bf16.mxu0 0
      %2708 = vmatpush1.bf16.msra.mxu0 0
      %2709 = vmatprep.subr.bf16.mxu0 0
      %2710 = vmatpush1.bf16.msra.mxu0 0
      %2711 = vmatprep.subr.bf16.mxu0 0
      %2712 = vmatpush1.bf16.msra.mxu0 0
      %2713 = vmatprep.subr.bf16.mxu0 0
      %2714 = vmatpush1.bf16.msra.mxu0 0
      %2715 = vmatprep.subr.bf16.mxu0 0
      %2716 = vmatpush1.bf16.msra.mxu0 0
      %2717 = vmatprep.subr.bf16.mxu0 0
      %2718 = vmatpush1.bf16.msra.mxu0 0
      %2719 = vmatprep.subr.bf16.mxu0 0
      %2720 = vmatpush1.bf16.msra.mxu0 0
      %2721 = vmatprep.subr.bf16.mxu0 0
      %2722 = vmatpush1.bf16.msra.mxu0 0
      %2723 = vmatprep.subr.bf16.mxu0 0
      %2724 = vmatpush1.bf16.msra.mxu0 0
      %2725 = vmatprep.subr.bf16.mxu0 0
      %2726 = vmatpush1.bf16.msra.mxu0 0
      %2727 = vmatprep.subr.bf16.mxu0 0
      %2728 = vmatpush1.bf16.msra.mxu0 0
      %2729 = vmatprep.subr.bf16.mxu0 0
      %2730 = vmatpush1.bf16.msra.mxu0 0
      %2731 = vmatprep.subr.bf16.mxu0 0
      %2732 = vmatpush1.bf16.msra.mxu0 0
      %2733 = vmatprep.mubr.bf16.mxu0 0
      %2734 = vmatmul.mubr.bf16.gmra.mrb[0].mxu0 %v2606
      %v2735 = vpop.f32.mrb[0].mxu0
      %v2736 = vadd.f32 %v511, %v2735
      %v2737 = vpop.f32.mrb[0].mxu0
      %v2738 = vpop.f32.mrb[0].mxu0
      %v2739 = vadd.f32 %v511, %v2738
      %v2740 = vpop.f32.mrb[0].mxu0
      %2741 = vmatprep.mubr.bf16.mxu0 0
      %2742 = vmatmul.mubr.bf16.gmra.mrb[0].mxu0 %v2609
      %v2743 = vpop.f32.mrb[0].mxu0
      %v2744 = vadd.f32 %v511, %v2743
      %v2745 = vpop.f32.mrb[0].mxu0
      %v2746 = vpop.f32.mrb[0].mxu0
      %v2747 = vadd.f32 %v511, %v2746
      %v2748 = vpop.f32.mrb[0].mxu0
      %2749 = vmatprep.mubr.bf16.mxu0 0
      %2750 = vmatmul.mubr.bf16.gmra.mrb[0].mxu0 %v2612
      %v2751 = vpop.f32.mrb[0].mxu0
      %v2752 = vadd.f32 %v511, %v2751
      %v2753 = vpop.f32.mrb[0].mxu0
      %v2754 = vpop.f32.mrb[0].mxu0
      %v2755 = vadd.f32 %v511, %v2754
      %v2756 = vpop.f32.mrb[0].mxu0
      %2757 = vmatprep.mubr.bf16.mxu0 0
      %2758 = vmatmul.mubr.bf16.gmra.mrb[0].mxu0 %v2615
      %v2759 = vpop.f32.mrb[0].mxu0
      %v2760 = vadd.f32 %v511, %v2759
      %v2761 = vpop.f32.mrb[0].mxu0
      %v2762 = vpop.f32.mrb[0].mxu0
      %v2763 = vadd.f32 %v511, %v2762
      %v2764 = vpop.f32.mrb[0].mxu0
      %2765 = vmatprep.mubr.bf16.mxu0 0
      %2766 = vmatmul.mubr.bf16.gmra.mrb[0].mxu0 %v2618
      %v2767 = vpop.f32.mrb[0].mxu0
      %v2768 = vadd.f32 %v511, %v2767
      %v2769 = vpop.f32.mrb[0].mxu0
      %v2770 = vpop.f32.mrb[0].mxu0
      %v2771 = vadd.f32 %v511, %v2770
      %v2772 = vpop.f32.mrb[0].mxu0
      %2773 = vmatprep.mubr.bf16.mxu0 0
      %2774 = vmatmul.mubr.bf16.gmra.mrb[0].mxu0 %v2621
      %v2775 = vpop.f32.mrb[0].mxu0
      %v2776 = vadd.f32 %v511, %v2775
      %v2777 = vpop.f32.mrb[0].mxu0
      %v2778 = vpop.f32.mrb[0].mxu0
      %v2779 = vadd.f32 %v511, %v2778
      %v2780 = vpop.f32.mrb[0].mxu0
      %2781 = vmatprep.mubr.bf16.mxu0 0
      %2782 = vmatmul.mubr.bf16.gmra.mrb[0].mxu0 %v2624
      %v2783 = vpop.f32.mrb[0].mxu0
      %v2784 = vadd.f32 %v511, %v2783
      %v2785 = vpop.f32.mrb[0].mxu0
      %v2786 = vpop.f32.mrb[0].mxu0
      %v2787 = vadd.f32 %v511, %v2786
      %v2788 = vpop.f32.mrb[0].mxu0
      %2789 = vmatprep.mubr.bf16.mxu0 0
      %2790 = vmatmul.mubr.bf16.gmra.mrb[0].mxu0 %v2627
      %v2791 = vpop.f32.mrb[0].mxu0
      %v2792 = vadd.f32 %v511, %v2791
      %v2793 = vpop.f32.mrb[0].mxu0
      %v2794 = vpop.f32.mrb[0].mxu0
      %v2795 = vadd.f32 %v511, %v2794
      %v2796 = vpop.f32.mrb[0].mxu0
      %2797 = vmatprep.mubr.bf16.mxu0 0
      %2798 = vmatmul.mubr.bf16.gmra.mrb[0].mxu0 %v2630
      %v2799 = vpop.f32.mrb[0].mxu0
      %v2800 = vadd.f32 %v511, %v2799
      %v2801 = vpop.f32.mrb[0].mxu0
      %v2802 = vpop.f32.mrb[0].mxu0
      %v2803 = vadd.f32 %v511, %v2802
      %v2804 = vpop.f32.mrb[0].mxu0
      %2805 = vmatprep.mubr.bf16.mxu0 0
      %2806 = vmatmul.mubr.bf16.gmra.mrb[0].mxu0 %v2633
      %v2807 = vpop.f32.mrb[0].mxu0
      %v2808 = vadd.f32 %v511, %v2807
      %v2809 = vpop.f32.mrb[0].mxu0
      %v2810 = vpop.f32.mrb[0].mxu0
      %v2811 = vadd.f32 %v511, %v2810
      %v2812 = vpop.f32.mrb[0].mxu0
      %2813 = vmatprep.mubr.bf16.mxu0 0
      %2814 = vmatmul.mubr.bf16.gmra.mrb[0].mxu0 %v2636
      %v2815 = vpop.f32.mrb[0].mxu0
      %v2816 = vadd.f32 %v511, %v2815
      %v2817 = vpop.f32.mrb[0].mxu0
      %v2818 = vpop.f32.mrb[0].mxu0
      %v2819 = vadd.f32 %v511, %v2818
      %v2820 = vpop.f32.mrb[0].mxu0
      %2821 = vmatprep.mubr.bf16.mxu0 0
      %2822 = vmatmul.mubr.bf16.gmra.mrb[0].mxu0 %v2639
      %v2823 = vpop.f32.mrb[0].mxu0
      %v2824 = vadd.f32 %v511, %v2823
      %v2825 = vpop.f32.mrb[0].mxu0
      %v2826 = vpop.f32.mrb[0].mxu0
      %v2827 = vadd.f32 %v511, %v2826
      %v2828 = vpop.f32.mrb[0].mxu0
      %2829 = vmatprep.mubr.bf16.mxu0 0
      %2830 = vmatmul.mubr.bf16.gmra.mrb[0].mxu0 %v2642
      %v2831 = vpop.f32.mrb[0].mxu0
      %v2832 = vadd.f32 %v511, %v2831
      %v2833 = vpop.f32.mrb[0].mxu0
      %v2834 = vpop.f32.mrb[0].mxu0
      %v2835 = vadd.f32 %v511, %v2834
      %v2836 = vpop.f32.mrb[0].mxu0
      %2837 = vmatprep.mubr.bf16.mxu0 0
      %2838 = vmatmul.mubr.bf16.gmra.mrb[0].mxu0 %v2645
      %v2839 = vpop.f32.mrb[0].mxu0
      %v2840 = vadd.f32 %v511, %v2839
      %v2841 = vpop.f32.mrb[0].mxu0
      %v2842 = vpop.f32.mrb[0].mxu0
      %v2843 = vadd.f32 %v511, %v2842
      %v2844 = vpop.f32.mrb[0].mxu0
      %2845 = vmatprep.mubr.bf16.mxu0 0
      %2846 = vmatmul.mubr.bf16.gmra.mrb[0].mxu0 %v2648
      %v2847 = vpop.f32.mrb[0].mxu0
      %v2848 = vadd.f32 %v511, %v2847
      %v2849 = vpop.f32.mrb[0].mxu0
      %v2850 = vpop.f32.mrb[0].mxu0
      %v2851 = vadd.f32 %v511, %v2850
      %v2852 = vpop.f32.mrb[0].mxu0
      %2853 = vmatprep.mubr.bf16.mxu0 0
      %2854 = vmatmul.mubr.bf16.gmra.mrb[0].mxu0 %v2651
      %v2855 = vpop.f32.mrb[0].mxu0
      %v2856 = vadd.f32 %v511, %v2855
      %v2857 = vpop.f32.mrb[0].mxu0
      %v2858 = vpop.f32.mrb[0].mxu0
      %v2859 = vadd.f32 %v511, %v2858
      %v2860 = vpop.f32.mrb[0].mxu0
      %2861 = vmatprep.mubr.bf16.mxu0 0
      %2862 = vmatmul.mubr.bf16.gmra.mrb[0].mxu0 %v2654
      %v2863 = vpop.f32.mrb[0].mxu0
      %v2864 = vadd.f32 %v511, %v2863
      %v2865 = vpop.f32.mrb[0].mxu0
      %v2866 = vpop.f32.mrb[0].mxu0
      %v2867 = vadd.f32 %v511, %v2866
      %v2868 = vpop.f32.mrb[0].mxu0
      %2869 = vmatprep.mubr.bf16.mxu0 0
      %2870 = vmatmul.mubr.bf16.gmra.mrb[0].mxu0 %v2657
      %v2871 = vpop.f32.mrb[0].mxu0
      %v2872 = vadd.f32 %v511, %v2871
      %v2873 = vpop.f32.mrb[0].mxu0
      %v2874 = vpop.f32.mrb[0].mxu0
      %v2875 = vadd.f32 %v511, %v2874
      %v2876 = vpop.f32.mrb[0].mxu0
      %2877 = vmatprep.mubr.bf16.mxu0 0
      %2878 = vmatmul.mubr.bf16.gmra.mrb[0].mxu0 %v2660
      %v2879 = vpop.f32.mrb[0].mxu0
      %v2880 = vadd.f32 %v511, %v2879
      %v2881 = vpop.f32.mrb[0].mxu0
      %v2882 = vpop.f32.mrb[0].mxu0
      %v2883 = vadd.f32 %v511, %v2882
      %v2884 = vpop.f32.mrb[0].mxu0
      %2885 = vmatprep.mubr.bf16.mxu0 0
      %2886 = vmatmul.mubr.bf16.gmra.mrb[0].mxu0 %v2663
      %v2887 = vpop.f32.mrb[0].mxu0
      %v2888 = vadd.f32 %v511, %v2887
      %v2889 = vpop.f32.mrb[0].mxu0
      %v2890 = vpop.f32.mrb[0].mxu0
      %v2891 = vadd.f32 %v511, %v2890
      %v2892 = vpop.f32.mrb[0].mxu0
      %2893 = vmatprep.mubr.bf16.mxu0 0
      %2894 = vmatmul.mubr.bf16.gmra.mrb[0].mxu0 %v2666
      %v2895 = vpop.f32.mrb[0].mxu0
      %v2896 = vadd.f32 %v511, %v2895
      %v2897 = vpop.f32.mrb[0].mxu0
      %v2898 = vpop.f32.mrb[0].mxu0
      %v2899 = vadd.f32 %v511, %v2898
      %v2900 = vpop.f32.mrb[0].mxu0
      %2901 = vmatprep.mubr.bf16.mxu0 0
      %2902 = vmatmul.mubr.bf16.gmra.mrb[0].mxu0 %v2669
      %v2903 = vpop.f32.mrb[0].mxu0
      %v2904 = vadd.f32 %v511, %v2903
      %v2905 = vpop.f32.mrb[0].mxu0
      %v2906 = vpop.f32.mrb[0].mxu0
      %v2907 = vadd.f32 %v511, %v2906
      %v2908 = vpop.f32.mrb[0].mxu0
      %2909 = vmatprep.mubr.bf16.mxu0 0
      %2910 = vmatmul.mubr.bf16.gmra.mrb[0].mxu0 %v2672
      %v2911 = vpop.f32.mrb[0].mxu0
      %v2912 = vadd.f32 %v511, %v2911
      %v2913 = vpop.f32.mrb[0].mxu0
      %v2914 = vpop.f32.mrb[0].mxu0
      %v2915 = vadd.f32 %v511, %v2914
      %v2916 = vpop.f32.mrb[0].mxu0
      %2917 = vmatprep.mubr.bf16.mxu0 0
      %2918 = vmatmul.mubr.bf16.gmra.mrb[0].mxu0 %v2675
      %v2919 = vpop.f32.mrb[0].mxu0
      %v2920 = vadd.f32 %v511, %v2919
      %v2921 = vpop.f32.mrb[0].mxu0
      %v2922 = vpop.f32.mrb[0].mxu0
      %v2923 = vadd.f32 %v511, %v2922
      %v2924 = vpop.f32.mrb[0].mxu0
      %2925 = vmatprep.mubr.bf16.mxu0 0
      %2926 = vmatmul.mubr.bf16.gmra.mrb[0].mxu0 %v2678
      %v2927 = vpop.f32.mrb[0].mxu0
      %v2928 = vadd.f32 %v511, %v2927
      %v2929 = vpop.f32.mrb[0].mxu0
      %v2930 = vpop.f32.mrb[0].mxu0
      %v2931 = vadd.f32 %v511, %v2930
      %v2932 = vpop.f32.mrb[0].mxu0
      %2933 = vmatprep.mubr.bf16.mxu0 0
      %2934 = vmatmul.mubr.bf16.gmra.mrb[0].mxu0 %v2681
      %v2935 = vpop.f32.mrb[0].mxu0
      %v2936 = vadd.f32 %v511, %v2935
      %v2937 = vpop.f32.mrb[0].mxu0
      %v2938 = vpop.f32.mrb[0].mxu0
      %v2939 = vadd.f32 %v511, %v2938
      %v2940 = vpop.f32.mrb[0].mxu0
      %2941 = vmatprep.mubr.bf16.mxu0 0
      %2942 = vmatmul.mubr.bf16.gmra.mrb[0].mxu0 %v2684
      %v2943 = vpop.f32.mrb[0].mxu0
      %v2944 = vadd.f32 %v511, %v2943
      %v2945 = vpop.f32.mrb[0].mxu0
      %v2946 = vpop.f32.mrb[0].mxu0
      %v2947 = vadd.f32 %v511, %v2946
      %v2948 = vpop.f32.mrb[0].mxu0
      %2949 = vmatprep.mubr.bf16.mxu0 0
      %2950 = vmatmul.mubr.bf16.gmra.mrb[0].mxu0 %v2687
      %v2951 = vpop.f32.mrb[0].mxu0
      %v2952 = vadd.f32 %v511, %v2951
      %v2953 = vpop.f32.mrb[0].mxu0
      %v2954 = vpop.f32.mrb[0].mxu0
      %v2955 = vadd.f32 %v511, %v2954
      %v2956 = vpop.f32.mrb[0].mxu0
      %2957 = vmatprep.mubr.bf16.mxu0 0
      %2958 = vmatmul.mubr.bf16.gmra.mrb[0].mxu0 %v2690
      %v2959 = vpop.f32.mrb[0].mxu0
      %v2960 = vadd.f32 %v511, %v2959
      %v2961 = vpop.f32.mrb[0].mxu0
      %v2962 = vpop.f32.mrb[0].mxu0
      %v2963 = vadd.f32 %v511, %v2962
      %v2964 = vpop.f32.mrb[0].mxu0
      %2965 = vmatprep.mubr.bf16.mxu0 0
      %2966 = vmatmul.mubr.bf16.gmra.mrb[0].mxu0 %v2693
      %v2967 = vpop.f32.mrb[0].mxu0
      %v2968 = vadd.f32 %v511, %v2967
      %v2969 = vpop.f32.mrb[0].mxu0
      %v2970 = vpop.f32.mrb[0].mxu0
      %v2971 = vadd.f32 %v511, %v2970
      %v2972 = vpop.f32.mrb[0].mxu0
      %2973 = vmatprep.mubr.bf16.mxu0 0
      %2974 = vmatmul.mubr.bf16.gmra.mrb[0].mxu0 %v2696
      %v2975 = vpop.f32.mrb[0].mxu0
      %v2976 = vadd.f32 %v511, %v2975
      %v2977 = vpop.f32.mrb[0].mxu0
      %v2978 = vpop.f32.mrb[0].mxu0
      %v2979 = vadd.f32 %v511, %v2978
      %v2980 = vpop.f32.mrb[0].mxu0
      %2981 = vmatprep.mubr.bf16.mxu0 0
      %2982 = vmatmul.mubr.bf16.gmra.mrb[0].mxu0 %v2699
      %v2983 = vpop.f32.mrb[0].mxu0
      %v2984 = vadd.f32 %v511, %v2983
      %v2985 = vpop.f32.mrb[0].mxu0
      %v2986 = vpop.f32.mrb[0].mxu0
      %v2987 = vadd.f32 %v511, %v2986
      %v2988 = vpop.f32.mrb[0].mxu0
      %2989 = vdwg.mxu0
      %v2990 = vtanh.pop %v2736
      %v2991 = vtanh.pop %v2739
      %v2992 = vtanh.pop %v2744
      %v2993 = vtanh.pop %v2747
      %v2994 = vtanh.pop %v2752
      %v2995 = vtanh.pop %v2755
      %v2996 = vtanh.pop %v2760
      %v2997 = vtanh.pop %v2763
      %v2998 = vtanh.pop %v2768
      %v2999 = vtanh.pop %v2771
      %v3000 = vtanh.pop %v2776
      %v3001 = vtanh.pop %v2779
      %v3002 = vtanh.pop %v2784
      %v3003 = vtanh.pop %v2787
      %v3004 = vtanh.pop %v2792
      %v3005 = vtanh.pop %v2795
      %v3006 = vtanh.pop %v2800
      %v3007 = vtanh.pop %v2803
      %v3008 = vtanh.pop %v2808
      %v3009 = vtanh.pop %v2811
      %v3010 = vtanh.pop %v2816
      %v3011 = vtanh.pop %v2819
      %v3012 = vtanh.pop %v2824
      %v3013 = vtanh.pop %v2827
      %v3014 = vtanh.pop %v2832
      %v3015 = vtanh.pop %v2835
      %v3016 = vtanh.pop %v2840
      %v3017 = vtanh.pop %v2843
      %v3018 = vtanh.pop %v2848
      %v3019 = vtanh.pop %v2851
      %v3020 = vtanh.pop %v2856
      %v3021 = vtanh.pop %v2859
      %v3022 = vtanh.pop %v2864
      %v3023 = vtanh.pop %v2867
      %v3024 = vtanh.pop %v2872
      %v3025 = vtanh.pop %v2875
      %v3026 = vtanh.pop %v2880
      %v3027 = vtanh.pop %v2883
      %v3028 = vtanh.pop %v2888
      %v3029 = vtanh.pop %v2891
      %v3030 = vtanh.pop %v2896
      %v3031 = vtanh.pop %v2899
      %v3032 = vtanh.pop %v2904
      %v3033 = vtanh.pop %v2907
      %v3034 = vtanh.pop %v2912
      %v3035 = vtanh.pop %v2915
      %v3036 = vtanh.pop %v2920
      %v3037 = vtanh.pop %v2923
      %v3038 = vtanh.pop %v2928
      %v3039 = vtanh.pop %v2931
      %v3040 = vtanh.pop %v2936
      %v3041 = vtanh.pop %v2939
      %v3042 = vtanh.pop %v2944
      %v3043 = vtanh.pop %v2947
      %v3044 = vtanh.pop %v2952
      %v3045 = vtanh.pop %v2955
      %v3046 = vtanh.pop %v2960
      %v3047 = vtanh.pop %v2963
      %v3048 = vtanh.pop %v2968
      %v3049 = vtanh.pop %v2971
      %v3050 = vtanh.pop %v2976
      %v3051 = vtanh.pop %v2979
      %v3052 = vtanh.pop %v2984
      %v3053 = vtanh.pop %v2987
      %v3054 = vpack.c.bf16 %v2566, %v2565
      %v3055 = vpack.c.bf16 %v2568, %v2567
      %v3056 = vpack.c.bf16 %v2570, %v2569
      %v3057 = vpack.c.bf16 %v2572, %v2571
      %v3058 = vpack.c.bf16 %v2991, %v2990
      %v3059 = vpack.c.bf16 %v2993, %v2992
      %v3060 = vpack.c.bf16 %v2995, %v2994
      %v3061 = vpack.c.bf16 %v2997, %v2996
      %v3062 = vpack.c.bf16 %v2999, %v2998
      %v3063 = vpack.c.bf16 %v3001, %v3000
      %v3064 = vpack.c.bf16 %v3003, %v3002
      %v3065 = vpack.c.bf16 %v3005, %v3004
      %v3066 = vpack.c.bf16 %v3007, %v3006
      %v3067 = vpack.c.bf16 %v3009, %v3008
      %v3068 = vpack.c.bf16 %v3011, %v3010
      %v3069 = vpack.c.bf16 %v3013, %v3012
      %v3070 = vpack.c.bf16 %v3015, %v3014
      %v3071 = vpack.c.bf16 %v3017, %v3016
      %v3072 = vpack.c.bf16 %v3019, %v3018
      %v3073 = vpack.c.bf16 %v3021, %v3020
      %v3074 = vpack.c.bf16 %v3023, %v3022
      %v3075 = vpack.c.bf16 %v3025, %v3024
      %v3076 = vpack.c.bf16 %v3027, %v3026
      %v3077 = vpack.c.bf16 %v3029, %v3028
      %v3078 = vpack.c.bf16 %v3031, %v3030
      %v3079 = vpack.c.bf16 %v3033, %v3032
      %v3080 = vpack.c.bf16 %v3035, %v3034
      %v3081 = vpack.c.bf16 %v3037, %v3036
      %v3082 = vpack.c.bf16 %v3039, %v3038
      %v3083 = vpack.c.bf16 %v3041, %v3040
      %v3084 = vpack.c.bf16 %v3043, %v3042
      %v3085 = vpack.c.bf16 %v3045, %v3044
      %v3086 = vpack.c.bf16 %v3047, %v3046
      %v3087 = vpack.c.bf16 %v3049, %v3048
      %v3088 = vpack.c.bf16 %v3051, %v3050
      %v3089 = vpack.c.bf16 %v3053, %v3052
      %v3091 = vsel %vm355, %v3054, 0
      %v3094 = vsel %vm355, %v3058, 0
      %v3097 = vsel %vm355, %v3059, 0
      %v3100 = vsel %vm355, %v3060, 0
      %v3103 = vsel %vm355, %v3061, 0
      %v3106 = vsel %vm355, %v3062, 0
      %v3109 = vsel %vm355, %v3063, 0
      %v3112 = vsel %vm355, %v3064, 0
      %v3115 = vsel %vm355, %v3065, 0
      %3117 = vmatprep.subr.bf16.mxu0 0
      %3118 = vmatpush1.bf16.xpose.msra.mxu0 %v3094
      %3119 = vmatprep.subr.bf16.mxu0 0
      %3120 = vmatpush1.bf16.xpose.msra.mxu0 %v3097
      %3121 = vmatprep.subr.bf16.mxu0 0
      %3122 = vmatpush1.bf16.xpose.msra.mxu0 %v3100
      %3123 = vmatprep.subr.bf16.mxu0 0
      %3124 = vmatpush1.bf16.xpose.msra.mxu0 %v3103
      %3125 = vmatprep.subr.bf16.mxu0 0
      %3126 = vmatpush1.bf16.xpose.msra.mxu0 %v3106
      %3127 = vmatprep.subr.bf16.mxu0 0
      %3128 = vmatpush1.bf16.xpose.msra.mxu0 %v3109
      %3129 = vmatprep.subr.bf16.mxu0 0
      %3130 = vmatpush1.bf16.xpose.msra.mxu0 %v3112
      %3131 = vmatprep.subr.bf16.mxu0 0
      %3132 = vmatpush1.bf16.xpose.msra.mxu0 %v3115
      %3133 = vmatprep.subr.bf16.mxu0 0
      %3134 = vmatpush1.bf16.xpose.msra.mxu0 0
      %3135 = vmatprep.subr.bf16.mxu0 0
      %3136 = vmatpush1.bf16.xpose.msra.mxu0 0
      %3137 = vmatprep.subr.bf16.mxu0 0
      %3138 = vmatpush1.bf16.xpose.msra.mxu0 0
      %3139 = vmatprep.subr.bf16.mxu0 0
      %3140 = vmatpush1.bf16.xpose.msra.mxu0 0
      %3141 = vmatprep.subr.bf16.mxu0 0
      %3142 = vmatpush1.bf16.xpose.msra.mxu0 0
      %3143 = vmatprep.subr.bf16.mxu0 0
      %3144 = vmatpush1.bf16.xpose.msra.mxu0 0
      %3145 = vmatprep.subr.bf16.mxu0 0
      %3146 = vmatpush1.bf16.xpose.msra.mxu0 0
      %3147 = vmatprep.subr.bf16.mxu0 0
      %3148 = vmatpush1.bf16.xpose.msra.mxu0 0
      %3149 = vmatprep.mubr.bf16.mxu0 0
      %3150 = vmatmul.mubr.bf16.gmra.mrb[0].mxu0 %v3091
      %v3151 = vpop.f32.mrb[0].mxu0
      %v3152 = vadd.f32 0.0, %v3151
      %v3153 = vpop.f32.mrb[0].mxu0
      %v3154 = vpop.f32.mrb[0].mxu0
      %v3155 = vadd.f32 0.0, %v3154
      %v3156 = vpop.f32.mrb[0].mxu0
      %3157 = vdwg.mxu0
      %v3159 = vsel %vm355, %v3055, 0
      %v3162 = vsel %vm355, %v3066, 0
      %v3165 = vsel %vm355, %v3067, 0
      %v3168 = vsel %vm355, %v3068, 0
      %v3171 = vsel %vm355, %v3069, 0
      %v3174 = vsel %vm355, %v3070, 0
      %v3177 = vsel %vm355, %v3071, 0
      %v3180 = vsel %vm355, %v3072, 0
      %v3183 = vsel %vm355, %v3073, 0
      %3185 = vmatprep.subr.bf16.mxu0 0
      %3186 = vmatpush1.bf16.xpose.msra.mxu0 %v3162
      %3187 = vmatprep.subr.bf16.mxu0 0
      %3188 = vmatpush1.bf16.xpose.msra.mxu0 %v3165
      %3189 = vmatprep.subr.bf16.mxu0 0
      %3190 = vmatpush1.bf16.xpose.msra.mxu0 %v3168
      %3191 = vmatprep.subr.bf16.mxu0 0
      %3192 = vmatpush1.bf16.xpose.msra.mxu0 %v3171
      %3193 = vmatprep.subr.bf16.mxu0 0
      %3194 = vmatpush1.bf16.xpose.msra.mxu0 %v3174
      %3195 = vmatprep.subr.bf16.mxu0 0
      %3196 = vmatpush1.bf16.xpose.msra.mxu0 %v3177
      %3197 = vmatprep.subr.bf16.mxu0 0
      %3198 = vmatpush1.bf16.xpose.msra.mxu0 %v3180
      %3199 = vmatprep.subr.bf16.mxu0 0
      %3200 = vmatpush1.bf16.xpose.msra.mxu0 %v3183
      %3201 = vmatprep.subr.bf16.mxu0 0
      %3202 = vmatpush1.bf16.xpose.msra.mxu0 0
      %3203 = vmatprep.subr.bf16.mxu0 0
      %3204 = vmatpush1.bf16.xpose.msra.mxu0 0
      %3205 = vmatprep.subr.bf16.mxu0 0
      %3206 = vmatpush1.bf16.xpose.msra.mxu0 0
      %3207 = vmatprep.subr.bf16.mxu0 0
      %3208 = vmatpush1.bf16.xpose.msra.mxu0 0
      %3209 = vmatprep.subr.bf16.mxu0 0
      %3210 = vmatpush1.bf16.xpose.msra.mxu0 0
      %3211 = vmatprep.subr.bf16.mxu0 0
      %3212 = vmatpush1.bf16.xpose.msra.mxu0 0
      %3213 = vmatprep.subr.bf16.mxu0 0
      %3214 = vmatpush1.bf16.xpose.msra.mxu0 0
      %3215 = vmatprep.subr.bf16.mxu0 0
      %3216 = vmatpush1.bf16.xpose.msra.mxu0 0
      %3217 = vmatprep.mubr.bf16.mxu0 0
      %3218 = vmatmul.mubr.bf16.gmra.mrb[0].mxu0 %v3159
      %v3219 = vpop.f32.mrb[0].mxu0
      %v3220 = vadd.f32 0.0, %v3219
      %v3221 = vpop.f32.mrb[0].mxu0
      %v3222 = vpop.f32.mrb[0].mxu0
      %v3223 = vadd.f32 0.0, %v3222
      %v3224 = vpop.f32.mrb[0].mxu0
      %3225 = vdwg.mxu0
      %v3227 = vsel %vm355, %v3056, 0
      %v3230 = vsel %vm355, %v3074, 0
      %v3233 = vsel %vm355, %v3075, 0
      %v3236 = vsel %vm355, %v3076, 0
      %v3239 = vsel %vm355, %v3077, 0
      %v3242 = vsel %vm355, %v3078, 0
      %v3245 = vsel %vm355, %v3079, 0
      %v3248 = vsel %vm355, %v3080, 0
      %v3251 = vsel %vm355, %v3081, 0
      %3253 = vmatprep.subr.bf16.mxu0 0
      %3254 = vmatpush1.bf16.xpose.msra.mxu0 %v3230
      %3255 = vmatprep.subr.bf16.mxu0 0
      %3256 = vmatpush1.bf16.xpose.msra.mxu0 %v3233
      %3257 = vmatprep.subr.bf16.mxu0 0
      %3258 = vmatpush1.bf16.xpose.msra.mxu0 %v3236
      %3259 = vmatprep.subr.bf16.mxu0 0
      %3260 = vmatpush1.bf16.xpose.msra.mxu0 %v3239
      %3261 = vmatprep.subr.bf16.mxu0 0
      %3262 = vmatpush1.bf16.xpose.msra.mxu0 %v3242
      %3263 = vmatprep.subr.bf16.mxu0 0
      %3264 = vmatpush1.bf16.xpose.msra.mxu0 %v3245
      %3265 = vmatprep.subr.bf16.mxu0 0
      %3266 = vmatpush1.bf16.xpose.msra.mxu0 %v3248
      %3267 = vmatprep.subr.bf16.mxu0 0
      %3268 = vmatpush1.bf16.xpose.msra.mxu0 %v3251
      %3269 = vmatprep.subr.bf16.mxu0 0
      %3270 = vmatpush1.bf16.xpose.msra.mxu0 0
      %3271 = vmatprep.subr.bf16.mxu0 0
      %3272 = vmatpush1.bf16.xpose.msra.mxu0 0
      %3273 = vmatprep.subr.bf16.mxu0 0
      %3274 = vmatpush1.bf16.xpose.msra.mxu0 0
      %3275 = vmatprep.subr.bf16.mxu0 0
      %3276 = vmatpush1.bf16.xpose.msra.mxu0 0
      %3277 = vmatprep.subr.bf16.mxu0 0
      %3278 = vmatpush1.bf16.xpose.msra.mxu0 0
      %3279 = vmatprep.subr.bf16.mxu0 0
      %3280 = vmatpush1.bf16.xpose.msra.mxu0 0
      %3281 = vmatprep.subr.bf16.mxu0 0
      %3282 = vmatpush1.bf16.xpose.msra.mxu0 0
      %3283 = vmatprep.subr.bf16.mxu0 0
      %3284 = vmatpush1.bf16.xpose.msra.mxu0 0
      %3285 = vmatprep.mubr.bf16.mxu0 0
      %3286 = vmatmul.mubr.bf16.gmra.mrb[0].mxu0 %v3227
      %v3287 = vpop.f32.mrb[0].mxu0
      %v3288 = vadd.f32 0.0, %v3287
      %v3289 = vpop.f32.mrb[0].mxu0
      %v3290 = vpop.f32.mrb[0].mxu0
      %v3291 = vadd.f32 0.0, %v3290
      %v3292 = vpop.f32.mrb[0].mxu0
      %3293 = vdwg.mxu0
      %v3295 = vsel %vm355, %v3057, 0
      %v3298 = vsel %vm355, %v3082, 0
      %v3301 = vsel %vm355, %v3083, 0
      %v3304 = vsel %vm355, %v3084, 0
      %v3307 = vsel %vm355, %v3085, 0
      %v3310 = vsel %vm355, %v3086, 0
      %v3313 = vsel %vm355, %v3087, 0
      %v3316 = vsel %vm355, %v3088, 0
      %v3319 = vsel %vm355, %v3089, 0
      %3321 = vmatprep.subr.bf16.mxu0 0
      %3322 = vmatpush1.bf16.xpose.msra.mxu0 %v3298
      %3323 = vmatprep.subr.bf16.mxu0 0
      %3324 = vmatpush1.bf16.xpose.msra.mxu0 %v3301
      %3325 = vmatprep.subr.bf16.mxu0 0
      %3326 = vmatpush1.bf16.xpose.msra.mxu0 %v3304
      %3327 = vmatprep.subr.bf16.mxu0 0
      %3328 = vmatpush1.bf16.xpose.msra.mxu0 %v3307
      %3329 = vmatprep.subr.bf16.mxu0 0
      %3330 = vmatpush1.bf16.xpose.msra.mxu0 %v3310
      %3331 = vmatprep.subr.bf16.mxu0 0
      %3332 = vmatpush1.bf16.xpose.msra.mxu0 %v3313
      %3333 = vmatprep.subr.bf16.mxu0 0
      %3334 = vmatpush1.bf16.xpose.msra.mxu0 %v3316
      %3335 = vmatprep.subr.bf16.mxu0 0
      %3336 = vmatpush1.bf16.xpose.msra.mxu0 %v3319
      %3337 = vmatprep.subr.bf16.mxu0 0
      %3338 = vmatpush1.bf16.xpose.msra.mxu0 0
      %3339 = vmatprep.subr.bf16.mxu0 0
      %3340 = vmatpush1.bf16.xpose.msra.mxu0 0
      %3341 = vmatprep.subr.bf16.mxu0 0
      %3342 = vmatpush1.bf16.xpose.msra.mxu0 0
      %3343 = vmatprep.subr.bf16.mxu0 0
      %3344 = vmatpush1.bf16.xpose.msra.mxu0 0
      %3345 = vmatprep.subr.bf16.mxu0 0
      %3346 = vmatpush1.bf16.xpose.msra.mxu0 0
      %3347 = vmatprep.subr.bf16.mxu0 0
      %3348 = vmatpush1.bf16.xpose.msra.mxu0 0
      %3349 = vmatprep.subr.bf16.mxu0 0
      %3350 = vmatpush1.bf16.xpose.msra.mxu0 0
      %3351 = vmatprep.subr.bf16.mxu0 0
      %3352 = vmatpush1.bf16.xpose.msra.mxu0 0
      %3353 = vmatprep.mubr.bf16.mxu0 0
      %3354 = vmatmul.mubr.bf16.gmra.mrb[0].mxu0 %v3295
      %v3355 = vpop.f32.mrb[0].mxu0
      %v3356 = vadd.f32 0.0, %v3355
      %v3357 = vpop.f32.mrb[0].mxu0
      %v3358 = vpop.f32.mrb[0].mxu0
      %v3359 = vadd.f32 0.0, %v3358
      %v3360 = vpop.f32.mrb[0].mxu0
      %3361 = vdwg.mxu0
      %v3362 = vmul.f32 %v3152, 20.0
      %v3363 = vmul.f32 %v3155, 20.0
      %v3364 = vmul.f32 %v3220, 20.0
      %v3365 = vmul.f32 %v3223, 20.0
      %v3366 = vmul.f32 %v3288, 20.0
      %v3367 = vmul.f32 %v3291, 20.0
      %v3368 = vmul.f32 %v3356, 20.0
      %v3369 = vmul.f32 %v3359, 20.0
      %v3370 = vsel %vm1415, %v3362, -1e+30
      %v3371 = vsel %vm1415, %v3363, -1e+30
      %v3372 = vsel %vm1416, %v3364, -1e+30
      %v3373 = vsel %vm1416, %v3365, -1e+30
      %v3374 = vsel %vm1417, %v3366, -1e+30
      %v3375 = vsel %vm1417, %v3367, -1e+30
      %v3376 = vsel %vm1418, %v3368, -1e+30
      %v3377 = vsel %vm1418, %v3369, -1e+30
      %3378 = vmax.xlane.f32.xlu0 %v3370
      %v3379 = vpop.xlane.xlu0 %3378
      %3380 = vmax.xlane.f32.xlu0 %v3371
      %v3381 = vpop.xlane.xlu0 %3380
      %3382 = vmax.xlane.f32.xlu0 %v3372
      %v3383 = vpop.xlane.xlu0 %3382
      %3384 = vmax.xlane.f32.xlu0 %v3373
      %v3385 = vpop.xlane.xlu0 %3384
      %3386 = vmax.xlane.f32.xlu0 %v3374
      %v3387 = vpop.xlane.xlu0 %3386
      %3388 = vmax.xlane.f32.xlu0 %v3375
      %v3389 = vpop.xlane.xlu0 %3388
      %3390 = vmax.xlane.f32.xlu0 %v3376
      %v3391 = vpop.xlane.xlu0 %3390
      %3392 = vmax.xlane.f32.xlu0 %v3377
      %v3393 = vpop.xlane.xlu0 %3392
      %v3394 = vsub.f32 %v3370, %v3379
      %v3395 = vsub.f32 %v3371, %v3381
      %v3396 = vsub.f32 %v3372, %v3383
      %v3397 = vsub.f32 %v3373, %v3385
      %v3398 = vsub.f32 %v3374, %v3387
      %v3399 = vsub.f32 %v3375, %v3389
      %v3400 = vsub.f32 %v3376, %v3391
      %v3401 = vsub.f32 %v3377, %v3393
      %v3402 = vmul.f32 %v3394, 1.442695
      %v3403 = vpow.pop %v3402
      %v3404 = vmul.f32 %v3395, 1.442695
      %v3405 = vpow.pop %v3404
      %v3406 = vmul.f32 %v3396, 1.442695
      %v3407 = vpow.pop %v3406
      %v3408 = vmul.f32 %v3397, 1.442695
      %v3409 = vpow.pop %v3408
      %v3410 = vmul.f32 %v3398, 1.442695
      %v3411 = vpow.pop %v3410
      %v3412 = vmul.f32 %v3399, 1.442695
      %v3413 = vpow.pop %v3412
      %v3414 = vmul.f32 %v3400, 1.442695
      %v3415 = vpow.pop %v3414
      %v3416 = vmul.f32 %v3401, 1.442695
      %v3417 = vpow.pop %v3416
      %3418 = vadd.xlane.f32.xlu0 %v3403
      %v3419 = vpop.xlane.xlu0 %3418
      %3420 = vadd.xlane.f32.xlu0 %v3405
      %v3421 = vpop.xlane.xlu0 %3420
      %3422 = vadd.xlane.f32.xlu0 %v3407
      %v3423 = vpop.xlane.xlu0 %3422
      %3424 = vadd.xlane.f32.xlu0 %v3409
      %v3425 = vpop.xlane.xlu0 %3424
      %3426 = vadd.xlane.f32.xlu0 %v3411
      %v3427 = vpop.xlane.xlu0 %3426
      %3428 = vadd.xlane.f32.xlu0 %v3413
      %v3429 = vpop.xlane.xlu0 %3428
      %3430 = vadd.xlane.f32.xlu0 %v3415
      %v3431 = vpop.xlane.xlu0 %3430
      %3432 = vadd.xlane.f32.xlu0 %v3417
      %v3433 = vpop.xlane.xlu0 %3432
      %v3434 = vrcp.pop %v3419
      %v3435 = vrcp.pop %v3421
      %v3436 = vrcp.pop %v3423
      %v3437 = vrcp.pop %v3425
      %v3438 = vrcp.pop %v3427
      %v3439 = vrcp.pop %v3429
      %v3440 = vrcp.pop %v3431
      %v3441 = vrcp.pop %v3433
      %v3442 = vmul.f32 %v3403, %v3434
      %v3443 = vmul.f32 %v3405, %v3435
      %v3444 = vmul.f32 %v3407, %v3436
      %v3445 = vmul.f32 %v3409, %v3437
      %v3446 = vmul.f32 %v3411, %v3438
      %v3447 = vmul.f32 %v3413, %v3439
      %v3448 = vmul.f32 %v3415, %v3440
      %v3449 = vmul.f32 %v3417, %v3441
      %v3450 = vmul.f32 %v3442, %v1502
      %v3451 = vmul.f32 %v3443, %v1507
      %v3452 = vmul.f32 %v3444, %v1512
      %v3453 = vmul.f32 %v3445, %v1517
      %v3454 = vmul.f32 %v3446, %v1522
      %v3455 = vmul.f32 %v3447, %v1527
      %v3456 = vmul.f32 %v3448, %v1532
      %v3457 = vmul.f32 %v3449, %v1537
      %3458 = vst [vmem:[%s327] sm:$0xff] %v1539
      %3459 = vst [vmem:[%s327 + $0x8] sm:$0xff] %v1540
      %3460 = vst [vmem:[%s327 + $0x30] sm:$0xff] %v1541
      %3461 = vst [vmem:[%s327 + $0x38] sm:$0xff] %v1542
      %3462 = vst [vmem:[%s327 + $0x60] sm:$0xff] %v1543
      %3463 = vst [vmem:[%s327 + $0x68] sm:$0xff] %v1544
      %3464 = vst [vmem:[%s327 + $0x90] sm:$0xff] %v1545
      %3465 = vst [vmem:[%s327 + $0x98] sm:$0xff] %v1546
      %s3466 = scalar_lea.vmem %s327, 16
      %3467 = vst [vmem:[%s3466] sm:$0xff] %v1755
      %3468 = vst [vmem:[%s3466 + $0x8] sm:$0xff] %v1756
      %3469 = vst [vmem:[%s3466 + $0x30] sm:$0xff] %v1757
      %3470 = vst [vmem:[%s3466 + $0x38] sm:$0xff] %v1758
      %3471 = vst [vmem:[%s3466 + $0x60] sm:$0xff] %v1759
      %3472 = vst [vmem:[%s3466 + $0x68] sm:$0xff] %v1760
      %3473 = vst [vmem:[%s3466 + $0x90] sm:$0xff] %v1761
      %3474 = vst [vmem:[%s3466 + $0x98] sm:$0xff] %v1762
      %s3475 = scalar_lea.vmem %s327, 32
      %3476 = vst [vmem:[%s3475] sm:$0xff] %v3450
      %3477 = vst [vmem:[%s3475 + $0x8] sm:$0xff] %v3451
      %3478 = vst [vmem:[%s3475 + $0x30] sm:$0xff] %v3452
      %3479 = vst [vmem:[%s3475 + $0x38] sm:$0xff] %v3453
      %3480 = vst [vmem:[%s3475 + $0x60] sm:$0xff] %v3454
      %3481 = vst [vmem:[%s3475 + $0x68] sm:$0xff] %v3455
      %3482 = vst [vmem:[%s3475 + $0x90] sm:$0xff] %v3456
      %3483 = vst [vmem:[%s3475 + $0x98] sm:$0xff] %v3457
      %s3484 = smul.u32 4, %s17
      %p3485 = scmp.lt.s32.totalorder %s3484, 7
      %s3486 = scalar_select %p3485, %s3484, 7
      %s3487 = smul.addr %s3486, 6
      %s3488 = smul.addr %s3487, 8
      %s3489 = scalar_lea.vmem %s6, %s3488
      // Predicated region
      $region45: #{forward.1} parent=43 // pred_check
        %p3490 = pneg %p181
      $region46: #{forward.1} parent=43 // pred_check_branch
        %3492 = sbr.rel (%p3490) target = $region48
      $region47: #{forward.1} parent=43 // pred_region
        %s3493 = smul.u32 4, %s17
      $region48: #{forward.1} parent=43 // pred_fallthru
        _
    $region44: #{forward.1} parent=5 // pred_fallthru
      _
    %p3494 = scmp.le.s32.totalorder 2, %s12
    // Predicated region
    $region49: #{forward.1} parent=5 // pred_check
      %p3495 = pneg %p3494
    $region50: #{forward.1} parent=5 // pred_check_branch
      %3497 = sbr.rel (%p3495) target = $region52
    $region51: #{forward.1} parent=5 // pred_region
      %s3498 = ssub.s32 %s12, 2
      // Predicated region
      $region53: #{forward.1} parent=51 // pred_check
        %p3499 = pneg %p187
      $region54: #{forward.1} parent=51 // pred_check_branch
        %3501 = sbr.rel (%p3499) target = $region56
      $region55: #{forward.1} parent=51 // pred_region
        %s3502 = smul.u32 4, %s18
        %p3503 = scmp.lt.s32.totalorder %s3502, 7
        %s3504 = scalar_select %p3503, %s3502, 7
        %s3505 = smul.addr %s3504, 6
        %s3506 = smul.addr %s3505, 8
        %s3507 = scalar_lea.vmem %s6, %s3506
      $region56: #{forward.1} parent=51 // pred_fallthru
        _
    $region52: #{forward.1} parent=5 // pred_fallthru
      _
  $region6: #{forward.1} parent=0 // loop_footer
    %s16 = sadd.s32 1, %s12
  $region7: #{forward.1} parent=0 // loop_footer_branch
    %11 = sbr.rel target = $region3
  $region8: #{forward.1} parent=0 // loop_exit
    _

</llo_original>
